<compile_context>
chip_gen: v7x
topology: tpu7x:2x2x1
jax: 0.10.0
libtpu: 0.0.40
codegen_flags: <defaults>
</compile_context>

<pallas_src>
import functools

import jax
import jax.numpy as jnp
from jax import lax
from jax.experimental import pallas as pl
from jax.experimental.pallas import tpu as pltpu

# ---- model hyper-parameters (see config choices above) ----
CFG_INPUT_SIZE = 16                      # config.input_size (= output_size)
MODEL_INPUT_SIZE = 3 * CFG_INPUT_SIZE    # acceleration_input -> 48
HIDDEN_SIZE = 32                         # config.hidden_size
MLP_H0 = 64                              # base_nodes_linear
MLP_H1 = 128                             # min(max_dim, 2*hidden_dim)
LSTM_IN = MODEL_INPUT_SIZE + HIDDEN_SIZE     # 48 + 32 = 80
MLP_IN = HIDDEN_SIZE + MODEL_INPUT_SIZE      # 32 + 48 = 80


def _leaky_relu(x):
    # nn.LeakyReLU default negative_slope = 0.01
    return jnp.where(x > 0, x, 0.01 * x)


def _unroll_for(n):
    # fully unroll tiny static trip counts, partially unroll larger ones
    return True if n <= 8 else 8


def _dyn_kernel(mask_ref, obs_ref,
                wx_ref, wp_ref, whh_ref, b_ref,
                w0h_ref, w0x_ref, b0_ref, w1_ref, b1_ref, w2_ref, b2_ref,
                traj_ref, hbuf_ref, *, t_obs, seq_len, bs):
    """Single-invocation kernel: full observation + decoding recurrence.

    obs_ref / traj_ref are time-flattened: row block t*bs..(t+1)*bs-1 is step t.
    traj row blocks: [0 .. t_obs-2]               -> obs_outputs
                     [t_obs-1 .. t_obs+seq_len-2] -> autoregressive outputs
    """
    H = HIDDEN_SIZE
    D = CFG_INPUT_SIZE
    f32 = jnp.float32
    bf16 = jnp.bfloat16

    # ---- loop-invariant loads / broadcasts (hoisted once) ----
    wx = wx_ref[...]       # (48, 4H) bf16, gate cols permuted to [i|f|o|g]
    wp = wp_ref[...]       # (32, 4H) bf16
    whh = whh_ref[...]     # (32, 4H) bf16
    w0h = w0h_ref[...]     # (32, 64) bf16
    w0x = w0x_ref[...]     # (48, 64) bf16
    w1 = w1_ref[...]       # (64, 128) bf16
    w2 = w2_ref[...]       # (128, 16) bf16
    bias_b = jnp.broadcast_to(b_ref[...], (bs, 4 * H))      # f32, b_ih + b_hh
    b0_b = jnp.broadcast_to(b0_ref[...], (bs, MLP_H0))
    b1_b = jnp.broadcast_to(b1_ref[...], (bs, MLP_H1))
    b2_b = jnp.broadcast_to(b2_ref[...], (bs, D))
    # Pooling mask kept 2-D (1 vreg); broadcast along H inside pool().
    # NOTE: additive -1e30 mask is only safe because pooling stays in f32.
    neg2d = (mask_ref[...] - 1.0) * 1e30                     # (bs, bs) f32

    # Pre-split input/MLP weights per [pos|vel|acc] block (loop-invariant row
    # slices at multiples of 16) -> no lane concat on the decode critical path.
    wx_p, wx_v, wx_a = wx[:D], wx[D:2 * D], wx[2 * D:]
    w0x_p, w0x_v, w0x_a = w0x[:D], w0x[D:2 * D], w0x[2 * D:]

    def mm(a, b):
        # bf16 operands, f32 accumulation on the MXU
        return jnp.dot(a.astype(bf16), b, preferred_element_type=f32)

    def pool(h):
        # pooled[p] = max_{q in group(p)} h[q]   (masked max, f32)
        return jnp.max(h[None, :, :] + neg2d[:, :, None], axis=1)

    def lstm_step(x_contrib, h, c):
        gates = x_contrib + mm(pool(h), wp) + mm(h, whh) + bias_b
        ifo = jax.nn.sigmoid(gates[:, :3 * H])     # one EUP pass for i, f, o
        g = jnp.tanh(gates[:, 3 * H:])
        i_g, f_g, o_g = ifo[:, :H], ifo[:, H:2 * H], ifo[:, 2 * H:]
        c_new = f_g * c + i_g * g
        h_new = o_g * jnp.tanh(c_new)
        return h_new, c_new

    # -------- observation phase: LSTM recurrence only --------
    # (deep-output MLP is hoisted below -- it never feeds back during obs)
    h0 = jnp.zeros((bs, H), f32)
    c0 = jnp.zeros((bs, H), f32)

    def obs_body(i, carry):
        h, c = carry
        row = pl.multiple_of(i * bs, 8)
        x48 = obs_ref[pl.ds(row, bs)]               # (bs, 48) = [x, v, a]
        h, c = lstm_step(mm(x48, wx), h, c)
        hbuf_ref[pl.ds(row, bs)] = h
        return h, c

    h_last, c_last = lax.fori_loop(0, t_obs, obs_body, (h0, c0),
                                   unroll=_unroll_for(t_obs))

    # -------- deep-output MLP, batched over all observation steps --------
    hs = hbuf_ref[...]                               # (t_obs*bs, 32)
    xs = obs_ref[...]                                # (t_obs*bs, 48)
    h1 = _leaky_relu(mm(hs, w0h) + mm(xs, w0x) + b0_ref[...])
    h2 = _leaky_relu(mm(h1, w1) + b1_ref[...])
    deep = jax.nn.sigmoid(mm(h2, w2) + b2_ref[...])  # (t_obs*bs, 16)
    pos_o = deep
    vel_o = deep - xs[:, :D]
    acc_o = vel_o - xs[:, D:2 * D]
    traj_ref[pl.ds(0, t_obs * bs)] = jnp.concatenate([pos_o, vel_o, acc_o],
                                                     axis=-1)

    # -------- decoding phase (autoregressive, seq_len >= 1) --------
    # The last observation-step output (already stored at traj block t_obs-1)
    # seeds the autoregressive recurrence.
    r0 = (t_obs - 1) * bs
    pos0 = pos_o[r0:r0 + bs]
    vel0 = vel_o[r0:r0 + bs]
    acc0 = acc_o[r0:r0 + bs]

    def dec_body(i, carry):
        h, c, p, v, a = carry
        x_contrib = mm(p, wx_p) + mm(v, wx_v) + mm(a, wx_a)
        h, c = lstm_step(x_contrib, h, c)
        h1 = _leaky_relu(mm(h, w0h) + mm(p, w0x_p) + mm(v, w0x_v)
                         + mm(a, w0x_a) + b0_b)
        h2 = _leaky_relu(mm(h1, w1) + b1_b)
        deep = jax.nn.sigmoid(mm(h2, w2) + b2_b)     # (bs, 16)
        new_p = deep
        new_v = deep - p
        new_a = new_v - v
        row = pl.multiple_of((t_obs + i) * bs, 8)
        # concat only feeds the store (not the carried state) -> off the
        # feedback critical path
        traj_ref[pl.ds(row, bs)] = jnp.concatenate([new_p, new_v, new_a],
                                                   axis=-1)
        return h, c, new_p, new_v, new_a

    if seq_len > 1:
        lax.fori_loop(0, seq_len - 1, dec_body,
                      (h_last, c_last, pos0, vel0, acc0),
                      unroll=_unroll_for(seq_len - 1))


def _permute_gate_cols(w):
    """Reorder LSTM gate blocks [i|f|g|o] -> [i|f|o|g] along the last axis."""
    H = HIDDEN_SIZE
    return jnp.concatenate([w[..., :2 * H], w[..., 3 * H:],
                            w[..., 2 * H:3 * H]], axis=-1)


def dynamical_model_forward(obs_seq, lengths, seq_len, params):
    """obs_seq: (B, T_obs, 3*CFG_INPUT_SIZE) float32 (PyTorch axis convention).

    params = (W_ih^T (80,128), W_hh^T (32,128), b_ih+b_hh (1,128),
              W0^T (80,64), b0 (1,64), W1^T (64,128), b1 (1,128),
              W2^T (128,16), b2 (1,16))   [PyTorch i,f,g,o gate order]
    Returns (obs_outputs (B, T_obs-1, 48), outputs (B, seq_len, 48)).
    """
    bs, t_obs, feat = obs_seq.shape
    assert feat == MODEL_INPUT_SIZE
    assert sum(int(l) for l in lengths) == bs
    assert t_obs >= 1 and seq_len >= 1

    # Pad batch to a full sublane tile (multiple of 8); padded rows form
    # singleton pooling groups so they never interact with real rows.
    bs_pad = max(8, ((bs + 7) // 8) * 8)
    pad = bs_pad - bs
    group_ids = []
    for g, length in enumerate(lengths):
        group_ids += [g] * int(length)
    group_ids += [len(lengths) + k for k in range(pad)]
    gid = jnp.asarray(group_ids, jnp.int32)
    mask = (gid[:, None] == gid[None, :]).astype(jnp.float32)   # (bs_pad, bs_pad)

    # time-major then flatten (T, B, F) -> (T*B, F): batch on sublanes,
    # features on lanes; no reshapes needed inside the kernel.
    obs_tm = jnp.transpose(obs_seq, (1, 0, 2)).astype(jnp.float32)
    if pad:
        obs_tm = jnp.pad(obs_tm, ((0, 0), (0, pad), (0, 0)))
    obs_flat = obs_tm.reshape(t_obs * bs_pad, MODEL_INPUT_SIZE)

    wih, whh, b, w0, b0, w1, b1, w2, b2 = params
    # trace-time gate permutation + bf16 weight casts + pre-splits
    wih_p = _permute_gate_cols(wih)
    whh_p = _permute_gate_cols(whh)
    b_p = _permute_gate_cols(b)

    bf = jnp.bfloat16
    wx = wih_p[:MODEL_INPUT_SIZE].astype(bf)     # (48,128) -> input rows
    wp = wih_p[MODEL_INPUT_SIZE:].astype(bf)     # (32,128) -> pooled rows
    whh_b = whh_p.astype(bf)                     # (32,128)
    w0h = w0[:HIDDEN_SIZE].astype(bf)            # (32,64)  -> h rows
    w0x = w0[HIDDEN_SIZE:].astype(bf)            # (48,64)  -> input rows
    w1_b = w1.astype(bf)
    w2_b = w2.astype(bf)

    t_total = t_obs + seq_len - 1
    kernel = functools.partial(_dyn_kernel, t_obs=int(t_obs),
                               seq_len=int(seq_len), bs=int(bs_pad))
    vmem = pl.BlockSpec(memory_space=pltpu.MemorySpace.VMEM)
    args = (mask, obs_flat, wx, wp, whh_b, b_p, w0h, w0x, b0, w1_b, b1, w2_b, b2)

    traj_flat = pl.pallas_call(
        kernel,
        out_shape=jax.ShapeDtypeStruct((t_total * bs_pad, MODEL_INPUT_SIZE),
                                       jnp.float32),
        in_specs=[vmem] * len(args),
        out_specs=vmem,
        scratch_shapes=[pltpu.VMEM((t_obs * bs_pad, HIDDEN_SIZE), jnp.float32)],
    )(*args)

    traj = traj_flat.reshape(t_total, bs_pad, MODEL_INPUT_SIZE)
    traj = jnp.transpose(traj, (1, 0, 2))[:bs]           # (B, T_total, 48)
    obs_outputs = traj[:, :t_obs - 1]
    outputs = traj[:, t_obs - 1:]
    return obs_outputs, outputs


def init_params(key):
    """Deterministic synthetic weights matching the module's layer shapes
    (LSTM weights in PyTorch i,f,g,o gate order)."""
    ks = jax.random.split(key, 9)
    s = 0.1
    H = HIDDEN_SIZE
    return (
        s * jax.random.normal(ks[0], (LSTM_IN, 4 * H), jnp.float32),   # W_ih^T
        s * jax.random.normal(ks[1], (H, 4 * H), jnp.float32),         # W_hh^T
        s * jax.random.normal(ks[2], (1, 4 * H), jnp.float32),         # b_ih+b_hh
        s * jax.random.normal(ks[3], (MLP_IN, MLP_H0), jnp.float32),   # MLP W0^T
        s * jax.random.normal(ks[4], (1, MLP_H0), jnp.float32),
        s * jax.random.normal(ks[5], (MLP_H0, MLP_H1), jnp.float32),   # MLP W1^T
        s * jax.random.normal(ks[6], (1, MLP_H1), jnp.float32),
        s * jax.random.normal(ks[7], (MLP_H1, CFG_INPUT_SIZE), jnp.float32),  # W2^T
        s * jax.random.normal(ks[8], (1, CFG_INPUT_SIZE), jnp.float32),
    )


if __name__ == "__main__":
    key = jax.random.PRNGKey(0)
    k_obs, k_par = jax.random.split(key)

    bs = 6
    T_obs = 3
    seq_len = 4
    lengths = [2, 4]   # Pooler groups (static python list, as in the module)

    obs_seq = jax.random.normal(k_obs, (bs, T_obs, MODEL_INPUT_SIZE), jnp.float32)
    params = init_params(k_par)

    obs_outputs, outputs = dynamical_model_forward(obs_seq, lengths, seq_len, params)
    jax.block_until_ready((obs_outputs, outputs))

    assert obs_outputs.shape == (bs, T_obs - 1, MODEL_INPUT_SIZE)
    assert outputs.shape == (bs, seq_len, MODEL_INPUT_SIZE)
    assert bool(jnp.all(jnp.isfinite(obs_outputs))) and bool(jnp.all(jnp.isfinite(outputs)))
    print("KERNEL_OK")
</pallas_src>

<mosaic_0001>
module attributes {stable_mosaic.version = 11 : i64} {
  func.func @_dyn_kernel(%arg0: memref<8x8xf32, #tpu.memory_space<vmem>>, %arg1: memref<24x48xf32, #tpu.memory_space<vmem>>, %arg2: memref<48x128xbf16, #tpu.memory_space<vmem>>, %arg3: memref<32x128xbf16, #tpu.memory_space<vmem>>, %arg4: memref<32x128xbf16, #tpu.memory_space<vmem>>, %arg5: memref<1x128xf32, #tpu.memory_space<vmem>>, %arg6: memref<32x64xbf16, #tpu.memory_space<vmem>>, %arg7: memref<48x64xbf16, #tpu.memory_space<vmem>>, %arg8: memref<1x64xf32, #tpu.memory_space<vmem>>, %arg9: memref<64x128xbf16, #tpu.memory_space<vmem>>, %arg10: memref<1x128xf32, #tpu.memory_space<vmem>>, %arg11: memref<128x16xbf16, #tpu.memory_space<vmem>>, %arg12: memref<1x16xf32, #tpu.memory_space<vmem>>, %arg13: memref<48x48xf32, #tpu.memory_space<vmem>>, %arg14: memref<24x32xf32, #tpu.memory_space<vmem>>) attributes {dimension_semantics = [], scalar_prefetch = 0 : i64, scratch_operands = 1 : i64, tpu.core_type = #tpu.core_type<tc>} {
    %c0 = arith.constant 0 : index
    %c0_0 = arith.constant 0 : index
    %0 = vector.load %arg2[%c0, %c0_0] : memref<48x128xbf16, #tpu.memory_space<vmem>>, vector<48x128xbf16>
    %c0_1 = arith.constant 0 : index
    %c0_2 = arith.constant 0 : index
    %1 = vector.load %arg3[%c0_1, %c0_2] : memref<32x128xbf16, #tpu.memory_space<vmem>>, vector<32x128xbf16>
    %c0_3 = arith.constant 0 : index
    %c0_4 = arith.constant 0 : index
    %2 = vector.load %arg4[%c0_3, %c0_4] : memref<32x128xbf16, #tpu.memory_space<vmem>>, vector<32x128xbf16>
    %c0_5 = arith.constant 0 : index
    %c0_6 = arith.constant 0 : index
    %3 = vector.load %arg6[%c0_5, %c0_6] : memref<32x64xbf16, #tpu.memory_space<vmem>>, vector<32x64xbf16>
    %c0_7 = arith.constant 0 : index
    %c0_8 = arith.constant 0 : index
    %4 = vector.load %arg7[%c0_7, %c0_8] : memref<48x64xbf16, #tpu.memory_space<vmem>>, vector<48x64xbf16>
    %c0_9 = arith.constant 0 : index
    %c0_10 = arith.constant 0 : index
    %5 = vector.load %arg9[%c0_9, %c0_10] : memref<64x128xbf16, #tpu.memory_space<vmem>>, vector<64x128xbf16>
    %c0_11 = arith.constant 0 : index
    %c0_12 = arith.constant 0 : index
    %6 = vector.load %arg11[%c0_11, %c0_12] : memref<128x16xbf16, #tpu.memory_space<vmem>>, vector<128x16xbf16>
    %c0_13 = arith.constant 0 : index
    %c0_14 = arith.constant 0 : index
    %7 = vector.load %arg5[%c0_13, %c0_14] : memref<1x128xf32, #tpu.memory_space<vmem>>, vector<1x128xf32>
    %8 = vector.shape_cast %7 : vector<1x128xf32> to vector<1x128xf32>
    %9 = vector.broadcast %8 : vector<1x128xf32> to vector<8x128xf32>
    %c0_15 = arith.constant 0 : index
    %c0_16 = arith.constant 0 : index
    %10 = vector.load %arg8[%c0_15, %c0_16] : memref<1x64xf32, #tpu.memory_space<vmem>>, vector<1x64xf32>
    %11 = vector.shape_cast %10 : vector<1x64xf32> to vector<1x64xf32>
    %12 = vector.broadcast %11 : vector<1x64xf32> to vector<8x64xf32>
    %c0_17 = arith.constant 0 : index
    %c0_18 = arith.constant 0 : index
    %13 = vector.load %arg10[%c0_17, %c0_18] : memref<1x128xf32, #tpu.memory_space<vmem>>, vector<1x128xf32>
    %14 = vector.shape_cast %13 : vector<1x128xf32> to vector<1x128xf32>
    %15 = vector.broadcast %14 : vector<1x128xf32> to vector<8x128xf32>
    %c0_19 = arith.constant 0 : index
    %c0_20 = arith.constant 0 : index
    %16 = vector.load %arg12[%c0_19, %c0_20] : memref<1x16xf32, #tpu.memory_space<vmem>>, vector<1x16xf32>
    %17 = vector.shape_cast %16 : vector<1x16xf32> to vector<1x16xf32>
    %18 = vector.broadcast %17 : vector<1x16xf32> to vector<8x16xf32>
    %c0_21 = arith.constant 0 : index
    %c0_22 = arith.constant 0 : index
    %19 = vector.load %arg0[%c0_21, %c0_22] : memref<8x8xf32, #tpu.memory_space<vmem>>, vector<8x8xf32>
    %cst = arith.constant 1.000000e+00 : f32
    %20 = vector.broadcast %cst : f32 to vector<8x8xf32>
    %21 = arith.subf %19, %20 : vector<8x8xf32>
    %cst_23 = arith.constant 1.000000e+30 : f32
    %22 = vector.broadcast %cst_23 : f32 to vector<8x8xf32>
    %23 = arith.mulf %21, %22 : vector<8x8xf32>
    %24 = vector.extract_strided_slice %0 {offsets = [0, 0], sizes = [16, 128], strides = [1, 1]} : vector<48x128xbf16> to vector<16x128xbf16>
    %25 = vector.extract_strided_slice %0 {offsets = [16, 0], sizes = [16, 128], strides = [1, 1]} : vector<48x128xbf16> to vector<16x128xbf16>
    %26 = vector.extract_strided_slice %0 {offsets = [32, 0], sizes = [16, 128], strides = [1, 1]} : vector<48x128xbf16> to vector<16x128xbf16>
    %27 = vector.extract_strided_slice %4 {offsets = [0, 0], sizes = [16, 64], strides = [1, 1]} : vector<48x64xbf16> to vector<16x64xbf16>
    %28 = vector.extract_strided_slice %4 {offsets = [16, 0], sizes = [16, 64], strides = [1, 1]} : vector<48x64xbf16> to vector<16x64xbf16>
    %29 = vector.extract_strided_slice %4 {offsets = [32, 0], sizes = [16, 64], strides = [1, 1]} : vector<48x64xbf16> to vector<16x64xbf16>
    %cst_24 = arith.constant 0.000000e+00 : f32
    %30 = vector.broadcast %cst_24 : f32 to vector<8x32xf32>
    %cst_25 = arith.constant 0.000000e+00 : f32
    %31 = vector.broadcast %cst_25 : f32 to vector<8x32xf32>
    %c0_i32 = arith.constant 0 : i32
    %c8_i32 = arith.constant 8 : i32
    %32 = arith.muli %c0_i32, %c8_i32 : i32
    %33 = tpu.assume_multiple %32, 8 : i32
    %34 = arith.index_cast %33 : i32 to index
    %c0_26 = arith.constant 0 : index
    %35 = vector.load %arg1[%34, %c0_26] : memref<24x48xf32, #tpu.memory_space<vmem>>, vector<8x48xf32>
    %36 = arith.truncf %35 : vector<8x48xf32> to vector<8x48xbf16>
    %cst_27 = arith.constant dense<0.000000e+00> : vector<8x128xf32>
    %37 = tpu.matmul %36, %0, %cst_27 {dimension_numbers = #tpu.dot_dimension_numbers<[1], [0], [0], [1], [0, 0, 1, 1], [], []>} : vector<8x48xbf16>, vector<48x128xbf16>, vector<8x128xf32> -> vector<8x128xf32>
    %38 = vector.shape_cast %30 : vector<8x32xf32> to vector<1x8x32xf32>
    %39 = vector.shape_cast %23 : vector<8x8xf32> to vector<8x8x1xf32>
    %40 = vector.broadcast %38 : vector<1x8x32xf32> to vector<8x8x32xf32>
    %41 = vector.broadcast %39 : vector<8x8x1xf32> to vector<8x8x32xf32>
    %42 = arith.addf %40, %41 : vector<8x8x32xf32>
    %cst_28 = arith.constant dense<0xFF800000> : vector<8x32xf32>
    %43 = vector.multi_reduction <maximumf>, %42, %cst_28 [1] : vector<8x8x32xf32> to vector<8x32xf32>
    %44 = arith.truncf %43 : vector<8x32xf32> to vector<8x32xbf16>
    %cst_29 = arith.constant dense<0.000000e+00> : vector<8x128xf32>
    %45 = tpu.matmul %44, %1, %cst_29 {dimension_numbers = #tpu.dot_dimension_numbers<[1], [0], [0], [1], [0, 0, 1, 1], [], []>} : vector<8x32xbf16>, vector<32x128xbf16>, vector<8x128xf32> -> vector<8x128xf32>
    %46 = arith.addf %37, %45 : vector<8x128xf32>
    %47 = arith.truncf %30 : vector<8x32xf32> to vector<8x32xbf16>
    %cst_30 = arith.constant dense<0.000000e+00> : vector<8x128xf32>
    %48 = tpu.matmul %47, %2, %cst_30 {dimension_numbers = #tpu.dot_dimension_numbers<[1], [0], [0], [1], [0, 0, 1, 1], [], []>} : vector<8x32xbf16>, vector<32x128xbf16>, vector<8x128xf32> -> vector<8x128xf32>
    %49 = arith.addf %46, %48 : vector<8x128xf32>
    %50 = arith.addf %49, %9 : vector<8x128xf32>
    %51 = vector.extract_strided_slice %50 {offsets = [0, 0], sizes = [8, 96], strides = [1, 1]} : vector<8x128xf32> to vector<8x96xf32>
    %52 = arith.negf %51 : vector<8x96xf32>
    %53 = math.exp %52 : vector<8x96xf32>
    %cst_31 = arith.constant 1.000000e+00 : f32
    %54 = vector.broadcast %cst_31 : f32 to vector<8x96xf32>
    %55 = arith.addf %54, %53 : vector<8x96xf32>
    %56 = arith.divf %54, %55 : vector<8x96xf32>
    %57 = vector.extract_strided_slice %50 {offsets = [0, 96], sizes = [8, 32], strides = [1, 1]} : vector<8x128xf32> to vector<8x32xf32>
    %58 = math.tanh %57 : vector<8x32xf32>
    %59 = vector.extract_strided_slice %56 {offsets = [0, 0], sizes = [8, 32], strides = [1, 1]} : vector<8x96xf32> to vector<8x32xf32>
    %60 = vector.extract_strided_slice %56 {offsets = [0, 32], sizes = [8, 32], strides = [1, 1]} : vector<8x96xf32> to vector<8x32xf32>
    %61 = vector.extract_strided_slice %56 {offsets = [0, 64], sizes = [8, 32], strides = [1, 1]} : vector<8x96xf32> to vector<8x32xf32>
    %62 = arith.mulf %60, %31 : vector<8x32xf32>
    %63 = arith.mulf %59, %58 : vector<8x32xf32>
    %64 = arith.addf %62, %63 : vector<8x32xf32>
    %65 = math.tanh %64 : vector<8x32xf32>
    %66 = arith.mulf %61, %65 : vector<8x32xf32>
    %67 = arith.index_cast %33 : i32 to index
    %c0_32 = arith.constant 0 : index
    %68 = vector.load %arg14[%67, %c0_32] : memref<24x32xf32, #tpu.memory_space<vmem>>, vector<8x32xf32>
    tpu.vector_store %arg14[%67, %c0_32], %66 {strides = array<i32>} : memref<24x32xf32, #tpu.memory_space<vmem>>, vector<8x32xf32>,
    %c1_i32 = arith.constant 1 : i32
    %c8_i32_33 = arith.constant 8 : i32
    %69 = arith.muli %c1_i32, %c8_i32_33 : i32
    %70 = tpu.assume_multiple %69, 8 : i32
    %71 = arith.index_cast %70 : i32 to index
    %c0_34 = arith.constant 0 : index
    %72 = vector.load %arg1[%71, %c0_34] : memref<24x48xf32, #tpu.memory_space<vmem>>, vector<8x48xf32>
    %73 = arith.truncf %72 : vector<8x48xf32> to vector<8x48xbf16>
    %cst_35 = arith.constant dense<0.000000e+00> : vector<8x128xf32>
    %74 = tpu.matmul %73, %0, %cst_35 {dimension_numbers = #tpu.dot_dimension_numbers<[1], [0], [0], [1], [0, 0, 1, 1], [], []>} : vector<8x48xbf16>, vector<48x128xbf16>, vector<8x128xf32> -> vector<8x128xf32>
    %75 = vector.shape_cast %66 : vector<8x32xf32> to vector<1x8x32xf32>
    %76 = vector.shape_cast %23 : vector<8x8xf32> to vector<8x8x1xf32>
    %77 = vector.broadcast %75 : vector<1x8x32xf32> to vector<8x8x32xf32>
    %78 = vector.broadcast %76 : vector<8x8x1xf32> to vector<8x8x32xf32>
    %79 = arith.addf %77, %78 : vector<8x8x32xf32>
    %cst_36 = arith.constant dense<0xFF800000> : vector<8x32xf32>
    %80 = vector.multi_reduction <maximumf>, %79, %cst_36 [1] : vector<8x8x32xf32> to vector<8x32xf32>
    %81 = arith.truncf %80 : vector<8x32xf32> to vector<8x32xbf16>
    %cst_37 = arith.constant dense<0.000000e+00> : vector<8x128xf32>
    %82 = tpu.matmul %81, %1, %cst_37 {dimension_numbers = #tpu.dot_dimension_numbers<[1], [0], [0], [1], [0, 0, 1, 1], [], []>} : vector<8x32xbf16>, vector<32x128xbf16>, vector<8x128xf32> -> vector<8x128xf32>
    %83 = arith.addf %74, %82 : vector<8x128xf32>
    %84 = arith.truncf %66 : vector<8x32xf32> to vector<8x32xbf16>
    %cst_38 = arith.constant dense<0.000000e+00> : vector<8x128xf32>
    %85 = tpu.matmul %84, %2, %cst_38 {dimension_numbers = #tpu.dot_dimension_numbers<[1], [0], [0], [1], [0, 0, 1, 1], [], []>} : vector<8x32xbf16>, vector<32x128xbf16>, vector<8x128xf32> -> vector<8x128xf32>
    %86 = arith.addf %83, %85 : vector<8x128xf32>
    %87 = arith.addf %86, %9 : vector<8x128xf32>
    %88 = vector.extract_strided_slice %87 {offsets = [0, 0], sizes = [8, 96], strides = [1, 1]} : vector<8x128xf32> to vector<8x96xf32>
    %89 = arith.negf %88 : vector<8x96xf32>
    %90 = math.exp %89 : vector<8x96xf32>
    %cst_39 = arith.constant 1.000000e+00 : f32
    %91 = vector.broadcast %cst_39 : f32 to vector<8x96xf32>
    %92 = arith.addf %91, %90 : vector<8x96xf32>
    %93 = arith.divf %91, %92 : vector<8x96xf32>
    %94 = vector.extract_strided_slice %87 {offsets = [0, 96], sizes = [8, 32], strides = [1, 1]} : vector<8x128xf32> to vector<8x32xf32>
    %95 = math.tanh %94 : vector<8x32xf32>
    %96 = vector.extract_strided_slice %93 {offsets = [0, 0], sizes = [8, 32], strides = [1, 1]} : vector<8x96xf32> to vector<8x32xf32>
    %97 = vector.extract_strided_slice %93 {offsets = [0, 32], sizes = [8, 32], strides = [1, 1]} : vector<8x96xf32> to vector<8x32xf32>
    %98 = vector.extract_strided_slice %93 {offsets = [0, 64], sizes = [8, 32], strides = [1, 1]} : vector<8x96xf32> to vector<8x32xf32>
    %99 = arith.mulf %97, %64 : vector<8x32xf32>
    %100 = arith.mulf %96, %95 : vector<8x32xf32>
    %101 = arith.addf %99, %100 : vector<8x32xf32>
    %102 = math.tanh %101 : vector<8x32xf32>
    %103 = arith.mulf %98, %102 : vector<8x32xf32>
    %104 = arith.index_cast %70 : i32 to index
    %c0_40 = arith.constant 0 : index
    %105 = vector.load %arg14[%104, %c0_40] : memref<24x32xf32, #tpu.memory_space<vmem>>, vector<8x32xf32>
    tpu.vector_store %arg14[%104, %c0_40], %103 {strides = array<i32>} : memref<24x32xf32, #tpu.memory_space<vmem>>, vector<8x32xf32>,
    %c2_i32 = arith.constant 2 : i32
    %c8_i32_41 = arith.constant 8 : i32
    %106 = arith.muli %c2_i32, %c8_i32_41 : i32
    %107 = tpu.assume_multiple %106, 8 : i32
    %108 = arith.index_cast %107 : i32 to index
    %c0_42 = arith.constant 0 : index
    %109 = vector.load %arg1[%108, %c0_42] : memref<24x48xf32, #tpu.memory_space<vmem>>, vector<8x48xf32>
    %110 = arith.truncf %109 : vector<8x48xf32> to vector<8x48xbf16>
    %cst_43 = arith.constant dense<0.000000e+00> : vector<8x128xf32>
    %111 = tpu.matmul %110, %0, %cst_43 {dimension_numbers = #tpu.dot_dimension_numbers<[1], [0], [0], [1], [0, 0, 1, 1], [], []>} : vector<8x48xbf16>, vector<48x128xbf16>, vector<8x128xf32> -> vector<8x128xf32>
    %112 = vector.shape_cast %103 : vector<8x32xf32> to vector<1x8x32xf32>
    %113 = vector.shape_cast %23 : vector<8x8xf32> to vector<8x8x1xf32>
    %114 = vector.broadcast %112 : vector<1x8x32xf32> to vector<8x8x32xf32>
    %115 = vector.broadcast %113 : vector<8x8x1xf32> to vector<8x8x32xf32>
    %116 = arith.addf %114, %115 : vector<8x8x32xf32>
    %cst_44 = arith.constant dense<0xFF800000> : vector<8x32xf32>
    %117 = vector.multi_reduction <maximumf>, %116, %cst_44 [1] : vector<8x8x32xf32> to vector<8x32xf32>
    %118 = arith.truncf %117 : vector<8x32xf32> to vector<8x32xbf16>
    %cst_45 = arith.constant dense<0.000000e+00> : vector<8x128xf32>
    %119 = tpu.matmul %118, %1, %cst_45 {dimension_numbers = #tpu.dot_dimension_numbers<[1], [0], [0], [1], [0, 0, 1, 1], [], []>} : vector<8x32xbf16>, vector<32x128xbf16>, vector<8x128xf32> -> vector<8x128xf32>
    %120 = arith.addf %111, %119 : vector<8x128xf32>
    %121 = arith.truncf %103 : vector<8x32xf32> to vector<8x32xbf16>
    %cst_46 = arith.constant dense<0.000000e+00> : vector<8x128xf32>
    %122 = tpu.matmul %121, %2, %cst_46 {dimension_numbers = #tpu.dot_dimension_numbers<[1], [0], [0], [1], [0, 0, 1, 1], [], []>} : vector<8x32xbf16>, vector<32x128xbf16>, vector<8x128xf32> -> vector<8x128xf32>
    %123 = arith.addf %120, %122 : vector<8x128xf32>
    %124 = arith.addf %123, %9 : vector<8x128xf32>
    %125 = vector.extract_strided_slice %124 {offsets = [0, 0], sizes = [8, 96], strides = [1, 1]} : vector<8x128xf32> to vector<8x96xf32>
    %126 = arith.negf %125 : vector<8x96xf32>
    %127 = math.exp %126 : vector<8x96xf32>
    %cst_47 = arith.constant 1.000000e+00 : f32
    %128 = vector.broadcast %cst_47 : f32 to vector<8x96xf32>
    %129 = arith.addf %128, %127 : vector<8x96xf32>
    %130 = arith.divf %128, %129 : vector<8x96xf32>
    %131 = vector.extract_strided_slice %124 {offsets = [0, 96], sizes = [8, 32], strides = [1, 1]} : vector<8x128xf32> to vector<8x32xf32>
    %132 = math.tanh %131 : vector<8x32xf32>
    %133 = vector.extract_strided_slice %130 {offsets = [0, 0], sizes = [8, 32], strides = [1, 1]} : vector<8x96xf32> to vector<8x32xf32>
    %134 = vector.extract_strided_slice %130 {offsets = [0, 32], sizes = [8, 32], strides = [1, 1]} : vector<8x96xf32> to vector<8x32xf32>
    %135 = vector.extract_strided_slice %130 {offsets = [0, 64], sizes = [8, 32], strides = [1, 1]} : vector<8x96xf32> to vector<8x32xf32>
    %136 = arith.mulf %134, %101 : vector<8x32xf32>
    %137 = arith.mulf %133, %132 : vector<8x32xf32>
    %138 = arith.addf %136, %137 : vector<8x32xf32>
    %139 = math.tanh %138 : vector<8x32xf32>
    %140 = arith.mulf %135, %139 : vector<8x32xf32>
    %141 = arith.index_cast %107 : i32 to index
    %c0_48 = arith.constant 0 : index
    %142 = vector.load %arg14[%141, %c0_48] : memref<24x32xf32, #tpu.memory_space<vmem>>, vector<8x32xf32>
    tpu.vector_store %arg14[%141, %c0_48], %140 {strides = array<i32>} : memref<24x32xf32, #tpu.memory_space<vmem>>, vector<8x32xf32>,
    %c3_i32 = arith.constant 3 : i32
    %c0_49 = arith.constant 0 : index
    %c0_50 = arith.constant 0 : index
    %143 = vector.load %arg14[%c0_49, %c0_50] : memref<24x32xf32, #tpu.memory_space<vmem>>, vector<24x32xf32>
    %c0_51 = arith.constant 0 : index
    %c0_52 = arith.constant 0 : index
    %144 = vector.load %arg1[%c0_51, %c0_52] : memref<24x48xf32, #tpu.memory_space<vmem>>, vector<24x48xf32>
    %145 = arith.truncf %143 : vector<24x32xf32> to vector<24x32xbf16>
    %cst_53 = arith.constant dense<0.000000e+00> : vector<24x64xf32>
    %146 = tpu.matmul %145, %3, %cst_53 {dimension_numbers = #tpu.dot_dimension_numbers<[1], [0], [0], [1], [0, 0, 1, 1], [], []>} : vector<24x32xbf16>, vector<32x64xbf16>, vector<24x64xf32> -> vector<24x64xf32>
    %147 = arith.truncf %144 : vector<24x48xf32> to vector<24x48xbf16>
    %cst_54 = arith.constant dense<0.000000e+00> : vector<24x64xf32>
    %148 = tpu.matmul %147, %4, %cst_54 {dimension_numbers = #tpu.dot_dimension_numbers<[1], [0], [0], [1], [0, 0, 1, 1], [], []>} : vector<24x48xbf16>, vector<48x64xbf16>, vector<24x64xf32> -> vector<24x64xf32>
    %149 = arith.addf %146, %148 : vector<24x64xf32>
    %c0_55 = arith.constant 0 : index
    %c0_56 = arith.constant 0 : index
    %150 = vector.load %arg8[%c0_55, %c0_56] : memref<1x64xf32, #tpu.memory_space<vmem>>, vector<1x64xf32>
    %151 = vector.broadcast %150 : vector<1x64xf32> to vector<24x64xf32>
    %152 = arith.addf %149, %151 : vector<24x64xf32>
    %cst_57 = arith.constant 0.000000e+00 : f32
    %153 = vector.broadcast %cst_57 : f32 to vector<24x64xf32>
    %154 = arith.cmpf ogt, %152, %153 : vector<24x64xf32>
    %cst_58 = arith.constant 0.00999999977 : f32
    %155 = vector.broadcast %cst_58 : f32 to vector<24x64xf32>
    %156 = arith.mulf %155, %152 : vector<24x64xf32>
    %157 = arith.select %154, %152, %156 : vector<24x64xi1>, vector<24x64xf32>
    %158 = arith.truncf %157 : vector<24x64xf32> to vector<24x64xbf16>
    %cst_59 = arith.constant dense<0.000000e+00> : vector<24x128xf32>
    %159 = tpu.matmul %158, %5, %cst_59 {dimension_numbers = #tpu.dot_dimension_numbers<[1], [0], [0], [1], [0, 0, 1, 1], [], []>} : vector<24x64xbf16>, vector<64x128xbf16>, vector<24x128xf32> -> vector<24x128xf32>
    %c0_60 = arith.constant 0 : index
    %c0_61 = arith.constant 0 : index
    %160 = vector.load %arg10[%c0_60, %c0_61] : memref<1x128xf32, #tpu.memory_space<vmem>>, vector<1x128xf32>
    %161 = vector.broadcast %160 : vector<1x128xf32> to vector<24x128xf32>
    %162 = arith.addf %159, %161 : vector<24x128xf32>
    %cst_62 = arith.constant 0.000000e+00 : f32
    %163 = vector.broadcast %cst_62 : f32 to vector<24x128xf32>
    %164 = arith.cmpf ogt, %162, %163 : vector<24x128xf32>
    %cst_63 = arith.constant 0.00999999977 : f32
    %165 = vector.broadcast %cst_63 : f32 to vector<24x128xf32>
    %166 = arith.mulf %165, %162 : vector<24x128xf32>
    %167 = arith.select %164, %162, %166 : vector<24x128xi1>, vector<24x128xf32>
    %168 = arith.truncf %167 : vector<24x128xf32> to vector<24x128xbf16>
    %cst_64 = arith.constant dense<0.000000e+00> : vector<24x16xf32>
    %169 = tpu.matmul %168, %6, %cst_64 {dimension_numbers = #tpu.dot_dimension_numbers<[1], [0], [0], [1], [0, 0, 1, 1], [], []>} : vector<24x128xbf16>, vector<128x16xbf16>, vector<24x16xf32> -> vector<24x16xf32>
    %c0_65 = arith.constant 0 : index
    %c0_66 = arith.constant 0 : index
    %170 = vector.load %arg12[%c0_65, %c0_66] : memref<1x16xf32, #tpu.memory_space<vmem>>, vector<1x16xf32>
    %171 = vector.broadcast %170 : vector<1x16xf32> to vector<24x16xf32>
    %172 = arith.addf %169, %171 : vector<24x16xf32>
    %173 = arith.negf %172 : vector<24x16xf32>
    %174 = math.exp %173 : vector<24x16xf32>
    %cst_67 = arith.constant 1.000000e+00 : f32
    %175 = vector.broadcast %cst_67 : f32 to vector<24x16xf32>
    %176 = arith.addf %175, %174 : vector<24x16xf32>
    %177 = arith.divf %175, %176 : vector<24x16xf32>
    %178 = vector.extract_strided_slice %144 {offsets = [0, 0], sizes = [24, 16], strides = [1, 1]} : vector<24x48xf32> to vector<24x16xf32>
    %179 = arith.subf %177, %178 : vector<24x16xf32>
    %180 = vector.extract_strided_slice %144 {offsets = [0, 16], sizes = [24, 16], strides = [1, 1]} : vector<24x48xf32> to vector<24x16xf32>
    %181 = arith.subf %179, %180 : vector<24x16xf32>
    %182 = tpu.concatenate %177, %179, %181 in 1 : vector<24x16xf32>, vector<24x16xf32>, vector<24x16xf32> -> vector<24x48xf32>
    %c0_68 = arith.constant 0 : index
    %c0_69 = arith.constant 0 : index
    %183 = vector.load %arg13[%c0_68, %c0_69] : memref<48x48xf32, #tpu.memory_space<vmem>>, vector<24x48xf32>
    tpu.vector_store %arg13[%c0_68, %c0_69], %182 {strides = array<i32>} : memref<48x48xf32, #tpu.memory_space<vmem>>, vector<24x48xf32>,
    %184 = vector.extract_strided_slice %177 {offsets = [16, 0], sizes = [8, 16], strides = [1, 1]} : vector<24x16xf32> to vector<8x16xf32>
    %185 = vector.extract_strided_slice %179 {offsets = [16, 0], sizes = [8, 16], strides = [1, 1]} : vector<24x16xf32> to vector<8x16xf32>
    %186 = vector.extract_strided_slice %181 {offsets = [16, 0], sizes = [8, 16], strides = [1, 1]} : vector<24x16xf32> to vector<8x16xf32>
    %c0_i32_70 = arith.constant 0 : i32
    %187 = arith.truncf %184 : vector<8x16xf32> to vector<8x16xbf16>
    %cst_71 = arith.constant dense<0.000000e+00> : vector<8x128xf32>
    %188 = tpu.matmul %187, %24, %cst_71 {dimension_numbers = #tpu.dot_dimension_numbers<[1], [0], [0], [1], [0, 0, 1, 1], [], []>} : vector<8x16xbf16>, vector<16x128xbf16>, vector<8x128xf32> -> vector<8x128xf32>
    %189 = arith.truncf %185 : vector<8x16xf32> to vector<8x16xbf16>
    %cst_72 = arith.constant dense<0.000000e+00> : vector<8x128xf32>
    %190 = tpu.matmul %189, %25, %cst_72 {dimension_numbers = #tpu.dot_dimension_numbers<[1], [0], [0], [1], [0, 0, 1, 1], [], []>} : vector<8x16xbf16>, vector<16x128xbf16>, vector<8x128xf32> -> vector<8x128xf32>
    %191 = arith.addf %188, %190 : vector<8x128xf32>
    %192 = arith.truncf %186 : vector<8x16xf32> to vector<8x16xbf16>
    %cst_73 = arith.constant dense<0.000000e+00> : vector<8x128xf32>
    %193 = tpu.matmul %192, %26, %cst_73 {dimension_numbers = #tpu.dot_dimension_numbers<[1], [0], [0], [1], [0, 0, 1, 1], [], []>} : vector<8x16xbf16>, vector<16x128xbf16>, vector<8x128xf32> -> vector<8x128xf32>
    %194 = arith.addf %191, %193 : vector<8x128xf32>
    %195 = vector.shape_cast %140 : vector<8x32xf32> to vector<1x8x32xf32>
    %196 = vector.shape_cast %23 : vector<8x8xf32> to vector<8x8x1xf32>
    %197 = vector.broadcast %195 : vector<1x8x32xf32> to vector<8x8x32xf32>
    %198 = vector.broadcast %196 : vector<8x8x1xf32> to vector<8x8x32xf32>
    %199 = arith.addf %197, %198 : vector<8x8x32xf32>
    %cst_74 = arith.constant dense<0xFF800000> : vector<8x32xf32>
    %200 = vector.multi_reduction <maximumf>, %199, %cst_74 [1] : vector<8x8x32xf32> to vector<8x32xf32>
    %201 = arith.truncf %200 : vector<8x32xf32> to vector<8x32xbf16>
    %cst_75 = arith.constant dense<0.000000e+00> : vector<8x128xf32>
    %202 = tpu.matmul %201, %1, %cst_75 {dimension_numbers = #tpu.dot_dimension_numbers<[1], [0], [0], [1], [0, 0, 1, 1], [], []>} : vector<8x32xbf16>, vector<32x128xbf16>, vector<8x128xf32> -> vector<8x128xf32>
    %203 = arith.addf %194, %202 : vector<8x128xf32>
    %204 = arith.truncf %140 : vector<8x32xf32> to vector<8x32xbf16>
    %cst_76 = arith.constant dense<0.000000e+00> : vector<8x128xf32>
    %205 = tpu.matmul %204, %2, %cst_76 {dimension_numbers = #tpu.dot_dimension_numbers<[1], [0], [0], [1], [0, 0, 1, 1], [], []>} : vector<8x32xbf16>, vector<32x128xbf16>, vector<8x128xf32> -> vector<8x128xf32>
    %206 = arith.addf %203, %205 : vector<8x128xf32>
    %207 = arith.addf %206, %9 : vector<8x128xf32>
    %208 = vector.extract_strided_slice %207 {offsets = [0, 0], sizes = [8, 96], strides = [1, 1]} : vector<8x128xf32> to vector<8x96xf32>
    %209 = arith.negf %208 : vector<8x96xf32>
    %210 = math.exp %209 : vector<8x96xf32>
    %cst_77 = arith.constant 1.000000e+00 : f32
    %211 = vector.broadcast %cst_77 : f32 to vector<8x96xf32>
    %212 = arith.addf %211, %210 : vector<8x96xf32>
    %213 = arith.divf %211, %212 : vector<8x96xf32>
    %214 = vector.extract_strided_slice %207 {offsets = [0, 96], sizes = [8, 32], strides = [1, 1]} : vector<8x128xf32> to vector<8x32xf32>
    %215 = math.tanh %214 : vector<8x32xf32>
    %216 = vector.extract_strided_slice %213 {offsets = [0, 0], sizes = [8, 32], strides = [1, 1]} : vector<8x96xf32> to vector<8x32xf32>
    %217 = vector.extract_strided_slice %213 {offsets = [0, 32], sizes = [8, 32], strides = [1, 1]} : vector<8x96xf32> to vector<8x32xf32>
    %218 = vector.extract_strided_slice %213 {offsets = [0, 64], sizes = [8, 32], strides = [1, 1]} : vector<8x96xf32> to vector<8x32xf32>
    %219 = arith.mulf %217, %138 : vector<8x32xf32>
    %220 = arith.mulf %216, %215 : vector<8x32xf32>
    %221 = arith.addf %219, %220 : vector<8x32xf32>
    %222 = math.tanh %221 : vector<8x32xf32>
    %223 = arith.mulf %218, %222 : vector<8x32xf32>
    %224 = arith.truncf %223 : vector<8x32xf32> to vector<8x32xbf16>
    %cst_78 = arith.constant dense<0.000000e+00> : vector<8x64xf32>
    %225 = tpu.matmul %224, %3, %cst_78 {dimension_numbers = #tpu.dot_dimension_numbers<[1], [0], [0], [1], [0, 0, 1, 1], [], []>} : vector<8x32xbf16>, vector<32x64xbf16>, vector<8x64xf32> -> vector<8x64xf32>
    %226 = arith.truncf %184 : vector<8x16xf32> to vector<8x16xbf16>
    %cst_79 = arith.constant dense<0.000000e+00> : vector<8x64xf32>
    %227 = tpu.matmul %226, %27, %cst_79 {dimension_numbers = #tpu.dot_dimension_numbers<[1], [0], [0], [1], [0, 0, 1, 1], [], []>} : vector<8x16xbf16>, vector<16x64xbf16>, vector<8x64xf32> -> vector<8x64xf32>
    %228 = arith.addf %225, %227 : vector<8x64xf32>
    %229 = arith.truncf %185 : vector<8x16xf32> to vector<8x16xbf16>
    %cst_80 = arith.constant dense<0.000000e+00> : vector<8x64xf32>
    %230 = tpu.matmul %229, %28, %cst_80 {dimension_numbers = #tpu.dot_dimension_numbers<[1], [0], [0], [1], [0, 0, 1, 1], [], []>} : vector<8x16xbf16>, vector<16x64xbf16>, vector<8x64xf32> -> vector<8x64xf32>
    %231 = arith.addf %228, %230 : vector<8x64xf32>
    %232 = arith.truncf %186 : vector<8x16xf32> to vector<8x16xbf16>
    %cst_81 = arith.constant dense<0.000000e+00> : vector<8x64xf32>
    %233 = tpu.matmul %232, %29, %cst_81 {dimension_numbers = #tpu.dot_dimension_numbers<[1], [0], [0], [1], [0, 0, 1, 1], [], []>} : vector<8x16xbf16>, vector<16x64xbf16>, vector<8x64xf32> -> vector<8x64xf32>
    %234 = arith.addf %231, %233 : vector<8x64xf32>
    %235 = arith.addf %234, %12 : vector<8x64xf32>
    %cst_82 = arith.constant 0.000000e+00 : f32
    %236 = vector.broadcast %cst_82 : f32 to vector<8x64xf32>
    %237 = arith.cmpf ogt, %235, %236 : vector<8x64xf32>
    %cst_83 = arith.constant 0.00999999977 : f32
    %238 = vector.broadcast %cst_83 : f32 to vector<8x64xf32>
    %239 = arith.mulf %238, %235 : vector<8x64xf32>
    %240 = arith.select %237, %235, %239 : vector<8x64xi1>, vector<8x64xf32>
    %241 = arith.truncf %240 : vector<8x64xf32> to vector<8x64xbf16>
    %cst_84 = arith.constant dense<0.000000e+00> : vector<8x128xf32>
    %242 = tpu.matmul %241, %5, %cst_84 {dimension_numbers = #tpu.dot_dimension_numbers<[1], [0], [0], [1], [0, 0, 1, 1], [], []>} : vector<8x64xbf16>, vector<64x128xbf16>, vector<8x128xf32> -> vector<8x128xf32>
    %243 = arith.addf %242, %15 : vector<8x128xf32>
    %cst_85 = arith.constant 0.000000e+00 : f32
    %244 = vector.broadcast %cst_85 : f32 to vector<8x128xf32>
    %245 = arith.cmpf ogt, %243, %244 : vector<8x128xf32>
    %cst_86 = arith.constant 0.00999999977 : f32
    %246 = vector.broadcast %cst_86 : f32 to vector<8x128xf32>
    %247 = arith.mulf %246, %243 : vector<8x128xf32>
    %248 = arith.select %245, %243, %247 : vector<8x128xi1>, vector<8x128xf32>
    %249 = arith.truncf %248 : vector<8x128xf32> to vector<8x128xbf16>
    %cst_87 = arith.constant dense<0.000000e+00> : vector<8x16xf32>
    %250 = tpu.matmul %249, %6, %cst_87 {dimension_numbers = #tpu.dot_dimension_numbers<[1], [0], [0], [1], [0, 0, 1, 1], [], []>} : vector<8x128xbf16>, vector<128x16xbf16>, vector<8x16xf32> -> vector<8x16xf32>
    %251 = arith.addf %250, %18 : vector<8x16xf32>
    %252 = arith.negf %251 : vector<8x16xf32>
    %253 = math.exp %252 : vector<8x16xf32>
    %cst_88 = arith.constant 1.000000e+00 : f32
    %254 = vector.broadcast %cst_88 : f32 to vector<8x16xf32>
    %255 = arith.addf %254, %253 : vector<8x16xf32>
    %256 = arith.divf %254, %255 : vector<8x16xf32>
    %257 = arith.subf %256, %184 : vector<8x16xf32>
    %258 = arith.subf %257, %185 : vector<8x16xf32>
    %c3_i32_89 = arith.constant 3 : i32
    %259 = arith.addi %c3_i32_89, %c0_i32_70 : i32
    %c8_i32_90 = arith.constant 8 : i32
    %260 = arith.muli %259, %c8_i32_90 : i32
    %261 = tpu.assume_multiple %260, 8 : i32
    %262 = tpu.concatenate %256, %257, %258 in 1 : vector<8x16xf32>, vector<8x16xf32>, vector<8x16xf32> -> vector<8x48xf32>
    %263 = arith.index_cast %261 : i32 to index
    %c0_91 = arith.constant 0 : index
    %264 = vector.load %arg13[%263, %c0_91] : memref<48x48xf32, #tpu.memory_space<vmem>>, vector<8x48xf32>
    tpu.vector_store %arg13[%263, %c0_91], %262 {strides = array<i32>} : memref<48x48xf32, #tpu.memory_space<vmem>>, vector<8x48xf32>,
    %c1_i32_92 = arith.constant 1 : i32
    %265 = arith.truncf %256 : vector<8x16xf32> to vector<8x16xbf16>
    %cst_93 = arith.constant dense<0.000000e+00> : vector<8x128xf32>
    %266 = tpu.matmul %265, %24, %cst_93 {dimension_numbers = #tpu.dot_dimension_numbers<[1], [0], [0], [1], [0, 0, 1, 1], [], []>} : vector<8x16xbf16>, vector<16x128xbf16>, vector<8x128xf32> -> vector<8x128xf32>
    %267 = arith.truncf %257 : vector<8x16xf32> to vector<8x16xbf16>
    %cst_94 = arith.constant dense<0.000000e+00> : vector<8x128xf32>
    %268 = tpu.matmul %267, %25, %cst_94 {dimension_numbers = #tpu.dot_dimension_numbers<[1], [0], [0], [1], [0, 0, 1, 1], [], []>} : vector<8x16xbf16>, vector<16x128xbf16>, vector<8x128xf32> -> vector<8x128xf32>
    %269 = arith.addf %266, %268 : vector<8x128xf32>
    %270 = arith.truncf %258 : vector<8x16xf32> to vector<8x16xbf16>
    %cst_95 = arith.constant dense<0.000000e+00> : vector<8x128xf32>
    %271 = tpu.matmul %270, %26, %cst_95 {dimension_numbers = #tpu.dot_dimension_numbers<[1], [0], [0], [1], [0, 0, 1, 1], [], []>} : vector<8x16xbf16>, vector<16x128xbf16>, vector<8x128xf32> -> vector<8x128xf32>
    %272 = arith.addf %269, %271 : vector<8x128xf32>
    %273 = vector.shape_cast %223 : vector<8x32xf32> to vector<1x8x32xf32>
    %274 = vector.shape_cast %23 : vector<8x8xf32> to vector<8x8x1xf32>
    %275 = vector.broadcast %273 : vector<1x8x32xf32> to vector<8x8x32xf32>
    %276 = vector.broadcast %274 : vector<8x8x1xf32> to vector<8x8x32xf32>
    %277 = arith.addf %275, %276 : vector<8x8x32xf32>
    %cst_96 = arith.constant dense<0xFF800000> : vector<8x32xf32>
    %278 = vector.multi_reduction <maximumf>, %277, %cst_96 [1] : vector<8x8x32xf32> to vector<8x32xf32>
    %279 = arith.truncf %278 : vector<8x32xf32> to vector<8x32xbf16>
    %cst_97 = arith.constant dense<0.000000e+00> : vector<8x128xf32>
    %280 = tpu.matmul %279, %1, %cst_97 {dimension_numbers = #tpu.dot_dimension_numbers<[1], [0], [0], [1], [0, 0, 1, 1], [], []>} : vector<8x32xbf16>, vector<32x128xbf16>, vector<8x128xf32> -> vector<8x128xf32>
    %281 = arith.addf %272, %280 : vector<8x128xf32>
    %282 = arith.truncf %223 : vector<8x32xf32> to vector<8x32xbf16>
    %cst_98 = arith.constant dense<0.000000e+00> : vector<8x128xf32>
    %283 = tpu.matmul %282, %2, %cst_98 {dimension_numbers = #tpu.dot_dimension_numbers<[1], [0], [0], [1], [0, 0, 1, 1], [], []>} : vector<8x32xbf16>, vector<32x128xbf16>, vector<8x128xf32> -> vector<8x128xf32>
    %284 = arith.addf %281, %283 : vector<8x128xf32>
    %285 = arith.addf %284, %9 : vector<8x128xf32>
    %286 = vector.extract_strided_slice %285 {offsets = [0, 0], sizes = [8, 96], strides = [1, 1]} : vector<8x128xf32> to vector<8x96xf32>
    %287 = arith.negf %286 : vector<8x96xf32>
    %288 = math.exp %287 : vector<8x96xf32>
    %cst_99 = arith.constant 1.000000e+00 : f32
    %289 = vector.broadcast %cst_99 : f32 to vector<8x96xf32>
    %290 = arith.addf %289, %288 : vector<8x96xf32>
    %291 = arith.divf %289, %290 : vector<8x96xf32>
    %292 = vector.extract_strided_slice %285 {offsets = [0, 96], sizes = [8, 32], strides = [1, 1]} : vector<8x128xf32> to vector<8x32xf32>
    %293 = math.tanh %292 : vector<8x32xf32>
    %294 = vector.extract_strided_slice %291 {offsets = [0, 0], sizes = [8, 32], strides = [1, 1]} : vector<8x96xf32> to vector<8x32xf32>
    %295 = vector.extract_strided_slice %291 {offsets = [0, 32], sizes = [8, 32], strides = [1, 1]} : vector<8x96xf32> to vector<8x32xf32>
    %296 = vector.extract_strided_slice %291 {offsets = [0, 64], sizes = [8, 32], strides = [1, 1]} : vector<8x96xf32> to vector<8x32xf32>
    %297 = arith.mulf %295, %221 : vector<8x32xf32>
    %298 = arith.mulf %294, %293 : vector<8x32xf32>
    %299 = arith.addf %297, %298 : vector<8x32xf32>
    %300 = math.tanh %299 : vector<8x32xf32>
    %301 = arith.mulf %296, %300 : vector<8x32xf32>
    %302 = arith.truncf %301 : vector<8x32xf32> to vector<8x32xbf16>
    %cst_100 = arith.constant dense<0.000000e+00> : vector<8x64xf32>
    %303 = tpu.matmul %302, %3, %cst_100 {dimension_numbers = #tpu.dot_dimension_numbers<[1], [0], [0], [1], [0, 0, 1, 1], [], []>} : vector<8x32xbf16>, vector<32x64xbf16>, vector<8x64xf32> -> vector<8x64xf32>
    %304 = arith.truncf %256 : vector<8x16xf32> to vector<8x16xbf16>
    %cst_101 = arith.constant dense<0.000000e+00> : vector<8x64xf32>
    %305 = tpu.matmul %304, %27, %cst_101 {dimension_numbers = #tpu.dot_dimension_numbers<[1], [0], [0], [1], [0, 0, 1, 1], [], []>} : vector<8x16xbf16>, vector<16x64xbf16>, vector<8x64xf32> -> vector<8x64xf32>
    %306 = arith.addf %303, %305 : vector<8x64xf32>
    %307 = arith.truncf %257 : vector<8x16xf32> to vector<8x16xbf16>
    %cst_102 = arith.constant dense<0.000000e+00> : vector<8x64xf32>
    %308 = tpu.matmul %307, %28, %cst_102 {dimension_numbers = #tpu.dot_dimension_numbers<[1], [0], [0], [1], [0, 0, 1, 1], [], []>} : vector<8x16xbf16>, vector<16x64xbf16>, vector<8x64xf32> -> vector<8x64xf32>
    %309 = arith.addf %306, %308 : vector<8x64xf32>
    %310 = arith.truncf %258 : vector<8x16xf32> to vector<8x16xbf16>
    %cst_103 = arith.constant dense<0.000000e+00> : vector<8x64xf32>
    %311 = tpu.matmul %310, %29, %cst_103 {dimension_numbers = #tpu.dot_dimension_numbers<[1], [0], [0], [1], [0, 0, 1, 1], [], []>} : vector<8x16xbf16>, vector<16x64xbf16>, vector<8x64xf32> -> vector<8x64xf32>
    %312 = arith.addf %309, %311 : vector<8x64xf32>
    %313 = arith.addf %312, %12 : vector<8x64xf32>
    %cst_104 = arith.constant 0.000000e+00 : f32
    %314 = vector.broadcast %cst_104 : f32 to vector<8x64xf32>
    %315 = arith.cmpf ogt, %313, %314 : vector<8x64xf32>
    %cst_105 = arith.constant 0.00999999977 : f32
    %316 = vector.broadcast %cst_105 : f32 to vector<8x64xf32>
    %317 = arith.mulf %316, %313 : vector<8x64xf32>
    %318 = arith.select %315, %313, %317 : vector<8x64xi1>, vector<8x64xf32>
    %319 = arith.truncf %318 : vector<8x64xf32> to vector<8x64xbf16>
    %cst_106 = arith.constant dense<0.000000e+00> : vector<8x128xf32>
    %320 = tpu.matmul %319, %5, %cst_106 {dimension_numbers = #tpu.dot_dimension_numbers<[1], [0], [0], [1], [0, 0, 1, 1], [], []>} : vector<8x64xbf16>, vector<64x128xbf16>, vector<8x128xf32> -> vector<8x128xf32>
    %321 = arith.addf %320, %15 : vector<8x128xf32>
    %cst_107 = arith.constant 0.000000e+00 : f32
    %322 = vector.broadcast %cst_107 : f32 to vector<8x128xf32>
    %323 = arith.cmpf ogt, %321, %322 : vector<8x128xf32>
    %cst_108 = arith.constant 0.00999999977 : f32
    %324 = vector.broadcast %cst_108 : f32 to vector<8x128xf32>
    %325 = arith.mulf %324, %321 : vector<8x128xf32>
    %326 = arith.select %323, %321, %325 : vector<8x128xi1>, vector<8x128xf32>
    %327 = arith.truncf %326 : vector<8x128xf32> to vector<8x128xbf16>
    %cst_109 = arith.constant dense<0.000000e+00> : vector<8x16xf32>
    %328 = tpu.matmul %327, %6, %cst_109 {dimension_numbers = #tpu.dot_dimension_numbers<[1], [0], [0], [1], [0, 0, 1, 1], [], []>} : vector<8x128xbf16>, vector<128x16xbf16>, vector<8x16xf32> -> vector<8x16xf32>
    %329 = arith.addf %328, %18 : vector<8x16xf32>
    %330 = arith.negf %329 : vector<8x16xf32>
    %331 = math.exp %330 : vector<8x16xf32>
    %cst_110 = arith.constant 1.000000e+00 : f32
    %332 = vector.broadcast %cst_110 : f32 to vector<8x16xf32>
    %333 = arith.addf %332, %331 : vector<8x16xf32>
    %334 = arith.divf %332, %333 : vector<8x16xf32>
    %335 = arith.subf %334, %256 : vector<8x16xf32>
    %336 = arith.subf %335, %257 : vector<8x16xf32>
    %c3_i32_111 = arith.constant 3 : i32
    %337 = arith.addi %c3_i32_111, %c1_i32_92 : i32
    %c8_i32_112 = arith.constant 8 : i32
    %338 = arith.muli %337, %c8_i32_112 : i32
    %339 = tpu.assume_multiple %338, 8 : i32
    %340 = tpu.concatenate %334, %335, %336 in 1 : vector<8x16xf32>, vector<8x16xf32>, vector<8x16xf32> -> vector<8x48xf32>
    %341 = arith.index_cast %339 : i32 to index
    %c0_113 = arith.constant 0 : index
    %342 = vector.load %arg13[%341, %c0_113] : memref<48x48xf32, #tpu.memory_space<vmem>>, vector<8x48xf32>
    tpu.vector_store %arg13[%341, %c0_113], %340 {strides = array<i32>} : memref<48x48xf32, #tpu.memory_space<vmem>>, vector<8x48xf32>,
    %c2_i32_114 = arith.constant 2 : i32
    %343 = arith.truncf %334 : vector<8x16xf32> to vector<8x16xbf16>
    %cst_115 = arith.constant dense<0.000000e+00> : vector<8x128xf32>
    %344 = tpu.matmul %343, %24, %cst_115 {dimension_numbers = #tpu.dot_dimension_numbers<[1], [0], [0], [1], [0, 0, 1, 1], [], []>} : vector<8x16xbf16>, vector<16x128xbf16>, vector<8x128xf32> -> vector<8x128xf32>
    %345 = arith.truncf %335 : vector<8x16xf32> to vector<8x16xbf16>
    %cst_116 = arith.constant dense<0.000000e+00> : vector<8x128xf32>
    %346 = tpu.matmul %345, %25, %cst_116 {dimension_numbers = #tpu.dot_dimension_numbers<[1], [0], [0], [1], [0, 0, 1, 1], [], []>} : vector<8x16xbf16>, vector<16x128xbf16>, vector<8x128xf32> -> vector<8x128xf32>
    %347 = arith.addf %344, %346 : vector<8x128xf32>
    %348 = arith.truncf %336 : vector<8x16xf32> to vector<8x16xbf16>
    %cst_117 = arith.constant dense<0.000000e+00> : vector<8x128xf32>
    %349 = tpu.matmul %348, %26, %cst_117 {dimension_numbers = #tpu.dot_dimension_numbers<[1], [0], [0], [1], [0, 0, 1, 1], [], []>} : vector<8x16xbf16>, vector<16x128xbf16>, vector<8x128xf32> -> vector<8x128xf32>
    %350 = arith.addf %347, %349 : vector<8x128xf32>
    %351 = vector.shape_cast %301 : vector<8x32xf32> to vector<1x8x32xf32>
    %352 = vector.shape_cast %23 : vector<8x8xf32> to vector<8x8x1xf32>
    %353 = vector.broadcast %351 : vector<1x8x32xf32> to vector<8x8x32xf32>
    %354 = vector.broadcast %352 : vector<8x8x1xf32> to vector<8x8x32xf32>
    %355 = arith.addf %353, %354 : vector<8x8x32xf32>
    %cst_118 = arith.constant dense<0xFF800000> : vector<8x32xf32>
    %356 = vector.multi_reduction <maximumf>, %355, %cst_118 [1] : vector<8x8x32xf32> to vector<8x32xf32>
    %357 = arith.truncf %356 : vector<8x32xf32> to vector<8x32xbf16>
    %cst_119 = arith.constant dense<0.000000e+00> : vector<8x128xf32>
    %358 = tpu.matmul %357, %1, %cst_119 {dimension_numbers = #tpu.dot_dimension_numbers<[1], [0], [0], [1], [0, 0, 1, 1], [], []>} : vector<8x32xbf16>, vector<32x128xbf16>, vector<8x128xf32> -> vector<8x128xf32>
    %359 = arith.addf %350, %358 : vector<8x128xf32>
    %360 = arith.truncf %301 : vector<8x32xf32> to vector<8x32xbf16>
    %cst_120 = arith.constant dense<0.000000e+00> : vector<8x128xf32>
    %361 = tpu.matmul %360, %2, %cst_120 {dimension_numbers = #tpu.dot_dimension_numbers<[1], [0], [0], [1], [0, 0, 1, 1], [], []>} : vector<8x32xbf16>, vector<32x128xbf16>, vector<8x128xf32> -> vector<8x128xf32>
    %362 = arith.addf %359, %361 : vector<8x128xf32>
    %363 = arith.addf %362, %9 : vector<8x128xf32>
    %364 = vector.extract_strided_slice %363 {offsets = [0, 0], sizes = [8, 96], strides = [1, 1]} : vector<8x128xf32> to vector<8x96xf32>
    %365 = arith.negf %364 : vector<8x96xf32>
    %366 = math.exp %365 : vector<8x96xf32>
    %cst_121 = arith.constant 1.000000e+00 : f32
    %367 = vector.broadcast %cst_121 : f32 to vector<8x96xf32>
    %368 = arith.addf %367, %366 : vector<8x96xf32>
    %369 = arith.divf %367, %368 : vector<8x96xf32>
    %370 = vector.extract_strided_slice %363 {offsets = [0, 96], sizes = [8, 32], strides = [1, 1]} : vector<8x128xf32> to vector<8x32xf32>
    %371 = math.tanh %370 : vector<8x32xf32>
    %372 = vector.extract_strided_slice %369 {offsets = [0, 0], sizes = [8, 32], strides = [1, 1]} : vector<8x96xf32> to vector<8x32xf32>
    %373 = vector.extract_strided_slice %369 {offsets = [0, 32], sizes = [8, 32], strides = [1, 1]} : vector<8x96xf32> to vector<8x32xf32>
    %374 = vector.extract_strided_slice %369 {offsets = [0, 64], sizes = [8, 32], strides = [1, 1]} : vector<8x96xf32> to vector<8x32xf32>
    %375 = arith.mulf %373, %299 : vector<8x32xf32>
    %376 = arith.mulf %372, %371 : vector<8x32xf32>
    %377 = arith.addf %375, %376 : vector<8x32xf32>
    %378 = math.tanh %377 : vector<8x32xf32>
    %379 = arith.mulf %374, %378 : vector<8x32xf32>
    %380 = arith.truncf %379 : vector<8x32xf32> to vector<8x32xbf16>
    %cst_122 = arith.constant dense<0.000000e+00> : vector<8x64xf32>
    %381 = tpu.matmul %380, %3, %cst_122 {dimension_numbers = #tpu.dot_dimension_numbers<[1], [0], [0], [1], [0, 0, 1, 1], [], []>} : vector<8x32xbf16>, vector<32x64xbf16>, vector<8x64xf32> -> vector<8x64xf32>
    %382 = arith.truncf %334 : vector<8x16xf32> to vector<8x16xbf16>
    %cst_123 = arith.constant dense<0.000000e+00> : vector<8x64xf32>
    %383 = tpu.matmul %382, %27, %cst_123 {dimension_numbers = #tpu.dot_dimension_numbers<[1], [0], [0], [1], [0, 0, 1, 1], [], []>} : vector<8x16xbf16>, vector<16x64xbf16>, vector<8x64xf32> -> vector<8x64xf32>
    %384 = arith.addf %381, %383 : vector<8x64xf32>
    %385 = arith.truncf %335 : vector<8x16xf32> to vector<8x16xbf16>
    %cst_124 = arith.constant dense<0.000000e+00> : vector<8x64xf32>
    %386 = tpu.matmul %385, %28, %cst_124 {dimension_numbers = #tpu.dot_dimension_numbers<[1], [0], [0], [1], [0, 0, 1, 1], [], []>} : vector<8x16xbf16>, vector<16x64xbf16>, vector<8x64xf32> -> vector<8x64xf32>
    %387 = arith.addf %384, %386 : vector<8x64xf32>
    %388 = arith.truncf %336 : vector<8x16xf32> to vector<8x16xbf16>
    %cst_125 = arith.constant dense<0.000000e+00> : vector<8x64xf32>
    %389 = tpu.matmul %388, %29, %cst_125 {dimension_numbers = #tpu.dot_dimension_numbers<[1], [0], [0], [1], [0, 0, 1, 1], [], []>} : vector<8x16xbf16>, vector<16x64xbf16>, vector<8x64xf32> -> vector<8x64xf32>
    %390 = arith.addf %387, %389 : vector<8x64xf32>
    %391 = arith.addf %390, %12 : vector<8x64xf32>
    %cst_126 = arith.constant 0.000000e+00 : f32
    %392 = vector.broadcast %cst_126 : f32 to vector<8x64xf32>
    %393 = arith.cmpf ogt, %391, %392 : vector<8x64xf32>
    %cst_127 = arith.constant 0.00999999977 : f32
    %394 = vector.broadcast %cst_127 : f32 to vector<8x64xf32>
    %395 = arith.mulf %394, %391 : vector<8x64xf32>
    %396 = arith.select %393, %391, %395 : vector<8x64xi1>, vector<8x64xf32>
    %397 = arith.truncf %396 : vector<8x64xf32> to vector<8x64xbf16>
    %cst_128 = arith.constant dense<0.000000e+00> : vector<8x128xf32>
    %398 = tpu.matmul %397, %5, %cst_128 {dimension_numbers = #tpu.dot_dimension_numbers<[1], [0], [0], [1], [0, 0, 1, 1], [], []>} : vector<8x64xbf16>, vector<64x128xbf16>, vector<8x128xf32> -> vector<8x128xf32>
    %399 = arith.addf %398, %15 : vector<8x128xf32>
    %cst_129 = arith.constant 0.000000e+00 : f32
    %400 = vector.broadcast %cst_129 : f32 to vector<8x128xf32>
    %401 = arith.cmpf ogt, %399, %400 : vector<8x128xf32>
    %cst_130 = arith.constant 0.00999999977 : f32
    %402 = vector.broadcast %cst_130 : f32 to vector<8x128xf32>
    %403 = arith.mulf %402, %399 : vector<8x128xf32>
    %404 = arith.select %401, %399, %403 : vector<8x128xi1>, vector<8x128xf32>
    %405 = arith.truncf %404 : vector<8x128xf32> to vector<8x128xbf16>
    %cst_131 = arith.constant dense<0.000000e+00> : vector<8x16xf32>
    %406 = tpu.matmul %405, %6, %cst_131 {dimension_numbers = #tpu.dot_dimension_numbers<[1], [0], [0], [1], [0, 0, 1, 1], [], []>} : vector<8x128xbf16>, vector<128x16xbf16>, vector<8x16xf32> -> vector<8x16xf32>
    %407 = arith.addf %406, %18 : vector<8x16xf32>
    %408 = arith.negf %407 : vector<8x16xf32>
    %409 = math.exp %408 : vector<8x16xf32>
    %cst_132 = arith.constant 1.000000e+00 : f32
    %410 = vector.broadcast %cst_132 : f32 to vector<8x16xf32>
    %411 = arith.addf %410, %409 : vector<8x16xf32>
    %412 = arith.divf %410, %411 : vector<8x16xf32>
    %413 = arith.subf %412, %334 : vector<8x16xf32>
    %414 = arith.subf %413, %335 : vector<8x16xf32>
    %c3_i32_133 = arith.constant 3 : i32
    %415 = arith.addi %c3_i32_133, %c2_i32_114 : i32
    %c8_i32_134 = arith.constant 8 : i32
    %416 = arith.muli %415, %c8_i32_134 : i32
    %417 = tpu.assume_multiple %416, 8 : i32
    %418 = tpu.concatenate %412, %413, %414 in 1 : vector<8x16xf32>, vector<8x16xf32>, vector<8x16xf32> -> vector<8x48xf32>
    %419 = arith.index_cast %417 : i32 to index
    %c0_135 = arith.constant 0 : index
    %420 = vector.load %arg13[%419, %c0_135] : memref<48x48xf32, #tpu.memory_space<vmem>>, vector<8x48xf32>
    tpu.vector_store %arg13[%419, %c0_135], %418 {strides = array<i32>} : memref<48x48xf32, #tpu.memory_space<vmem>>, vector<8x48xf32>,
    %c3_i32_136 = arith.constant 3 : i32
    return
  }
}

</mosaic_0001>

<llo_original>
// kernel: tpu_custom_call.1
$region0: #{tpu_custom_call.1}
  #allocation0 [shape = 'u32[]', space=smem, size = 0x4, offset = 0x4, fixed_abs, tag = 'smem constant byte address 0x4 - core index']
  #allocation1 [shape = 'u32[144,128]{1,0:T(1,128)}', space=vmem, size = 0x12000, scoped, tag = 'internal scratch']
  #allocation2 [shape = 'f32[24,32]{1,0:T(8,128)}', space=vmem, size = 0x3000, scoped, tag = 'scratch operand']
  %s0 = inlined_call_operand.hbm [shape: f32[8,8], index: 0, kind: input, shape index: {}]
  %s1 = inlined_call_operand.vmem [shape: f32[24,48], index: 1, kind: input, shape index: {}]
  %s2 = inlined_call_operand.hbm [shape: bf16[48,128], index: 2, kind: input, shape index: {}]
  %s3 = inlined_call_operand.hbm [shape: bf16[32,128], index: 3, kind: input, shape index: {}]
  %s4 = inlined_call_operand.hbm [shape: bf16[32,128], index: 4, kind: input, shape index: {}]
  %s5 = inlined_call_operand.vmem [shape: f32[1,128], index: 5, kind: input, shape index: {}]
  %s6 = inlined_call_operand.hbm [shape: bf16[32,64], index: 6, kind: input, shape index: {}]
  %s7 = inlined_call_operand.vmem [shape: bf16[48,64], index: 7, kind: input, shape index: {}]
  %s8 = inlined_call_operand.vmem [shape: f32[1,64], index: 8, kind: input, shape index: {}]
  %s9 = inlined_call_operand.vmem [shape: bf16[64,128], index: 9, kind: input, shape index: {}]
  %s10 = inlined_call_operand.vmem [shape: f32[1,128], index: 10, kind: input, shape index: {}]
  %s11 = inlined_call_operand.vmem [shape: bf16[128,16], index: 11, kind: input, shape index: {}]
  %s12 = inlined_call_operand.vmem [shape: f32[1,16], index: 12, kind: input, shape index: {}]
  %s13 = inlined_call_operand.hbm [shape: f32[48,48], index: 13, kind: output, shape index: {}]
  %s14 = sld [smem:[#allocation0]]
  $region82: #{tpu_custom_call.1} parent=0
    _
  %s16 = ssub.s32 1, %s14
  %s17 = scalar_select 0, %s16, %s14
  $region1: #{tpu_custom_call.1} parent=0
    #allocation3 [shape = 'u8[4096]{0}', space=vmem, size = 0x1000, scoped, tag = 'input window, operand 0, single buffered']
    #allocation4 [shape = 's32[1]{0}', space=sflag, size = 0x4, scoped, tag = 'scoped memory for tpu_custom_call.1']
    #allocation5 [shape = 's32[1]{0}', space=sflag, size = 0x4, scoped, tag = 'scoped memory for tpu_custom_call.1']
    #allocation6 [shape = 'u8[12288]{0}', space=vmem, size = 0x3000, scoped, tag = 'input window, operand 2, single buffered']
    #allocation7 [shape = 's32[1]{0}', space=sflag, size = 0x4, scoped, tag = 'scoped memory for tpu_custom_call.1']
    #allocation8 [shape = 'u8[8192]{0}', space=vmem, size = 0x2000, scoped, tag = 'input window, operand 3, single buffered']
    #allocation9 [shape = 'u8[8192]{0}', space=vmem, size = 0x2000, scoped, tag = 'input window, operand 4, single buffered']
    #allocation10 [shape = 's32[1]{0}', space=sflag, size = 0x4, scoped, tag = 'scoped memory for tpu_custom_call.1']
    #allocation11 [shape = 'u8[8192]{0}', space=vmem, size = 0x2000, scoped, tag = 'input window, operand 6, single buffered']
    #allocation12 [shape = 'u8[24576]{0}', space=vmem, size = 0x6000, scoped, tag = 'output window, operand 0, single buffered']
    %18 = vsyncpa [#allocation4], 0
    %19 = vsyncpa [#allocation7], 0
    %20 = vsyncpa [#allocation10], 0
    %21 = vsyncpa [#allocation5], 0
    // Predicated region
    $region2: #{tpu_custom_call.1} parent=1 // pred_check
      _
    $region3: #{tpu_custom_call.1} parent=1 // pred_check_branch
      %23 = sbr.rel (0) target = $region5
    $region4: #{tpu_custom_call.1} parent=1 // pred_region
      %s25 = ssub.s32 128, 128
      %26 = vsyncadd [#allocation4], %s25
      %s28 = sshll.u32 [#allocation3], 4
      %s29 = int_to_ptr.vmem [resolvable:$true] %s28
      %31 = dma.hbm_to_vmem [thread:$0]  %s0, 128, %s29, [#allocation4]
    $region5: #{tpu_custom_call.1} parent=1 // pred_fallthru
      _
    // Predicated region
    $region6: #{tpu_custom_call.1} parent=1 // pred_check
      _
    $region7: #{tpu_custom_call.1} parent=1 // pred_check_branch
      %33 = sbr.rel (0) target = $region9
    $region8: #{tpu_custom_call.1} parent=1 // pred_region
      _
    $region9: #{tpu_custom_call.1} parent=1 // pred_fallthru
      _
    // Predicated region
    $region10: #{tpu_custom_call.1} parent=1 // pred_check
      _
    $region11: #{tpu_custom_call.1} parent=1 // pred_check_branch
      %35 = sbr.rel (0) target = $region13
    $region12: #{tpu_custom_call.1} parent=1 // pred_region
      %s37 = ssub.s32 384, 384
      %38 = vsyncadd [#allocation7], %s37
      %s39 = sshll.u32 [#allocation6], 4
      %s40 = int_to_ptr.vmem [resolvable:$true] %s39
      %45 = dma.hbm_to_vmem [thread:$0]  %s2, 384, %s40, [#allocation7], 64, 64, 4
    $region13: #{tpu_custom_call.1} parent=1 // pred_fallthru
      _
    // Predicated region
    $region14: #{tpu_custom_call.1} parent=1 // pred_check
      _
    $region15: #{tpu_custom_call.1} parent=1 // pred_check_branch
      %47 = sbr.rel (0) target = $region17
    $region16: #{tpu_custom_call.1} parent=1 // pred_region
      %s49 = ssub.s32 256, 256
      %50 = vsyncadd [#allocation7], %s49
      %s51 = sshll.u32 [#allocation8], 4
      %s52 = int_to_ptr.vmem [resolvable:$true] %s51
      %57 = dma.hbm_to_vmem [thread:$0]  %s3, 256, %s52, [#allocation7], 64, 64, 4
    $region17: #{tpu_custom_call.1} parent=1 // pred_fallthru
      _
    // Predicated region
    $region18: #{tpu_custom_call.1} parent=1 // pred_check
      _
    $region19: #{tpu_custom_call.1} parent=1 // pred_check_branch
      %59 = sbr.rel (0) target = $region21
    $region20: #{tpu_custom_call.1} parent=1 // pred_region
      %s61 = ssub.s32 256, 256
      %62 = vsyncadd [#allocation10], %s61
      %s63 = sshll.u32 [#allocation9], 4
      %s64 = int_to_ptr.vmem [resolvable:$true] %s63
      %69 = dma.hbm_to_vmem [thread:$0]  %s4, 256, %s64, [#allocation10], 64, 64, 4
    $region21: #{tpu_custom_call.1} parent=1 // pred_fallthru
      _
    // Predicated region
    $region22: #{tpu_custom_call.1} parent=1 // pred_check
      _
    $region23: #{tpu_custom_call.1} parent=1 // pred_check_branch
      %71 = sbr.rel (0) target = $region25
    $region24: #{tpu_custom_call.1} parent=1 // pred_region
      _
    $region25: #{tpu_custom_call.1} parent=1 // pred_fallthru
      _
    // Predicated region
    $region26: #{tpu_custom_call.1} parent=1 // pred_check
      _
    $region27: #{tpu_custom_call.1} parent=1 // pred_check_branch
      %73 = sbr.rel (0) target = $region29
    $region28: #{tpu_custom_call.1} parent=1 // pred_region
      %s75 = ssub.s32 256, 256
      %76 = vsyncadd [#allocation10], %s75
      %s77 = sshll.u32 [#allocation11], 4
      %s78 = int_to_ptr.vmem [resolvable:$true] %s77
      %83 = dma.hbm_to_vmem [thread:$0]  %s6, 256, %s78, [#allocation10], 64, 64, 4
    $region29: #{tpu_custom_call.1} parent=1 // pred_fallthru
      _
    // Predicated region
    $region30: #{tpu_custom_call.1} parent=1 // pred_check
      _
    $region31: #{tpu_custom_call.1} parent=1 // pred_check_branch
      %85 = sbr.rel (0) target = $region33
    $region32: #{tpu_custom_call.1} parent=1 // pred_region
      _
    $region33: #{tpu_custom_call.1} parent=1 // pred_fallthru
      _
    // Predicated region
    $region34: #{tpu_custom_call.1} parent=1 // pred_check
      _
    $region35: #{tpu_custom_call.1} parent=1 // pred_check_branch
      %87 = sbr.rel (0) target = $region37
    $region36: #{tpu_custom_call.1} parent=1 // pred_region
      _
    $region37: #{tpu_custom_call.1} parent=1 // pred_fallthru
      _
    // Predicated region
    $region38: #{tpu_custom_call.1} parent=1 // pred_check
      _
    $region39: #{tpu_custom_call.1} parent=1 // pred_check_branch
      %89 = sbr.rel (0) target = $region41
    $region40: #{tpu_custom_call.1} parent=1 // pred_region
      _
    $region41: #{tpu_custom_call.1} parent=1 // pred_fallthru
      _
    // Predicated region
    $region42: #{tpu_custom_call.1} parent=1 // pred_check
      _
    $region43: #{tpu_custom_call.1} parent=1 // pred_check_branch
      %91 = sbr.rel (0) target = $region45
    $region44: #{tpu_custom_call.1} parent=1 // pred_region
      _
    $region45: #{tpu_custom_call.1} parent=1 // pred_fallthru
      _
    // Predicated region
    $region46: #{tpu_custom_call.1} parent=1 // pred_check
      _
    $region47: #{tpu_custom_call.1} parent=1 // pred_check_branch
      %93 = sbr.rel (0) target = $region49
    $region48: #{tpu_custom_call.1} parent=1 // pred_region
      _
    $region49: #{tpu_custom_call.1} parent=1 // pred_fallthru
      _
    // Predicated region
    $region50: #{tpu_custom_call.1} parent=1 // pred_check
      _
    $region51: #{tpu_custom_call.1} parent=1 // pred_check_branch
      %95 = sbr.rel (0) target = $region53
    $region52: #{tpu_custom_call.1} parent=1 // pred_region
      _
    $region53: #{tpu_custom_call.1} parent=1 // pred_fallthru
      _
    // Predicated region
    $region54: #{tpu_custom_call.1} parent=1 // pred_check
      _
    $region55: #{tpu_custom_call.1} parent=1 // pred_check_branch
      %97 = sbr.rel (0) target = $region57
    $region56: #{tpu_custom_call.1} parent=1 // pred_region
      %98 = dma.done [#allocation4], 128
    $region57: #{tpu_custom_call.1} parent=1 // pred_fallthru
      _
    // Predicated region
    $region58: #{tpu_custom_call.1} parent=1 // pred_check
      _
    $region59: #{tpu_custom_call.1} parent=1 // pred_check_branch
      %100 = sbr.rel (0) target = $region61
    $region60: #{tpu_custom_call.1} parent=1 // pred_region
      %101 = dma.done [#allocation7], 384
    $region61: #{tpu_custom_call.1} parent=1 // pred_fallthru
      _
    // Predicated region
    $region62: #{tpu_custom_call.1} parent=1 // pred_check
      _
    $region63: #{tpu_custom_call.1} parent=1 // pred_check_branch
      %103 = sbr.rel (0) target = $region65
    $region64: #{tpu_custom_call.1} parent=1 // pred_region
      %104 = dma.done [#allocation7], 256
    $region65: #{tpu_custom_call.1} parent=1 // pred_fallthru
      _
    // Predicated region
    $region66: #{tpu_custom_call.1} parent=1 // pred_check
      _
    $region67: #{tpu_custom_call.1} parent=1 // pred_check_branch
      %106 = sbr.rel (0) target = $region69
    $region68: #{tpu_custom_call.1} parent=1 // pred_region
      %107 = dma.done [#allocation10], 256
    $region69: #{tpu_custom_call.1} parent=1 // pred_fallthru
      _
    // Predicated region
    $region70: #{tpu_custom_call.1} parent=1 // pred_check
      _
    $region71: #{tpu_custom_call.1} parent=1 // pred_check_branch
      %109 = sbr.rel (0) target = $region73
    $region72: #{tpu_custom_call.1} parent=1 // pred_region
      %110 = dma.done [#allocation10], 256
    $region73: #{tpu_custom_call.1} parent=1 // pred_fallthru
      _
    %v112 = vld [vmem:[#allocation6] sm:$0xf]
    %v113 = vld [vmem:[#allocation6 + $0x4] sm:$0xf]
    %v114 = vld [vmem:[#allocation6 + $0x8] sm:$0xf]
    %v115 = vld [vmem:[#allocation6 + $0xc] sm:$0xf]
    %v116 = vld [vmem:[#allocation6 + $0x10] sm:$0xf]
    %v117 = vld [vmem:[#allocation6 + $0x14] sm:$0xf]
    %v118 = vld [vmem:[#allocation8] sm:$0xf]
    %v119 = vld [vmem:[#allocation8 + $0x4] sm:$0xf]
    %v120 = vld [vmem:[#allocation8 + $0x8] sm:$0xf]
    %v121 = vld [vmem:[#allocation8 + $0xc] sm:$0xf]
    %v122 = vld [vmem:[#allocation9] sm:$0xf]
    %v123 = vld [vmem:[#allocation9 + $0x4] sm:$0xf]
    %v124 = vld [vmem:[#allocation9 + $0x8] sm:$0xf]
    %v125 = vld [vmem:[#allocation9 + $0xc] sm:$0xf]
    %v126 = vld [vmem:[#allocation11] sm:$0xf]
    %v127 = vld [vmem:[#allocation11 + $0x4] sm:$0xf]
    %v128 = vld [vmem:[#allocation11 + $0x8] sm:$0xf]
    %v129 = vld [vmem:[#allocation11 + $0xc] sm:$0xf]
    %v130 = vld [vmem:[%s7] sm:$0xf]
    %v131 = vld [vmem:[%s7 + $0x4] sm:$0xf]
    %v132 = vld [vmem:[%s7 + $0x8] sm:$0xf]
    %v133 = vld [vmem:[%s7 + $0xc] sm:$0xf]
    %v134 = vld [vmem:[%s7 + $0x10] sm:$0xf]
    %v135 = vld [vmem:[%s7 + $0x14] sm:$0xf]
    %v136 = vld [vmem:[%s9] sm:$0xf]
    %v137 = vld [vmem:[%s9 + $0x4] sm:$0xf]
    %v138 = vld [vmem:[%s9 + $0x8] sm:$0xf]
    %v139 = vld [vmem:[%s9 + $0xc] sm:$0xf]
    %v140 = vld [vmem:[%s9 + $0x10] sm:$0xf]
    %v141 = vld [vmem:[%s9 + $0x14] sm:$0xf]
    %v142 = vld [vmem:[%s9 + $0x18] sm:$0xf]
    %v143 = vld [vmem:[%s9 + $0x1c] sm:$0xf]
    %v144 = vld [vmem:[%s11] sm:$0xf]
    %v145 = vld [vmem:[%s11 + $0x4] sm:$0xf]
    %v146 = vld [vmem:[%s11 + $0x8] sm:$0xf]
    %v147 = vld [vmem:[%s11 + $0xc] sm:$0xf]
    %v148 = vld [vmem:[%s11 + $0x10] sm:$0xf]
    %v149 = vld [vmem:[%s11 + $0x14] sm:$0xf]
    %v150 = vld [vmem:[%s11 + $0x18] sm:$0xf]
    %v151 = vld [vmem:[%s11 + $0x1c] sm:$0xf]
    %v152 = vld [vmem:[%s11 + $0x20] sm:$0xf]
    %v153 = vld [vmem:[%s11 + $0x24] sm:$0xf]
    %v154 = vld [vmem:[%s11 + $0x28] sm:$0xf]
    %v155 = vld [vmem:[%s11 + $0x2c] sm:$0xf]
    %v156 = vld [vmem:[%s11 + $0x30] sm:$0xf]
    %v157 = vld [vmem:[%s11 + $0x34] sm:$0xf]
    %v158 = vld [vmem:[%s11 + $0x38] sm:$0xf]
    %v159 = vld [vmem:[%s11 + $0x3c] sm:$0xf]
    %v160 = vld [vmem:[%s5] sm:$0x1]
    %v162 = vlaneseq
    %v163 = vshrl.u32 %v162, 7
    %v164 = vsub.s32 0, %v163
    %v165 = vrot.slane %v160, %v164
    %v167 = vld [vmem:[%s8] sm:$0x1]
    %v169 = vlaneseq
    %v170 = vshrl.u32 %v169, 7
    %v171 = vsub.s32 0, %v170
    %v172 = vrot.slane %v167, %v171
    %v174 = vld [vmem:[%s10] sm:$0x1]
    %v176 = vlaneseq
    %v177 = vshrl.u32 %v176, 7
    %v178 = vsub.s32 0, %v177
    %v179 = vrot.slane %v174, %v178
    %v181 = vld [vmem:[%s12] sm:$0x1]
    %v183 = vlaneseq
    %v184 = vshrl.u32 %v183, 7
    %v185 = vsub.s32 0, %v184
    %v186 = vrot.slane %v181, %v185
    %v188 = vld [vmem:[#allocation3] sm:$0xff]
    %v189 = vsub.f32 %v188, 1.0
    %v190 = vmul.f32 %v189, 1e+30
    %v191 = vld [vmem:[%s1] sm:$0xff]
    %v192 = vpack.c.bf16 %v191, %v191
    %v193 = vlaneseq
    %v194 = vshrl.u32 %v193, 7
    %v195 = vsub.s32 0, %v194
    %v196 = vrot.slane %v190, %v195
    %198 = vbcast.lane.b32.xlu0 %v196, 256
    %v199 = vpop.permute.xlu0 %198
    %v200 = vlaneseq
    %v201 = vshrl.u32 %v200, 7
    %v202 = vsub.s32 1, %v201
    %v203 = vrot.slane %v190, %v202
    %205 = vbcast.lane.b32.xlu0 %v203, 256
    %v206 = vpop.permute.xlu0 %205
    %v207 = vlaneseq
    %v208 = vshrl.u32 %v207, 7
    %v209 = vsub.s32 2, %v208
    %v210 = vrot.slane %v190, %v209
    %212 = vbcast.lane.b32.xlu0 %v210, 256
    %v213 = vpop.permute.xlu0 %212
    %v214 = vlaneseq
    %v215 = vshrl.u32 %v214, 7
    %v216 = vsub.s32 3, %v215
    %v217 = vrot.slane %v190, %v216
    %219 = vbcast.lane.b32.xlu0 %v217, 256
    %v220 = vpop.permute.xlu0 %219
    %v221 = vlaneseq
    %v222 = vshrl.u32 %v221, 7
    %v223 = vsub.s32 4, %v222
    %v224 = vrot.slane %v190, %v223
    %226 = vbcast.lane.b32.xlu0 %v224, 256
    %v227 = vpop.permute.xlu0 %226
    %v228 = vlaneseq
    %v229 = vshrl.u32 %v228, 7
    %v230 = vsub.s32 5, %v229
    %v231 = vrot.slane %v190, %v230
    %233 = vbcast.lane.b32.xlu0 %v231, 256
    %v234 = vpop.permute.xlu0 %233
    %v235 = vlaneseq
    %v236 = vshrl.u32 %v235, 7
    %v237 = vsub.s32 6, %v236
    %v238 = vrot.slane %v190, %v237
    %240 = vbcast.lane.b32.xlu0 %v238, 256
    %v241 = vpop.permute.xlu0 %240
    %v242 = vlaneseq
    %v243 = vshrl.u32 %v242, 7
    %v244 = vsub.s32 7, %v243
    %v245 = vrot.slane %v190, %v244
    %247 = vbcast.lane.b32.xlu0 %v245, 256
    %v248 = vpop.permute.xlu0 %247
    %v249 = vadd.f32 %v199, 0.0
    %v250 = vadd.f32 %v206, 0.0
    %v251 = vadd.f32 %v213, 0.0
    %v252 = vadd.f32 %v220, 0.0
    %v253 = vadd.f32 %v227, 0.0
    %v254 = vadd.f32 %v234, 0.0
    %v255 = vadd.f32 %v241, 0.0
    %v256 = vadd.f32 %v248, 0.0
    %v257 = vrot.slane %v249, 4
    %v258 = vmax.f32 %v249, %v257
    %v259 = vrot.slane %v258, 2
    %v260 = vmax.f32 %v258, %v259
    %v261 = vrot.slane %v260, 1
    %v262 = vmax.f32 %v260, %v261
    %v263 = vrot.slane %v250, 4
    %v264 = vmax.f32 %v250, %v263
    %v265 = vrot.slane %v264, 2
    %v266 = vmax.f32 %v264, %v265
    %v267 = vrot.slane %v266, 1
    %v268 = vmax.f32 %v266, %v267
    %v269 = vrot.slane %v251, 4
    %v270 = vmax.f32 %v251, %v269
    %v271 = vrot.slane %v270, 2
    %v272 = vmax.f32 %v270, %v271
    %v273 = vrot.slane %v272, 1
    %v274 = vmax.f32 %v272, %v273
    %v275 = vrot.slane %v252, 4
    %v276 = vmax.f32 %v252, %v275
    %v277 = vrot.slane %v276, 2
    %v278 = vmax.f32 %v276, %v277
    %v279 = vrot.slane %v278, 1
    %v280 = vmax.f32 %v278, %v279
    %v281 = vrot.slane %v253, 4
    %v282 = vmax.f32 %v253, %v281
    %v283 = vrot.slane %v282, 2
    %v284 = vmax.f32 %v282, %v283
    %v285 = vrot.slane %v284, 1
    %v286 = vmax.f32 %v284, %v285
    %v287 = vrot.slane %v254, 4
    %v288 = vmax.f32 %v254, %v287
    %v289 = vrot.slane %v288, 2
    %v290 = vmax.f32 %v288, %v289
    %v291 = vrot.slane %v290, 1
    %v292 = vmax.f32 %v290, %v291
    %v293 = vrot.slane %v255, 4
    %v294 = vmax.f32 %v255, %v293
    %v295 = vrot.slane %v294, 2
    %v296 = vmax.f32 %v294, %v295
    %v297 = vrot.slane %v296, 1
    %v298 = vmax.f32 %v296, %v297
    %v299 = vrot.slane %v256, 4
    %v300 = vmax.f32 %v256, %v299
    %v301 = vrot.slane %v300, 2
    %v302 = vmax.f32 %v300, %v301
    %v303 = vrot.slane %v302, 1
    %v304 = vmax.f32 %v302, %v303
    %v305 = vpack.c.bf16 %v262, %v262
    %v306 = vpack.c.bf16 %v268, %v268
    %v307 = vpack.c.bf16 %v274, %v274
    %v308 = vpack.c.bf16 %v280, %v280
    %v309 = vpack.c.bf16 %v286, %v286
    %v310 = vpack.c.bf16 %v292, %v292
    %v311 = vpack.c.bf16 %v298, %v298
    %v312 = vpack.c.bf16 %v304, %v304
    %v321 = vunpack.c.l.b16 %v305
    %v322 = vunpack.c.l.b16 %v306
    %v323 = vunpack.c.l.b16 %v307
    %v324 = vunpack.c.l.b16 %v308
    %v325 = vunpack.c.l.b16 %v309
    %v326 = vunpack.c.l.b16 %v310
    %v327 = vunpack.c.l.b16 %v311
    %v328 = vunpack.c.l.b16 %v312
    %vm329 = vcmask 1041409
    %v330 = vsel %vm329, %v322, %v321
    %vm331 = vcmask 1042434
    %v332 = vsel %vm331, %v323, %v330
    %vm333 = vcmask 1043459
    %v334 = vsel %vm333, %v324, %v332
    %vm335 = vcmask 1044484
    %v336 = vsel %vm335, %v325, %v334
    %vm337 = vcmask 1045509
    %v338 = vsel %vm337, %v326, %v336
    %vm339 = vcmask 1046534
    %v340 = vsel %vm339, %v327, %v338
    %vm341 = vcmask 1047559
    %v342 = vsel %vm341, %v328, %v340
    %v343 = vpack.c.b16 %v342, %v342
    %v348 = vunpack.c.l.b16 %v118
    %v349 = vunpack.c.l.b16 %v119
    %v350 = vunpack.c.l.b16 %v120
    %v351 = vunpack.c.l.b16 %v121
    %v352 = vpack.c.b16 %v349, %v348
    %v353 = vpack.c.b16 %v351, %v350
    %vm356 = vcmask 261120
    %v358 = vsel %vm356, %v343, 0
    %360 = vmatprep.subr.bf16.mxu0 0
    %361 = vmatpush1.bf16.msra.mxu0 %v352
    %362 = vmatprep.subr.bf16.mxu0 0
    %363 = vmatpush1.bf16.msra.mxu0 %v353
    %364 = vmatprep.subr.bf16.mxu0 0
    %365 = vmatpush1.bf16.msra.mxu0 0
    %366 = vmatprep.subr.bf16.mxu0 0
    %367 = vmatpush1.bf16.msra.mxu0 0
    %368 = vmatprep.subr.bf16.mxu0 0
    %369 = vmatpush1.bf16.msra.mxu0 0
    %370 = vmatprep.subr.bf16.mxu0 0
    %371 = vmatpush1.bf16.msra.mxu0 0
    %372 = vmatprep.subr.bf16.mxu0 0
    %373 = vmatpush1.bf16.msra.mxu0 0
    %374 = vmatprep.subr.bf16.mxu0 0
    %375 = vmatpush1.bf16.msra.mxu0 0
    %376 = vmatprep.subr.bf16.mxu0 0
    %377 = vmatpush1.bf16.msra.mxu0 0
    %378 = vmatprep.subr.bf16.mxu0 0
    %379 = vmatpush1.bf16.msra.mxu0 0
    %380 = vmatprep.subr.bf16.mxu0 0
    %381 = vmatpush1.bf16.msra.mxu0 0
    %382 = vmatprep.subr.bf16.mxu0 0
    %383 = vmatpush1.bf16.msra.mxu0 0
    %384 = vmatprep.subr.bf16.mxu0 0
    %385 = vmatpush1.bf16.msra.mxu0 0
    %386 = vmatprep.subr.bf16.mxu0 0
    %387 = vmatpush1.bf16.msra.mxu0 0
    %388 = vmatprep.subr.bf16.mxu0 0
    %389 = vmatpush1.bf16.msra.mxu0 0
    %390 = vmatprep.subr.bf16.mxu0 0
    %391 = vmatpush1.bf16.msra.mxu0 0
    %392 = vmatprep.mubr.bf16.mxu0 0
    %393 = vmatmul.mubr.bf16.gmra.mrb[0].mxu0 %v358
    %v394 = vpop.f32.mrb[0].mxu0
    %v395 = vadd.f32 0.0, %v394
    %v396 = vpop.f32.mrb[0].mxu0
    %v397 = vpop.f32.mrb[0].mxu0
    %v398 = vpop.f32.mrb[0].mxu0
    %399 = vdwg.mxu0
    %v406 = vunpack.c.l.b16 %v112
    %v407 = vunpack.c.l.b16 %v113
    %v408 = vunpack.c.l.b16 %v114
    %v409 = vunpack.c.l.b16 %v115
    %v410 = vunpack.c.l.b16 %v116
    %v411 = vunpack.c.l.b16 %v117
    %v412 = vpack.c.b16 %v407, %v406
    %v413 = vpack.c.b16 %v409, %v408
    %v414 = vpack.c.b16 %v411, %v410
    %vm418 = vcmask 392192
    %v420 = vsel %vm418, %v192, 0
    %422 = vmatprep.subr.bf16.mxu0 0
    %423 = vmatpush1.bf16.msra.mxu0 %v412
    %424 = vmatprep.subr.bf16.mxu0 0
    %425 = vmatpush1.bf16.msra.mxu0 %v413
    %426 = vmatprep.subr.bf16.mxu0 0
    %427 = vmatpush1.bf16.msra.mxu0 %v414
    %428 = vmatprep.subr.bf16.mxu0 0
    %429 = vmatpush1.bf16.msra.mxu0 0
    %430 = vmatprep.subr.bf16.mxu0 0
    %431 = vmatpush1.bf16.msra.mxu0 0
    %432 = vmatprep.subr.bf16.mxu0 0
    %433 = vmatpush1.bf16.msra.mxu0 0
    %434 = vmatprep.subr.bf16.mxu0 0
    %435 = vmatpush1.bf16.msra.mxu0 0
    %436 = vmatprep.subr.bf16.mxu0 0
    %437 = vmatpush1.bf16.msra.mxu0 0
    %438 = vmatprep.subr.bf16.mxu0 0
    %439 = vmatpush1.bf16.msra.mxu0 0
    %440 = vmatprep.subr.bf16.mxu0 0
    %441 = vmatpush1.bf16.msra.mxu0 0
    %442 = vmatprep.subr.bf16.mxu0 0
    %443 = vmatpush1.bf16.msra.mxu0 0
    %444 = vmatprep.subr.bf16.mxu0 0
    %445 = vmatpush1.bf16.msra.mxu0 0
    %446 = vmatprep.subr.bf16.mxu0 0
    %447 = vmatpush1.bf16.msra.mxu0 0
    %448 = vmatprep.subr.bf16.mxu0 0
    %449 = vmatpush1.bf16.msra.mxu0 0
    %450 = vmatprep.subr.bf16.mxu0 0
    %451 = vmatpush1.bf16.msra.mxu0 0
    %452 = vmatprep.subr.bf16.mxu0 0
    %453 = vmatpush1.bf16.msra.mxu0 0
    %454 = vmatprep.mubr.bf16.mxu0 0
    %455 = vmatmul.mubr.bf16.gmra.mrb[0].mxu0 %v420
    %v456 = vpop.f32.mrb[0].mxu0
    %v457 = vadd.f32 %v395, %v456
    %v458 = vpop.f32.mrb[0].mxu0
    %v459 = vpop.f32.mrb[0].mxu0
    %v460 = vpop.f32.mrb[0].mxu0
    %461 = vdwg.mxu0
    %v466 = vunpack.c.l.b16 %v122
    %v467 = vunpack.c.l.b16 %v123
    %v468 = vunpack.c.l.b16 %v124
    %v469 = vunpack.c.l.b16 %v125
    %v470 = vpack.c.b16 %v467, %v466
    %v471 = vpack.c.b16 %v469, %v468
    %v475 = vsel %vm356, 0, 0
    %477 = vmatprep.subr.bf16.mxu0 0
    %478 = vmatpush1.bf16.msra.mxu0 %v470
    %479 = vmatprep.subr.bf16.mxu0 0
    %480 = vmatpush1.bf16.msra.mxu0 %v471
    %481 = vmatprep.subr.bf16.mxu0 0
    %482 = vmatpush1.bf16.msra.mxu0 0
    %483 = vmatprep.subr.bf16.mxu0 0
    %484 = vmatpush1.bf16.msra.mxu0 0
    %485 = vmatprep.subr.bf16.mxu0 0
    %486 = vmatpush1.bf16.msra.mxu0 0
    %487 = vmatprep.subr.bf16.mxu0 0
    %488 = vmatpush1.bf16.msra.mxu0 0
    %489 = vmatprep.subr.bf16.mxu0 0
    %490 = vmatpush1.bf16.msra.mxu0 0
    %491 = vmatprep.subr.bf16.mxu0 0
    %492 = vmatpush1.bf16.msra.mxu0 0
    %493 = vmatprep.subr.bf16.mxu0 0
    %494 = vmatpush1.bf16.msra.mxu0 0
    %495 = vmatprep.subr.bf16.mxu0 0
    %496 = vmatpush1.bf16.msra.mxu0 0
    %497 = vmatprep.subr.bf16.mxu0 0
    %498 = vmatpush1.bf16.msra.mxu0 0
    %499 = vmatprep.subr.bf16.mxu0 0
    %500 = vmatpush1.bf16.msra.mxu0 0
    %501 = vmatprep.subr.bf16.mxu0 0
    %502 = vmatpush1.bf16.msra.mxu0 0
    %503 = vmatprep.subr.bf16.mxu0 0
    %504 = vmatpush1.bf16.msra.mxu0 0
    %505 = vmatprep.subr.bf16.mxu0 0
    %506 = vmatpush1.bf16.msra.mxu0 0
    %507 = vmatprep.subr.bf16.mxu0 0
    %508 = vmatpush1.bf16.msra.mxu0 0
    %509 = vmatprep.mubr.bf16.mxu0 0
    %510 = vmatmul.mubr.bf16.gmra.mrb[0].mxu0 %v475
    %v511 = vpop.f32.mrb[0].mxu0
    %v512 = vadd.f32 0.0, %v511
    %v513 = vpop.f32.mrb[0].mxu0
    %v514 = vpop.f32.mrb[0].mxu0
    %v515 = vpop.f32.mrb[0].mxu0
    %516 = vdwg.mxu0
    %v517 = vadd.f32 %v457, %v512
    %v518 = vadd.f32 %v517, %v165
    %v519 = vxor.u32 %v518, 2147483648
    %v520 = vmul.f32 %v519, 1.442695
    %v521 = vpow.pop %v520
    %v522 = vadd.f32 %v521, 1.0
    %v523 = vrcp.pop %v522
    %v524 = vmul.f32 1.0, %v523
    %v525 = vtanh.pop %v518
    %v526 = vmul.f32 %v524, 0.0
    %528 = vrot.lane.b32.xlu0 %v525, 32
    %v529 = vpop.permute.xlu0 %528
    %v531 = vmul.f32 %v524, %v529
    %533 = vrot.lane.b32.xlu0 %v531, 32
    %v534 = vpop.permute.xlu0 %533
    %v536 = vadd.f32 %v526, %v534
    %v537 = vtanh.pop %v536
    %539 = vrot.lane.b32.xlu0 %v537, 32
    %v540 = vpop.permute.xlu0 %539
    %v542 = vmul.f32 %v524, %v540
    %544 = vrot.lane.b32.xlu0 %v542, 64
    %v545 = vpop.permute.xlu0 %544
    %547 = vst.msk [vmem:[#allocation2] sm:$0xff] %vm356, %v545
    %s548 = scalar_lea.vmem %s1, 8
    %v549 = vld [vmem:[%s548] sm:$0xff]
    %v550 = vpack.c.bf16 %v549, %v549
    %v551 = vadd.f32 %v542, %v199
    %v552 = vadd.f32 %v542, %v206
    %v553 = vadd.f32 %v542, %v213
    %v554 = vadd.f32 %v542, %v220
    %v555 = vadd.f32 %v542, %v227
    %v556 = vadd.f32 %v542, %v234
    %v557 = vadd.f32 %v542, %v241
    %v558 = vadd.f32 %v542, %v248
    %vm559 = vcmask 785920
    %v560 = vsel %vm559, %v551, -inf
    %v561 = vrot.slane %v560, 4
    %v562 = vmax.f32 %v560, %v561
    %v563 = vrot.slane %v562, 2
    %v564 = vmax.f32 %v562, %v563
    %v565 = vrot.slane %v564, 1
    %v566 = vmax.f32 %v564, %v565
    %v567 = vsel %vm559, %v552, -inf
    %v568 = vrot.slane %v567, 4
    %v569 = vmax.f32 %v567, %v568
    %v570 = vrot.slane %v569, 2
    %v571 = vmax.f32 %v569, %v570
    %v572 = vrot.slane %v571, 1
    %v573 = vmax.f32 %v571, %v572
    %v574 = vsel %vm559, %v553, -inf
    %v575 = vrot.slane %v574, 4
    %v576 = vmax.f32 %v574, %v575
    %v577 = vrot.slane %v576, 2
    %v578 = vmax.f32 %v576, %v577
    %v579 = vrot.slane %v578, 1
    %v580 = vmax.f32 %v578, %v579
    %v581 = vsel %vm559, %v554, -inf
    %v582 = vrot.slane %v581, 4
    %v583 = vmax.f32 %v581, %v582
    %v584 = vrot.slane %v583, 2
    %v585 = vmax.f32 %v583, %v584
    %v586 = vrot.slane %v585, 1
    %v587 = vmax.f32 %v585, %v586
    %v588 = vsel %vm559, %v555, -inf
    %v589 = vrot.slane %v588, 4
    %v590 = vmax.f32 %v588, %v589
    %v591 = vrot.slane %v590, 2
    %v592 = vmax.f32 %v590, %v591
    %v593 = vrot.slane %v592, 1
    %v594 = vmax.f32 %v592, %v593
    %v595 = vsel %vm559, %v556, -inf
    %v596 = vrot.slane %v595, 4
    %v597 = vmax.f32 %v595, %v596
    %v598 = vrot.slane %v597, 2
    %v599 = vmax.f32 %v597, %v598
    %v600 = vrot.slane %v599, 1
    %v601 = vmax.f32 %v599, %v600
    %v602 = vsel %vm559, %v557, -inf
    %v603 = vrot.slane %v602, 4
    %v604 = vmax.f32 %v602, %v603
    %v605 = vrot.slane %v604, 2
    %v606 = vmax.f32 %v604, %v605
    %v607 = vrot.slane %v606, 1
    %v608 = vmax.f32 %v606, %v607
    %v609 = vsel %vm559, %v558, -inf
    %v610 = vrot.slane %v609, 4
    %v611 = vmax.f32 %v609, %v610
    %v612 = vrot.slane %v611, 2
    %v613 = vmax.f32 %v611, %v612
    %v614 = vrot.slane %v613, 1
    %v615 = vmax.f32 %v613, %v614
    %v616 = vpack.c.bf16 %v566, %v566
    %v617 = vpack.c.bf16 %v573, %v573
    %v618 = vpack.c.bf16 %v580, %v580
    %v619 = vpack.c.bf16 %v587, %v587
    %v620 = vpack.c.bf16 %v594, %v594
    %v621 = vpack.c.bf16 %v601, %v601
    %v622 = vpack.c.bf16 %v608, %v608
    %v623 = vpack.c.bf16 %v615, %v615
    %v632 = vunpack.c.l.b16 %v616
    %v633 = vunpack.c.l.b16 %v617
    %v634 = vunpack.c.l.b16 %v618
    %v635 = vunpack.c.l.b16 %v619
    %v636 = vunpack.c.l.b16 %v620
    %v637 = vunpack.c.l.b16 %v621
    %v638 = vunpack.c.l.b16 %v622
    %v639 = vunpack.c.l.b16 %v623
    %v640 = vsel %vm329, %v633, %v632
    %v641 = vsel %vm331, %v634, %v640
    %v642 = vsel %vm333, %v635, %v641
    %v643 = vsel %vm335, %v636, %v642
    %v644 = vsel %vm337, %v637, %v643
    %v645 = vsel %vm339, %v638, %v644
    %v646 = vsel %vm341, %v639, %v645
    %v647 = vpack.c.b16 %v646, %v646
    %648 = vrot.lane.b32.xlu0 %v647, 64
    %v649 = vpop.permute.xlu0 %648
    %v651 = vsel %vm356, %v649, 0
    %653 = vmatprep.subr.bf16.mxu0 0
    %654 = vmatpush1.bf16.msra.mxu0 %v352
    %655 = vmatprep.subr.bf16.mxu0 0
    %656 = vmatpush1.bf16.msra.mxu0 %v353
    %657 = vmatprep.subr.bf16.mxu0 0
    %658 = vmatpush1.bf16.msra.mxu0 0
    %659 = vmatprep.subr.bf16.mxu0 0
    %660 = vmatpush1.bf16.msra.mxu0 0
    %661 = vmatprep.subr.bf16.mxu0 0
    %662 = vmatpush1.bf16.msra.mxu0 0
    %663 = vmatprep.subr.bf16.mxu0 0
    %664 = vmatpush1.bf16.msra.mxu0 0
    %665 = vmatprep.subr.bf16.mxu0 0
    %666 = vmatpush1.bf16.msra.mxu0 0
    %667 = vmatprep.subr.bf16.mxu0 0
    %668 = vmatpush1.bf16.msra.mxu0 0
    %669 = vmatprep.subr.bf16.mxu0 0
    %670 = vmatpush1.bf16.msra.mxu0 0
    %671 = vmatprep.subr.bf16.mxu0 0
    %672 = vmatpush1.bf16.msra.mxu0 0
    %673 = vmatprep.subr.bf16.mxu0 0
    %674 = vmatpush1.bf16.msra.mxu0 0
    %675 = vmatprep.subr.bf16.mxu0 0
    %676 = vmatpush1.bf16.msra.mxu0 0
    %677 = vmatprep.subr.bf16.mxu0 0
    %678 = vmatpush1.bf16.msra.mxu0 0
    %679 = vmatprep.subr.bf16.mxu0 0
    %680 = vmatpush1.bf16.msra.mxu0 0
    %681 = vmatprep.subr.bf16.mxu0 0
    %682 = vmatpush1.bf16.msra.mxu0 0
    %683 = vmatprep.subr.bf16.mxu0 0
    %684 = vmatpush1.bf16.msra.mxu0 0
    %685 = vmatprep.mubr.bf16.mxu0 0
    %686 = vmatmul.mubr.bf16.gmra.mrb[0].mxu0 %v651
    %v687 = vpop.f32.mrb[0].mxu0
    %v688 = vadd.f32 0.0, %v687
    %v689 = vpop.f32.mrb[0].mxu0
    %v690 = vpop.f32.mrb[0].mxu0
    %v691 = vpop.f32.mrb[0].mxu0
    %692 = vdwg.mxu0
    %v694 = vsel %vm418, %v550, 0
    %696 = vmatprep.subr.bf16.mxu0 0
    %697 = vmatpush1.bf16.msra.mxu0 %v412
    %698 = vmatprep.subr.bf16.mxu0 0
    %699 = vmatpush1.bf16.msra.mxu0 %v413
    %700 = vmatprep.subr.bf16.mxu0 0
    %701 = vmatpush1.bf16.msra.mxu0 %v414
    %702 = vmatprep.subr.bf16.mxu0 0
    %703 = vmatpush1.bf16.msra.mxu0 0
    %704 = vmatprep.subr.bf16.mxu0 0
    %705 = vmatpush1.bf16.msra.mxu0 0
    %706 = vmatprep.subr.bf16.mxu0 0
    %707 = vmatpush1.bf16.msra.mxu0 0
    %708 = vmatprep.subr.bf16.mxu0 0
    %709 = vmatpush1.bf16.msra.mxu0 0
    %710 = vmatprep.subr.bf16.mxu0 0
    %711 = vmatpush1.bf16.msra.mxu0 0
    %712 = vmatprep.subr.bf16.mxu0 0
    %713 = vmatpush1.bf16.msra.mxu0 0
    %714 = vmatprep.subr.bf16.mxu0 0
    %715 = vmatpush1.bf16.msra.mxu0 0
    %716 = vmatprep.subr.bf16.mxu0 0
    %717 = vmatpush1.bf16.msra.mxu0 0
    %718 = vmatprep.subr.bf16.mxu0 0
    %719 = vmatpush1.bf16.msra.mxu0 0
    %720 = vmatprep.subr.bf16.mxu0 0
    %721 = vmatpush1.bf16.msra.mxu0 0
    %722 = vmatprep.subr.bf16.mxu0 0
    %723 = vmatpush1.bf16.msra.mxu0 0
    %724 = vmatprep.subr.bf16.mxu0 0
    %725 = vmatpush1.bf16.msra.mxu0 0
    %726 = vmatprep.subr.bf16.mxu0 0
    %727 = vmatpush1.bf16.msra.mxu0 0
    %728 = vmatprep.mubr.bf16.mxu0 0
    %729 = vmatmul.mubr.bf16.gmra.mrb[0].mxu0 %v694
    %v730 = vpop.f32.mrb[0].mxu0
    %v731 = vadd.f32 %v688, %v730
    %v732 = vpop.f32.mrb[0].mxu0
    %v733 = vpop.f32.mrb[0].mxu0
    %v734 = vpop.f32.mrb[0].mxu0
    %735 = vdwg.mxu0
    %v736 = vpack.c.bf16 %v542, %v542
    %738 = vrot.lane.b32.xlu0 %v736, 64
    %v739 = vpop.permute.xlu0 %738
    %v741 = vsel %vm356, %v739, 0
    %743 = vmatprep.subr.bf16.mxu0 0
    %744 = vmatpush1.bf16.msra.mxu0 %v470
    %745 = vmatprep.subr.bf16.mxu0 0
    %746 = vmatpush1.bf16.msra.mxu0 %v471
    %747 = vmatprep.subr.bf16.mxu0 0
    %748 = vmatpush1.bf16.msra.mxu0 0
    %749 = vmatprep.subr.bf16.mxu0 0
    %750 = vmatpush1.bf16.msra.mxu0 0
    %751 = vmatprep.subr.bf16.mxu0 0
    %752 = vmatpush1.bf16.msra.mxu0 0
    %753 = vmatprep.subr.bf16.mxu0 0
    %754 = vmatpush1.bf16.msra.mxu0 0
    %755 = vmatprep.subr.bf16.mxu0 0
    %756 = vmatpush1.bf16.msra.mxu0 0
    %757 = vmatprep.subr.bf16.mxu0 0
    %758 = vmatpush1.bf16.msra.mxu0 0
    %759 = vmatprep.subr.bf16.mxu0 0
    %760 = vmatpush1.bf16.msra.mxu0 0
    %761 = vmatprep.subr.bf16.mxu0 0
    %762 = vmatpush1.bf16.msra.mxu0 0
    %763 = vmatprep.subr.bf16.mxu0 0
    %764 = vmatpush1.bf16.msra.mxu0 0
    %765 = vmatprep.subr.bf16.mxu0 0
    %766 = vmatpush1.bf16.msra.mxu0 0
    %767 = vmatprep.subr.bf16.mxu0 0
    %768 = vmatpush1.bf16.msra.mxu0 0
    %769 = vmatprep.subr.bf16.mxu0 0
    %770 = vmatpush1.bf16.msra.mxu0 0
    %771 = vmatprep.subr.bf16.mxu0 0
    %772 = vmatpush1.bf16.msra.mxu0 0
    %773 = vmatprep.subr.bf16.mxu0 0
    %774 = vmatpush1.bf16.msra.mxu0 0
    %775 = vmatprep.mubr.bf16.mxu0 0
    %776 = vmatmul.mubr.bf16.gmra.mrb[0].mxu0 %v741
    %v777 = vpop.f32.mrb[0].mxu0
    %v778 = vadd.f32 0.0, %v777
    %v779 = vpop.f32.mrb[0].mxu0
    %v780 = vpop.f32.mrb[0].mxu0
    %v781 = vpop.f32.mrb[0].mxu0
    %782 = vdwg.mxu0
    %v783 = vadd.f32 %v731, %v778
    %v784 = vadd.f32 %v783, %v165
    %v785 = vxor.u32 %v784, 2147483648
    %v786 = vmul.f32 %v785, 1.442695
    %v787 = vpow.pop %v786
    %v788 = vadd.f32 %v787, 1.0
    %v789 = vrcp.pop %v788
    %v790 = vmul.f32 1.0, %v789
    %v791 = vtanh.pop %v784
    %v792 = vmul.f32 %v790, %v536
    %794 = vrot.lane.b32.xlu0 %v791, 32
    %v795 = vpop.permute.xlu0 %794
    %v797 = vmul.f32 %v790, %v795
    %799 = vrot.lane.b32.xlu0 %v797, 32
    %v800 = vpop.permute.xlu0 %799
    %v802 = vadd.f32 %v792, %v800
    %v803 = vtanh.pop %v802
    %805 = vrot.lane.b32.xlu0 %v803, 32
    %v806 = vpop.permute.xlu0 %805
    %v808 = vmul.f32 %v790, %v806
    %810 = vrot.lane.b32.xlu0 %v808, 64
    %v811 = vpop.permute.xlu0 %810
    %s813 = scalar_lea.vmem [#allocation2], 8
    %814 = vst.msk [vmem:[%s813] sm:$0xff] %vm356, %v811
    %s815 = scalar_lea.vmem %s1, 16
    %v816 = vld [vmem:[%s815] sm:$0xff]
    %v817 = vpack.c.bf16 %v816, %v816
    %v818 = vadd.f32 %v808, %v199
    %v819 = vadd.f32 %v808, %v206
    %v820 = vadd.f32 %v808, %v213
    %v821 = vadd.f32 %v808, %v220
    %v822 = vadd.f32 %v808, %v227
    %v823 = vadd.f32 %v808, %v234
    %v824 = vadd.f32 %v808, %v241
    %v825 = vadd.f32 %v808, %v248
    %v826 = vsel %vm559, %v818, -inf
    %v827 = vrot.slane %v826, 4
    %v828 = vmax.f32 %v826, %v827
    %v829 = vrot.slane %v828, 2
    %v830 = vmax.f32 %v828, %v829
    %v831 = vrot.slane %v830, 1
    %v832 = vmax.f32 %v830, %v831
    %v833 = vsel %vm559, %v819, -inf
    %v834 = vrot.slane %v833, 4
    %v835 = vmax.f32 %v833, %v834
    %v836 = vrot.slane %v835, 2
    %v837 = vmax.f32 %v835, %v836
    %v838 = vrot.slane %v837, 1
    %v839 = vmax.f32 %v837, %v838
    %v840 = vsel %vm559, %v820, -inf
    %v841 = vrot.slane %v840, 4
    %v842 = vmax.f32 %v840, %v841
    %v843 = vrot.slane %v842, 2
    %v844 = vmax.f32 %v842, %v843
    %v845 = vrot.slane %v844, 1
    %v846 = vmax.f32 %v844, %v845
    %v847 = vsel %vm559, %v821, -inf
    %v848 = vrot.slane %v847, 4
    %v849 = vmax.f32 %v847, %v848
    %v850 = vrot.slane %v849, 2
    %v851 = vmax.f32 %v849, %v850
    %v852 = vrot.slane %v851, 1
    %v853 = vmax.f32 %v851, %v852
    %v854 = vsel %vm559, %v822, -inf
    %v855 = vrot.slane %v854, 4
    %v856 = vmax.f32 %v854, %v855
    %v857 = vrot.slane %v856, 2
    %v858 = vmax.f32 %v856, %v857
    %v859 = vrot.slane %v858, 1
    %v860 = vmax.f32 %v858, %v859
    %v861 = vsel %vm559, %v823, -inf
    %v862 = vrot.slane %v861, 4
    %v863 = vmax.f32 %v861, %v862
    %v864 = vrot.slane %v863, 2
    %v865 = vmax.f32 %v863, %v864
    %v866 = vrot.slane %v865, 1
    %v867 = vmax.f32 %v865, %v866
    %v868 = vsel %vm559, %v824, -inf
    %v869 = vrot.slane %v868, 4
    %v870 = vmax.f32 %v868, %v869
    %v871 = vrot.slane %v870, 2
    %v872 = vmax.f32 %v870, %v871
    %v873 = vrot.slane %v872, 1
    %v874 = vmax.f32 %v872, %v873
    %v875 = vsel %vm559, %v825, -inf
    %v876 = vrot.slane %v875, 4
    %v877 = vmax.f32 %v875, %v876
    %v878 = vrot.slane %v877, 2
    %v879 = vmax.f32 %v877, %v878
    %v880 = vrot.slane %v879, 1
    %v881 = vmax.f32 %v879, %v880
    %v882 = vpack.c.bf16 %v832, %v832
    %v883 = vpack.c.bf16 %v839, %v839
    %v884 = vpack.c.bf16 %v846, %v846
    %v885 = vpack.c.bf16 %v853, %v853
    %v886 = vpack.c.bf16 %v860, %v860
    %v887 = vpack.c.bf16 %v867, %v867
    %v888 = vpack.c.bf16 %v874, %v874
    %v889 = vpack.c.bf16 %v881, %v881
    %v898 = vunpack.c.l.b16 %v882
    %v899 = vunpack.c.l.b16 %v883
    %v900 = vunpack.c.l.b16 %v884
    %v901 = vunpack.c.l.b16 %v885
    %v902 = vunpack.c.l.b16 %v886
    %v903 = vunpack.c.l.b16 %v887
    %v904 = vunpack.c.l.b16 %v888
    %v905 = vunpack.c.l.b16 %v889
    %v906 = vsel %vm329, %v899, %v898
    %v907 = vsel %vm331, %v900, %v906
    %v908 = vsel %vm333, %v901, %v907
    %v909 = vsel %vm335, %v902, %v908
    %v910 = vsel %vm337, %v903, %v909
    %v911 = vsel %vm339, %v904, %v910
    %v912 = vsel %vm341, %v905, %v911
    %v913 = vpack.c.b16 %v912, %v912
    %914 = vrot.lane.b32.xlu0 %v913, 64
    %v915 = vpop.permute.xlu0 %914
    %v917 = vsel %vm356, %v915, 0
    %919 = vmatprep.subr.bf16.mxu0 0
    %920 = vmatpush1.bf16.msra.mxu0 %v352
    %921 = vmatprep.subr.bf16.mxu0 0
    %922 = vmatpush1.bf16.msra.mxu0 %v353
    %923 = vmatprep.subr.bf16.mxu0 0
    %924 = vmatpush1.bf16.msra.mxu0 0
    %925 = vmatprep.subr.bf16.mxu0 0
    %926 = vmatpush1.bf16.msra.mxu0 0
    %927 = vmatprep.subr.bf16.mxu0 0
    %928 = vmatpush1.bf16.msra.mxu0 0
    %929 = vmatprep.subr.bf16.mxu0 0
    %930 = vmatpush1.bf16.msra.mxu0 0
    %931 = vmatprep.subr.bf16.mxu0 0
    %932 = vmatpush1.bf16.msra.mxu0 0
    %933 = vmatprep.subr.bf16.mxu0 0
    %934 = vmatpush1.bf16.msra.mxu0 0
    %935 = vmatprep.subr.bf16.mxu0 0
    %936 = vmatpush1.bf16.msra.mxu0 0
    %937 = vmatprep.subr.bf16.mxu0 0
    %938 = vmatpush1.bf16.msra.mxu0 0
    %939 = vmatprep.subr.bf16.mxu0 0
    %940 = vmatpush1.bf16.msra.mxu0 0
    %941 = vmatprep.subr.bf16.mxu0 0
    %942 = vmatpush1.bf16.msra.mxu0 0
    %943 = vmatprep.subr.bf16.mxu0 0
    %944 = vmatpush1.bf16.msra.mxu0 0
    %945 = vmatprep.subr.bf16.mxu0 0
    %946 = vmatpush1.bf16.msra.mxu0 0
    %947 = vmatprep.subr.bf16.mxu0 0
    %948 = vmatpush1.bf16.msra.mxu0 0
    %949 = vmatprep.subr.bf16.mxu0 0
    %950 = vmatpush1.bf16.msra.mxu0 0
    %951 = vmatprep.mubr.bf16.mxu0 0
    %952 = vmatmul.mubr.bf16.gmra.mrb[0].mxu0 %v917
    %v953 = vpop.f32.mrb[0].mxu0
    %v954 = vadd.f32 0.0, %v953
    %v955 = vpop.f32.mrb[0].mxu0
    %v956 = vpop.f32.mrb[0].mxu0
    %v957 = vpop.f32.mrb[0].mxu0
    %958 = vdwg.mxu0
    %v960 = vsel %vm418, %v817, 0
    %962 = vmatprep.subr.bf16.mxu0 0
    %963 = vmatpush1.bf16.msra.mxu0 %v412
    %964 = vmatprep.subr.bf16.mxu0 0
    %965 = vmatpush1.bf16.msra.mxu0 %v413
    %966 = vmatprep.subr.bf16.mxu0 0
    %967 = vmatpush1.bf16.msra.mxu0 %v414
    %968 = vmatprep.subr.bf16.mxu0 0
    %969 = vmatpush1.bf16.msra.mxu0 0
    %970 = vmatprep.subr.bf16.mxu0 0
    %971 = vmatpush1.bf16.msra.mxu0 0
    %972 = vmatprep.subr.bf16.mxu0 0
    %973 = vmatpush1.bf16.msra.mxu0 0
    %974 = vmatprep.subr.bf16.mxu0 0
    %975 = vmatpush1.bf16.msra.mxu0 0
    %976 = vmatprep.subr.bf16.mxu0 0
    %977 = vmatpush1.bf16.msra.mxu0 0
    %978 = vmatprep.subr.bf16.mxu0 0
    %979 = vmatpush1.bf16.msra.mxu0 0
    %980 = vmatprep.subr.bf16.mxu0 0
    %981 = vmatpush1.bf16.msra.mxu0 0
    %982 = vmatprep.subr.bf16.mxu0 0
    %983 = vmatpush1.bf16.msra.mxu0 0
    %984 = vmatprep.subr.bf16.mxu0 0
    %985 = vmatpush1.bf16.msra.mxu0 0
    %986 = vmatprep.subr.bf16.mxu0 0
    %987 = vmatpush1.bf16.msra.mxu0 0
    %988 = vmatprep.subr.bf16.mxu0 0
    %989 = vmatpush1.bf16.msra.mxu0 0
    %990 = vmatprep.subr.bf16.mxu0 0
    %991 = vmatpush1.bf16.msra.mxu0 0
    %992 = vmatprep.subr.bf16.mxu0 0
    %993 = vmatpush1.bf16.msra.mxu0 0
    %994 = vmatprep.mubr.bf16.mxu0 0
    %995 = vmatmul.mubr.bf16.gmra.mrb[0].mxu0 %v960
    %v996 = vpop.f32.mrb[0].mxu0
    %v997 = vadd.f32 %v954, %v996
    %v998 = vpop.f32.mrb[0].mxu0
    %v999 = vpop.f32.mrb[0].mxu0
    %v1000 = vpop.f32.mrb[0].mxu0
    %1001 = vdwg.mxu0
    %v1002 = vpack.c.bf16 %v808, %v808
    %1004 = vrot.lane.b32.xlu0 %v1002, 64
    %v1005 = vpop.permute.xlu0 %1004
    %v1007 = vsel %vm356, %v1005, 0
    %1009 = vmatprep.subr.bf16.mxu0 0
    %1010 = vmatpush1.bf16.msra.mxu0 %v470
    %1011 = vmatprep.subr.bf16.mxu0 0
    %1012 = vmatpush1.bf16.msra.mxu0 %v471
    %1013 = vmatprep.subr.bf16.mxu0 0
    %1014 = vmatpush1.bf16.msra.mxu0 0
    %1015 = vmatprep.subr.bf16.mxu0 0
    %1016 = vmatpush1.bf16.msra.mxu0 0
    %1017 = vmatprep.subr.bf16.mxu0 0
    %1018 = vmatpush1.bf16.msra.mxu0 0
    %1019 = vmatprep.subr.bf16.mxu0 0
    %1020 = vmatpush1.bf16.msra.mxu0 0
    %1021 = vmatprep.subr.bf16.mxu0 0
    %1022 = vmatpush1.bf16.msra.mxu0 0
    %1023 = vmatprep.subr.bf16.mxu0 0
    %1024 = vmatpush1.bf16.msra.mxu0 0
    %1025 = vmatprep.subr.bf16.mxu0 0
    %1026 = vmatpush1.bf16.msra.mxu0 0
    %1027 = vmatprep.subr.bf16.mxu0 0
    %1028 = vmatpush1.bf16.msra.mxu0 0
    %1029 = vmatprep.subr.bf16.mxu0 0
    %1030 = vmatpush1.bf16.msra.mxu0 0
    %1031 = vmatprep.subr.bf16.mxu0 0
    %1032 = vmatpush1.bf16.msra.mxu0 0
    %1033 = vmatprep.subr.bf16.mxu0 0
    %1034 = vmatpush1.bf16.msra.mxu0 0
    %1035 = vmatprep.subr.bf16.mxu0 0
    %1036 = vmatpush1.bf16.msra.mxu0 0
    %1037 = vmatprep.subr.bf16.mxu0 0
    %1038 = vmatpush1.bf16.msra.mxu0 0
    %1039 = vmatprep.subr.bf16.mxu0 0
    %1040 = vmatpush1.bf16.msra.mxu0 0
    %1041 = vmatprep.mubr.bf16.mxu0 0
    %1042 = vmatmul.mubr.bf16.gmra.mrb[0].mxu0 %v1007
    %v1043 = vpop.f32.mrb[0].mxu0
    %v1044 = vadd.f32 0.0, %v1043
    %v1045 = vpop.f32.mrb[0].mxu0
    %v1046 = vpop.f32.mrb[0].mxu0
    %v1047 = vpop.f32.mrb[0].mxu0
    %1048 = vdwg.mxu0
    %v1049 = vadd.f32 %v997, %v1044
    %v1050 = vadd.f32 %v1049, %v165
    %v1051 = vxor.u32 %v1050, 2147483648
    %v1052 = vmul.f32 %v1051, 1.442695
    %v1053 = vpow.pop %v1052
    %v1054 = vadd.f32 %v1053, 1.0
    %v1055 = vrcp.pop %v1054
    %v1056 = vmul.f32 1.0, %v1055
    %v1057 = vtanh.pop %v1050
    %v1058 = vmul.f32 %v1056, %v802
    %1060 = vrot.lane.b32.xlu0 %v1057, 32
    %v1061 = vpop.permute.xlu0 %1060
    %v1063 = vmul.f32 %v1056, %v1061
    %1065 = vrot.lane.b32.xlu0 %v1063, 32
    %v1066 = vpop.permute.xlu0 %1065
    %v1068 = vadd.f32 %v1058, %v1066
    %v1069 = vtanh.pop %v1068
    %1071 = vrot.lane.b32.xlu0 %v1069, 32
    %v1072 = vpop.permute.xlu0 %1071
    %v1074 = vmul.f32 %v1056, %v1072
    %1076 = vrot.lane.b32.xlu0 %v1074, 64
    %v1077 = vpop.permute.xlu0 %1076
    %s1079 = scalar_lea.vmem [#allocation2], 16
    %1080 = vst.msk [vmem:[%s1079] sm:$0xff] %vm356, %v1077
    %v1081 = vld [vmem:[#allocation2] sm:$0xff]
    %v1082 = vld [vmem:[#allocation2 + $0x8] sm:$0xff]
    %v1083 = vld [vmem:[#allocation2 + $0x10] sm:$0xff]
    %v1084 = vld [vmem:[%s1] sm:$0xff]
    %v1085 = vld [vmem:[%s1 + $0x8] sm:$0xff]
    %v1086 = vld [vmem:[%s1 + $0x10] sm:$0xff]
    %v1087 = vpack.c.bf16 %v1082, %v1081
    %v1088 = vpack.c.bf16 %v1083, %v1083
    %v1089 = vpack.c.bf16 %v1085, %v1084
    %v1090 = vpack.c.bf16 %v1086, %v1086
    %v1097 = vunpack.c.l.b16 %v130
    %v1098 = vunpack.c.l.b16 %v131
    %v1099 = vunpack.c.l.b16 %v132
    %v1100 = vunpack.c.l.b16 %v133
    %v1101 = vunpack.c.l.b16 %v134
    %v1102 = vunpack.c.l.b16 %v135
    %v1103 = vpack.c.b16 %v1098, %v1097
    %v1104 = vpack.c.b16 %v1100, %v1099
    %v1105 = vpack.c.b16 %v1102, %v1101
    %v1110 = vsel %vm418, %v1089, 0
    %v1113 = vsel %vm418, %v1090, 0
    %1115 = vmatprep.subr.bf16.mxu0 0
    %1116 = vmatpush1.bf16.msra.mxu0 %v1103
    %1117 = vmatprep.subr.bf16.mxu0 0
    %1118 = vmatpush1.bf16.msra.mxu0 %v1104
    %1119 = vmatprep.subr.bf16.mxu0 0
    %1120 = vmatpush1.bf16.msra.mxu0 %v1105
    %1121 = vmatprep.subr.bf16.mxu0 0
    %1122 = vmatpush1.bf16.msra.mxu0 0
    %1123 = vmatprep.subr.bf16.mxu0 0
    %1124 = vmatpush1.bf16.msra.mxu0 0
    %1125 = vmatprep.subr.bf16.mxu0 0
    %1126 = vmatpush1.bf16.msra.mxu0 0
    %1127 = vmatprep.subr.bf16.mxu0 0
    %1128 = vmatpush1.bf16.msra.mxu0 0
    %1129 = vmatprep.subr.bf16.mxu0 0
    %1130 = vmatpush1.bf16.msra.mxu0 0
    %1131 = vmatprep.subr.bf16.mxu0 0
    %1132 = vmatpush1.bf16.msra.mxu0 0
    %1133 = vmatprep.subr.bf16.mxu0 0
    %1134 = vmatpush1.bf16.msra.mxu0 0
    %1135 = vmatprep.subr.bf16.mxu0 0
    %1136 = vmatpush1.bf16.msra.mxu0 0
    %1137 = vmatprep.subr.bf16.mxu0 0
    %1138 = vmatpush1.bf16.msra.mxu0 0
    %1139 = vmatprep.subr.bf16.mxu0 0
    %1140 = vmatpush1.bf16.msra.mxu0 0
    %1141 = vmatprep.subr.bf16.mxu0 0
    %1142 = vmatpush1.bf16.msra.mxu0 0
    %1143 = vmatprep.subr.bf16.mxu0 0
    %1144 = vmatpush1.bf16.msra.mxu0 0
    %1145 = vmatprep.subr.bf16.mxu0 0
    %1146 = vmatpush1.bf16.msra.mxu0 0
    %1147 = vmatprep.mubr.bf16.mxu0 0
    %1148 = vmatmul.mubr.bf16.gmra.mrb[0].mxu0 %v1110
    %v1149 = vpop.f32.mrb[0].mxu0
    %v1150 = vadd.f32 0.0, %v1149
    %v1151 = vpop.f32.mrb[0].mxu0
    %v1152 = vpop.f32.mrb[0].mxu0
    %v1153 = vadd.f32 0.0, %v1152
    %v1154 = vpop.f32.mrb[0].mxu0
    %1155 = vmatprep.mubr.bf16.mxu0 0
    %1156 = vmatmul.mubr.bf16.gmra.mrb[0].mxu0 %v1113
    %v1157 = vpop.f32.mrb[0].mxu0
    %v1158 = vadd.f32 0.0, %v1157
    %v1159 = vpop.f32.mrb[0].mxu0
    %v1160 = vpop.f32.mrb[0].mxu0
    %v1161 = vpop.f32.mrb[0].mxu0
    %1162 = vdwg.mxu0
    %v1167 = vunpack.c.l.b16 %v126
    %v1168 = vunpack.c.l.b16 %v127
    %v1169 = vunpack.c.l.b16 %v128
    %v1170 = vunpack.c.l.b16 %v129
    %v1171 = vpack.c.b16 %v1168, %v1167
    %v1172 = vpack.c.b16 %v1170, %v1169
    %v1176 = vsel %vm356, %v1087, 0
    %v1179 = vsel %vm356, %v1088, 0
    %1181 = vmatprep.subr.bf16.mxu0 0
    %1182 = vmatpush1.bf16.msra.mxu0 %v1171
    %1183 = vmatprep.subr.bf16.mxu0 0
    %1184 = vmatpush1.bf16.msra.mxu0 %v1172
    %1185 = vmatprep.subr.bf16.mxu0 0
    %1186 = vmatpush1.bf16.msra.mxu0 0
    %1187 = vmatprep.subr.bf16.mxu0 0
    %1188 = vmatpush1.bf16.msra.mxu0 0
    %1189 = vmatprep.subr.bf16.mxu0 0
    %1190 = vmatpush1.bf16.msra.mxu0 0
    %1191 = vmatprep.subr.bf16.mxu0 0
    %1192 = vmatpush1.bf16.msra.mxu0 0
    %1193 = vmatprep.subr.bf16.mxu0 0
    %1194 = vmatpush1.bf16.msra.mxu0 0
    %1195 = vmatprep.subr.bf16.mxu0 0
    %1196 = vmatpush1.bf16.msra.mxu0 0
    %1197 = vmatprep.subr.bf16.mxu0 0
    %1198 = vmatpush1.bf16.msra.mxu0 0
    %1199 = vmatprep.subr.bf16.mxu0 0
    %1200 = vmatpush1.bf16.msra.mxu0 0
    %1201 = vmatprep.subr.bf16.mxu0 0
    %1202 = vmatpush1.bf16.msra.mxu0 0
    %1203 = vmatprep.subr.bf16.mxu0 0
    %1204 = vmatpush1.bf16.msra.mxu0 0
    %1205 = vmatprep.subr.bf16.mxu0 0
    %1206 = vmatpush1.bf16.msra.mxu0 0
    %1207 = vmatprep.subr.bf16.mxu0 0
    %1208 = vmatpush1.bf16.msra.mxu0 0
    %1209 = vmatprep.subr.bf16.mxu0 0
    %1210 = vmatpush1.bf16.msra.mxu0 0
    %1211 = vmatprep.subr.bf16.mxu0 0
    %1212 = vmatpush1.bf16.msra.mxu0 0
    %1213 = vmatprep.mubr.bf16.mxu0 0
    %1214 = vmatmul.mubr.bf16.gmra.mrb[0].mxu0 %v1176
    %v1215 = vpop.f32.mrb[0].mxu0
    %v1216 = vadd.f32 %v1150, %v1215
    %v1217 = vpop.f32.mrb[0].mxu0
    %v1218 = vpop.f32.mrb[0].mxu0
    %v1219 = vadd.f32 %v1153, %v1218
    %v1220 = vpop.f32.mrb[0].mxu0
    %1221 = vmatprep.mubr.bf16.mxu0 0
    %1222 = vmatmul.mubr.bf16.gmra.mrb[0].mxu0 %v1179
    %v1223 = vpop.f32.mrb[0].mxu0
    %v1224 = vadd.f32 %v1158, %v1223
    %v1225 = vpop.f32.mrb[0].mxu0
    %v1226 = vpop.f32.mrb[0].mxu0
    %v1227 = vpop.f32.mrb[0].mxu0
    %1228 = vdwg.mxu0
    %v1229 = vld [vmem:[%s8] sm:$0x1]
    %v1231 = vlaneseq
    %v1232 = vshrl.u32 %v1231, 7
    %v1233 = vsub.s32 0, %v1232
    %v1234 = vrot.slane %v1229, %v1233
    %v1236 = vadd.f32 %v1216, %v1234
    %v1237 = vadd.f32 %v1219, %v1234
    %v1238 = vadd.f32 %v1224, %v1234
    %vm1239 = vcmp.gt.f32.partialorder %v1236, 0.0
    %vm1240 = vcmp.gt.f32.partialorder %v1237, 0.0
    %vm1241 = vcmp.gt.f32.partialorder %v1238, 0.0
    %v1242 = vmul.f32 %v1236, 0.01
    %v1243 = vmul.f32 %v1237, 0.01
    %v1244 = vmul.f32 %v1238, 0.01
    %v1245 = vsel %vm1239, %v1236, %v1242
    %v1246 = vsel %vm1240, %v1237, %v1243
    %v1247 = vsel %vm1241, %v1238, %v1244
    %v1248 = vpack.c.bf16 %v1246, %v1245
    %v1249 = vpack.c.bf16 %v1247, %v1247
    %v1250 = vld [vmem:[%s10] sm:$0x1]
    %v1252 = vlaneseq
    %v1253 = vshrl.u32 %v1252, 7
    %v1254 = vsub.s32 0, %v1253
    %v1255 = vrot.slane %v1250, %v1254
    %v1265 = vunpack.c.l.b16 %v136
    %v1266 = vunpack.c.l.b16 %v137
    %v1267 = vunpack.c.l.b16 %v138
    %v1268 = vunpack.c.l.b16 %v139
    %v1269 = vunpack.c.l.b16 %v140
    %v1270 = vunpack.c.l.b16 %v141
    %v1271 = vunpack.c.l.b16 %v142
    %v1272 = vunpack.c.l.b16 %v143
    %v1273 = vpack.c.b16 %v1266, %v1265
    %v1274 = vpack.c.b16 %v1268, %v1267
    %v1275 = vpack.c.b16 %v1270, %v1269
    %v1276 = vpack.c.b16 %v1272, %v1271
    %vm1281 = vcmask 523264
    %v1283 = vsel %vm1281, %v1248, 0
    %v1286 = vsel %vm1281, %v1249, 0
    %1288 = vmatprep.subr.bf16.mxu0 0
    %1289 = vmatpush1.bf16.msra.mxu0 %v1273
    %1290 = vmatprep.subr.bf16.mxu0 0
    %1291 = vmatpush1.bf16.msra.mxu0 %v1274
    %1292 = vmatprep.subr.bf16.mxu0 0
    %1293 = vmatpush1.bf16.msra.mxu0 %v1275
    %1294 = vmatprep.subr.bf16.mxu0 0
    %1295 = vmatpush1.bf16.msra.mxu0 %v1276
    %1296 = vmatprep.subr.bf16.mxu0 0
    %1297 = vmatpush1.bf16.msra.mxu0 0
    %1298 = vmatprep.subr.bf16.mxu0 0
    %1299 = vmatpush1.bf16.msra.mxu0 0
    %1300 = vmatprep.subr.bf16.mxu0 0
    %1301 = vmatpush1.bf16.msra.mxu0 0
    %1302 = vmatprep.subr.bf16.mxu0 0
    %1303 = vmatpush1.bf16.msra.mxu0 0
    %1304 = vmatprep.subr.bf16.mxu0 0
    %1305 = vmatpush1.bf16.msra.mxu0 0
    %1306 = vmatprep.subr.bf16.mxu0 0
    %1307 = vmatpush1.bf16.msra.mxu0 0
    %1308 = vmatprep.subr.bf16.mxu0 0
    %1309 = vmatpush1.bf16.msra.mxu0 0
    %1310 = vmatprep.subr.bf16.mxu0 0
    %1311 = vmatpush1.bf16.msra.mxu0 0
    %1312 = vmatprep.subr.bf16.mxu0 0
    %1313 = vmatpush1.bf16.msra.mxu0 0
    %1314 = vmatprep.subr.bf16.mxu0 0
    %1315 = vmatpush1.bf16.msra.mxu0 0
    %1316 = vmatprep.subr.bf16.mxu0 0
    %1317 = vmatpush1.bf16.msra.mxu0 0
    %1318 = vmatprep.subr.bf16.mxu0 0
    %1319 = vmatpush1.bf16.msra.mxu0 0
    %1320 = vmatprep.mubr.bf16.mxu0 0
    %1321 = vmatmul.mubr.bf16.gmra.mrb[0].mxu0 %v1283
    %v1322 = vpop.f32.mrb[0].mxu0
    %v1323 = vadd.f32 %v1255, %v1322
    %v1324 = vpop.f32.mrb[0].mxu0
    %v1325 = vpop.f32.mrb[0].mxu0
    %v1326 = vadd.f32 %v1255, %v1325
    %v1327 = vpop.f32.mrb[0].mxu0
    %1328 = vmatprep.mubr.bf16.mxu0 0
    %1329 = vmatmul.mubr.bf16.gmra.mrb[0].mxu0 %v1286
    %v1330 = vpop.f32.mrb[0].mxu0
    %v1331 = vadd.f32 %v1255, %v1330
    %v1332 = vpop.f32.mrb[0].mxu0
    %v1333 = vpop.f32.mrb[0].mxu0
    %v1334 = vpop.f32.mrb[0].mxu0
    %1335 = vdwg.mxu0
    %vm1336 = vcmp.gt.f32.partialorder %v1323, 0.0
    %vm1337 = vcmp.gt.f32.partialorder %v1326, 0.0
    %vm1338 = vcmp.gt.f32.partialorder %v1331, 0.0
    %v1339 = vmul.f32 %v1323, 0.01
    %v1340 = vmul.f32 %v1326, 0.01
    %v1341 = vmul.f32 %v1331, 0.01
    %v1342 = vsel %vm1336, %v1323, %v1339
    %v1343 = vsel %vm1337, %v1326, %v1340
    %v1344 = vsel %vm1338, %v1331, %v1341
    %v1345 = vpack.c.bf16 %v1343, %v1342
    %v1346 = vpack.c.bf16 %v1344, %v1344
    %v1347 = vld [vmem:[%s12] sm:$0x1]
    %v1349 = vlaneseq
    %v1350 = vshrl.u32 %v1349, 7
    %v1351 = vsub.s32 0, %v1350
    %v1352 = vrot.slane %v1347, %v1351
    %v1370 = vunpack.c.l.b16 %v144
    %v1371 = vunpack.c.l.b16 %v145
    %v1372 = vunpack.c.l.b16 %v146
    %v1373 = vunpack.c.l.b16 %v147
    %v1374 = vunpack.c.l.b16 %v148
    %v1375 = vunpack.c.l.b16 %v149
    %v1376 = vunpack.c.l.b16 %v150
    %v1377 = vunpack.c.l.b16 %v151
    %v1378 = vunpack.c.l.b16 %v152
    %v1379 = vunpack.c.l.b16 %v153
    %v1380 = vunpack.c.l.b16 %v154
    %v1381 = vunpack.c.l.b16 %v155
    %v1382 = vunpack.c.l.b16 %v156
    %v1383 = vunpack.c.l.b16 %v157
    %v1384 = vunpack.c.l.b16 %v158
    %v1385 = vunpack.c.l.b16 %v159
    %v1386 = vpack.c.b16 %v1371, %v1370
    %v1387 = vpack.c.b16 %v1373, %v1372
    %v1388 = vpack.c.b16 %v1375, %v1374
    %v1389 = vpack.c.b16 %v1377, %v1376
    %v1390 = vpack.c.b16 %v1379, %v1378
    %v1391 = vpack.c.b16 %v1381, %v1380
    %v1392 = vpack.c.b16 %v1383, %v1382
    %v1393 = vpack.c.b16 %v1385, %v1384
    %1402 = vmatprep.subr.bf16.mxu0 0
    %1403 = vmatpush1.bf16.msra.mxu0 %v1386
    %1404 = vmatprep.subr.bf16.mxu0 0
    %1405 = vmatpush1.bf16.msra.mxu0 %v1387
    %1406 = vmatprep.subr.bf16.mxu0 0
    %1407 = vmatpush1.bf16.msra.mxu0 %v1388
    %1408 = vmatprep.subr.bf16.mxu0 0
    %1409 = vmatpush1.bf16.msra.mxu0 %v1389
    %1410 = vmatprep.subr.bf16.mxu0 0
    %1411 = vmatpush1.bf16.msra.mxu0 %v1390
    %1412 = vmatprep.subr.bf16.mxu0 0
    %1413 = vmatpush1.bf16.msra.mxu0 %v1391
    %1414 = vmatprep.subr.bf16.mxu0 0
    %1415 = vmatpush1.bf16.msra.mxu0 %v1392
    %1416 = vmatprep.subr.bf16.mxu0 0
    %1417 = vmatpush1.bf16.msra.mxu0 %v1393
    %1418 = vmatprep.subr.bf16.mxu0 0
    %1419 = vmatpush1.bf16.msra.mxu0 0
    %1420 = vmatprep.subr.bf16.mxu0 0
    %1421 = vmatpush1.bf16.msra.mxu0 0
    %1422 = vmatprep.subr.bf16.mxu0 0
    %1423 = vmatpush1.bf16.msra.mxu0 0
    %1424 = vmatprep.subr.bf16.mxu0 0
    %1425 = vmatpush1.bf16.msra.mxu0 0
    %1426 = vmatprep.subr.bf16.mxu0 0
    %1427 = vmatpush1.bf16.msra.mxu0 0
    %1428 = vmatprep.subr.bf16.mxu0 0
    %1429 = vmatpush1.bf16.msra.mxu0 0
    %1430 = vmatprep.subr.bf16.mxu0 0
    %1431 = vmatpush1.bf16.msra.mxu0 0
    %1432 = vmatprep.subr.bf16.mxu0 0
    %1433 = vmatpush1.bf16.msra.mxu0 0
    %1434 = vmatprep.mubr.bf16.mxu0 0
    %1435 = vmatmul.mubr.bf16.gmra.mrb[0].mxu0 %v1345
    %v1436 = vpop.f32.mrb[0].mxu0
    %v1437 = vadd.f32 %v1352, %v1436
    %v1438 = vpop.f32.mrb[0].mxu0
    %v1439 = vpop.f32.mrb[0].mxu0
    %v1440 = vadd.f32 %v1352, %v1439
    %v1441 = vpop.f32.mrb[0].mxu0
    %1442 = vmatprep.mubr.bf16.mxu0 0
    %1443 = vmatmul.mubr.bf16.gmra.mrb[0].mxu0 %v1346
    %v1444 = vpop.f32.mrb[0].mxu0
    %v1445 = vadd.f32 %v1352, %v1444
    %v1446 = vpop.f32.mrb[0].mxu0
    %v1447 = vpop.f32.mrb[0].mxu0
    %v1448 = vpop.f32.mrb[0].mxu0
    %1449 = vdwg.mxu0
    %v1450 = vxor.u32 %v1437, 2147483648
    %v1451 = vxor.u32 %v1440, 2147483648
    %v1452 = vxor.u32 %v1445, 2147483648
    %v1453 = vmul.f32 %v1450, 1.442695
    %v1454 = vpow.pop %v1453
    %v1455 = vmul.f32 %v1451, 1.442695
    %v1456 = vpow.pop %v1455
    %v1457 = vmul.f32 %v1452, 1.442695
    %v1458 = vpow.pop %v1457
    %v1459 = vadd.f32 %v1454, 1.0
    %v1460 = vadd.f32 %v1456, 1.0
    %v1461 = vadd.f32 %v1458, 1.0
    %v1462 = vrcp.pop %v1459
    %v1463 = vmul.f32 1.0, %v1462
    %v1464 = vrcp.pop %v1460
    %v1465 = vmul.f32 1.0, %v1464
    %v1466 = vrcp.pop %v1461
    %v1467 = vmul.f32 1.0, %v1466
    %v1468 = vsub.f32 %v1463, %v1084
    %v1469 = vsub.f32 %v1465, %v1085
    %v1470 = vsub.f32 %v1467, %v1086
    %1474 = vrot.lane.b32.xlu0 %v1084, 112
    %v1475 = vpop.permute.xlu0 %1474
    %1476 = vrot.lane.b32.xlu0 %v1085, 112
    %v1477 = vpop.permute.xlu0 %1476
    %1478 = vrot.lane.b32.xlu0 %v1086, 112
    %v1479 = vpop.permute.xlu0 %1478
    %v1483 = vsub.f32 %v1468, %v1475
    %v1484 = vsub.f32 %v1469, %v1477
    %v1485 = vsub.f32 %v1470, %v1479
    %1489 = vrot.lane.b32.xlu0 %v1468, 16
    %v1490 = vpop.permute.xlu0 %1489
    %1491 = vrot.lane.b32.xlu0 %v1469, 16
    %v1492 = vpop.permute.xlu0 %1491
    %1493 = vrot.lane.b32.xlu0 %v1470, 16
    %v1494 = vpop.permute.xlu0 %1493
    %1501 = vrot.lane.b32.xlu0 %v1483, 32
    %v1502 = vpop.permute.xlu0 %1501
    %1503 = vrot.lane.b32.xlu0 %v1484, 32
    %v1504 = vpop.permute.xlu0 %1503
    %1505 = vrot.lane.b32.xlu0 %v1485, 32
    %v1506 = vpop.permute.xlu0 %1505
    %vm1510 = vcmask 130048
    %v1511 = vsel %vm1510, %v1463, %v1490
    %v1512 = vsel %vm1510, %v1465, %v1492
    %v1513 = vsel %vm1510, %v1467, %v1494
    %v1514 = vsel %vm356, %v1511, %v1502
    %v1515 = vsel %vm356, %v1512, %v1504
    %v1516 = vsel %vm356, %v1513, %v1506
    %1517 = vst.msk [vmem:[#allocation12] sm:$0xff] %vm418, %v1514
    %1518 = vst.msk [vmem:[#allocation12 + $0x8] sm:$0xff] %vm418, %v1515
    %1519 = vst.msk [vmem:[#allocation12 + $0x10] sm:$0xff] %vm418, %v1516
    %v1520 = vpack.c.bf16 %v1467, %v1467
    %v1521 = vpack.c.bf16 %v1470, %v1470
    %v1523 = vsel %vm1510, %v1521, 0
    %1525 = vmatprep.subr.bf16.mxu0 0
    %1526 = vmatpush1.bf16.msra.mxu0 %v413
    %1527 = vmatprep.subr.bf16.mxu0 0
    %1528 = vmatpush1.bf16.msra.mxu0 0
    %1529 = vmatprep.subr.bf16.mxu0 0
    %1530 = vmatpush1.bf16.msra.mxu0 0
    %1531 = vmatprep.subr.bf16.mxu0 0
    %1532 = vmatpush1.bf16.msra.mxu0 0
    %1533 = vmatprep.subr.bf16.mxu0 0
    %1534 = vmatpush1.bf16.msra.mxu0 0
    %1535 = vmatprep.subr.bf16.mxu0 0
    %1536 = vmatpush1.bf16.msra.mxu0 0
    %1537 = vmatprep.subr.bf16.mxu0 0
    %1538 = vmatpush1.bf16.msra.mxu0 0
    %1539 = vmatprep.subr.bf16.mxu0 0
    %1540 = vmatpush1.bf16.msra.mxu0 0
    %1541 = vmatprep.subr.bf16.mxu0 0
    %1542 = vmatpush1.bf16.msra.mxu0 0
    %1543 = vmatprep.subr.bf16.mxu0 0
    %1544 = vmatpush1.bf16.msra.mxu0 0
    %1545 = vmatprep.subr.bf16.mxu0 0
    %1546 = vmatpush1.bf16.msra.mxu0 0
    %1547 = vmatprep.subr.bf16.mxu0 0
    %1548 = vmatpush1.bf16.msra.mxu0 0
    %1549 = vmatprep.subr.bf16.mxu0 0
    %1550 = vmatpush1.bf16.msra.mxu0 0
    %1551 = vmatprep.subr.bf16.mxu0 0
    %1552 = vmatpush1.bf16.msra.mxu0 0
    %1553 = vmatprep.subr.bf16.mxu0 0
    %1554 = vmatpush1.bf16.msra.mxu0 0
    %1555 = vmatprep.subr.bf16.mxu0 0
    %1556 = vmatpush1.bf16.msra.mxu0 0
    %1557 = vmatprep.mubr.bf16.mxu0 0
    %1558 = vmatmul.mubr.bf16.gmra.mrb[0].mxu0 %v1523
    %v1559 = vpop.f32.mrb[0].mxu0
    %v1560 = vadd.f32 0.0, %v1559
    %v1561 = vpop.f32.mrb[0].mxu0
    %v1562 = vpop.f32.mrb[0].mxu0
    %v1563 = vpop.f32.mrb[0].mxu0
    %1564 = vdwg.mxu0
    %v1566 = vsel %vm1510, %v1520, 0
    %1568 = vmatprep.subr.bf16.mxu0 0
    %1569 = vmatpush1.bf16.msra.mxu0 %v412
    %1570 = vmatprep.subr.bf16.mxu0 0
    %1571 = vmatpush1.bf16.msra.mxu0 0
    %1572 = vmatprep.subr.bf16.mxu0 0
    %1573 = vmatpush1.bf16.msra.mxu0 0
    %1574 = vmatprep.subr.bf16.mxu0 0
    %1575 = vmatpush1.bf16.msra.mxu0 0
    %1576 = vmatprep.subr.bf16.mxu0 0
    %1577 = vmatpush1.bf16.msra.mxu0 0
    %1578 = vmatprep.subr.bf16.mxu0 0
    %1579 = vmatpush1.bf16.msra.mxu0 0
    %1580 = vmatprep.subr.bf16.mxu0 0
    %1581 = vmatpush1.bf16.msra.mxu0 0
    %1582 = vmatprep.subr.bf16.mxu0 0
    %1583 = vmatpush1.bf16.msra.mxu0 0
    %1584 = vmatprep.subr.bf16.mxu0 0
    %1585 = vmatpush1.bf16.msra.mxu0 0
    %1586 = vmatprep.subr.bf16.mxu0 0
    %1587 = vmatpush1.bf16.msra.mxu0 0
    %1588 = vmatprep.subr.bf16.mxu0 0
    %1589 = vmatpush1.bf16.msra.mxu0 0
    %1590 = vmatprep.subr.bf16.mxu0 0
    %1591 = vmatpush1.bf16.msra.mxu0 0
    %1592 = vmatprep.subr.bf16.mxu0 0
    %1593 = vmatpush1.bf16.msra.mxu0 0
    %1594 = vmatprep.subr.bf16.mxu0 0
    %1595 = vmatpush1.bf16.msra.mxu0 0
    %1596 = vmatprep.subr.bf16.mxu0 0
    %1597 = vmatpush1.bf16.msra.mxu0 0
    %1598 = vmatprep.subr.bf16.mxu0 0
    %1599 = vmatpush1.bf16.msra.mxu0 0
    %1600 = vmatprep.mubr.bf16.mxu0 0
    %1601 = vmatmul.mubr.bf16.gmra.mrb[0].mxu0 %v1566
    %v1602 = vpop.f32.mrb[0].mxu0
    %v1603 = vadd.f32 %v1560, %v1602
    %v1604 = vpop.f32.mrb[0].mxu0
    %v1605 = vpop.f32.mrb[0].mxu0
    %v1606 = vpop.f32.mrb[0].mxu0
    %1607 = vdwg.mxu0
    %v1608 = vpack.c.bf16 %v1485, %v1485
    %v1610 = vsel %vm1510, %v1608, 0
    %1612 = vmatprep.subr.bf16.mxu0 0
    %1613 = vmatpush1.bf16.msra.mxu0 %v414
    %1614 = vmatprep.subr.bf16.mxu0 0
    %1615 = vmatpush1.bf16.msra.mxu0 0
    %1616 = vmatprep.subr.bf16.mxu0 0
    %1617 = vmatpush1.bf16.msra.mxu0 0
    %1618 = vmatprep.subr.bf16.mxu0 0
    %1619 = vmatpush1.bf16.msra.mxu0 0
    %1620 = vmatprep.subr.bf16.mxu0 0
    %1621 = vmatpush1.bf16.msra.mxu0 0
    %1622 = vmatprep.subr.bf16.mxu0 0
    %1623 = vmatpush1.bf16.msra.mxu0 0
    %1624 = vmatprep.subr.bf16.mxu0 0
    %1625 = vmatpush1.bf16.msra.mxu0 0
    %1626 = vmatprep.subr.bf16.mxu0 0
    %1627 = vmatpush1.bf16.msra.mxu0 0
    %1628 = vmatprep.subr.bf16.mxu0 0
    %1629 = vmatpush1.bf16.msra.mxu0 0
    %1630 = vmatprep.subr.bf16.mxu0 0
    %1631 = vmatpush1.bf16.msra.mxu0 0
    %1632 = vmatprep.subr.bf16.mxu0 0
    %1633 = vmatpush1.bf16.msra.mxu0 0
    %1634 = vmatprep.subr.bf16.mxu0 0
    %1635 = vmatpush1.bf16.msra.mxu0 0
    %1636 = vmatprep.subr.bf16.mxu0 0
    %1637 = vmatpush1.bf16.msra.mxu0 0
    %1638 = vmatprep.subr.bf16.mxu0 0
    %1639 = vmatpush1.bf16.msra.mxu0 0
    %1640 = vmatprep.subr.bf16.mxu0 0
    %1641 = vmatpush1.bf16.msra.mxu0 0
    %1642 = vmatprep.subr.bf16.mxu0 0
    %1643 = vmatpush1.bf16.msra.mxu0 0
    %1644 = vmatprep.mubr.bf16.mxu0 0
    %1645 = vmatmul.mubr.bf16.gmra.mrb[0].mxu0 %v1610
    %v1646 = vpop.f32.mrb[0].mxu0
    %v1647 = vadd.f32 0.0, %v1646
    %v1648 = vpop.f32.mrb[0].mxu0
    %v1649 = vpop.f32.mrb[0].mxu0
    %v1650 = vpop.f32.mrb[0].mxu0
    %1651 = vdwg.mxu0
    %v1652 = vadd.f32 %v1603, %v1647
    %v1653 = vadd.f32 %v1074, %v199
    %v1654 = vadd.f32 %v1074, %v206
    %v1655 = vadd.f32 %v1074, %v213
    %v1656 = vadd.f32 %v1074, %v220
    %v1657 = vadd.f32 %v1074, %v227
    %v1658 = vadd.f32 %v1074, %v234
    %v1659 = vadd.f32 %v1074, %v241
    %v1660 = vadd.f32 %v1074, %v248
    %v1661 = vsel %vm559, %v1653, -inf
    %v1662 = vrot.slane %v1661, 4
    %v1663 = vmax.f32 %v1661, %v1662
    %v1664 = vrot.slane %v1663, 2
    %v1665 = vmax.f32 %v1663, %v1664
    %v1666 = vrot.slane %v1665, 1
    %v1667 = vmax.f32 %v1665, %v1666
    %v1668 = vsel %vm559, %v1654, -inf
    %v1669 = vrot.slane %v1668, 4
    %v1670 = vmax.f32 %v1668, %v1669
    %v1671 = vrot.slane %v1670, 2
    %v1672 = vmax.f32 %v1670, %v1671
    %v1673 = vrot.slane %v1672, 1
    %v1674 = vmax.f32 %v1672, %v1673
    %v1675 = vsel %vm559, %v1655, -inf
    %v1676 = vrot.slane %v1675, 4
    %v1677 = vmax.f32 %v1675, %v1676
    %v1678 = vrot.slane %v1677, 2
    %v1679 = vmax.f32 %v1677, %v1678
    %v1680 = vrot.slane %v1679, 1
    %v1681 = vmax.f32 %v1679, %v1680
    %v1682 = vsel %vm559, %v1656, -inf
    %v1683 = vrot.slane %v1682, 4
    %v1684 = vmax.f32 %v1682, %v1683
    %v1685 = vrot.slane %v1684, 2
    %v1686 = vmax.f32 %v1684, %v1685
    %v1687 = vrot.slane %v1686, 1
    %v1688 = vmax.f32 %v1686, %v1687
    %v1689 = vsel %vm559, %v1657, -inf
    %v1690 = vrot.slane %v1689, 4
    %v1691 = vmax.f32 %v1689, %v1690
    %v1692 = vrot.slane %v1691, 2
    %v1693 = vmax.f32 %v1691, %v1692
    %v1694 = vrot.slane %v1693, 1
    %v1695 = vmax.f32 %v1693, %v1694
    %v1696 = vsel %vm559, %v1658, -inf
    %v1697 = vrot.slane %v1696, 4
    %v1698 = vmax.f32 %v1696, %v1697
    %v1699 = vrot.slane %v1698, 2
    %v1700 = vmax.f32 %v1698, %v1699
    %v1701 = vrot.slane %v1700, 1
    %v1702 = vmax.f32 %v1700, %v1701
    %v1703 = vsel %vm559, %v1659, -inf
    %v1704 = vrot.slane %v1703, 4
    %v1705 = vmax.f32 %v1703, %v1704
    %v1706 = vrot.slane %v1705, 2
    %v1707 = vmax.f32 %v1705, %v1706
    %v1708 = vrot.slane %v1707, 1
    %v1709 = vmax.f32 %v1707, %v1708
    %v1710 = vsel %vm559, %v1660, -inf
    %v1711 = vrot.slane %v1710, 4
    %v1712 = vmax.f32 %v1710, %v1711
    %v1713 = vrot.slane %v1712, 2
    %v1714 = vmax.f32 %v1712, %v1713
    %v1715 = vrot.slane %v1714, 1
    %v1716 = vmax.f32 %v1714, %v1715
    %v1717 = vpack.c.bf16 %v1667, %v1667
    %v1718 = vpack.c.bf16 %v1674, %v1674
    %v1719 = vpack.c.bf16 %v1681, %v1681
    %v1720 = vpack.c.bf16 %v1688, %v1688
    %v1721 = vpack.c.bf16 %v1695, %v1695
    %v1722 = vpack.c.bf16 %v1702, %v1702
    %v1723 = vpack.c.bf16 %v1709, %v1709
    %v1724 = vpack.c.bf16 %v1716, %v1716
    %v1733 = vunpack.c.l.b16 %v1717
    %v1734 = vunpack.c.l.b16 %v1718
    %v1735 = vunpack.c.l.b16 %v1719
    %v1736 = vunpack.c.l.b16 %v1720
    %v1737 = vunpack.c.l.b16 %v1721
    %v1738 = vunpack.c.l.b16 %v1722
    %v1739 = vunpack.c.l.b16 %v1723
    %v1740 = vunpack.c.l.b16 %v1724
    %v1741 = vsel %vm329, %v1734, %v1733
    %v1742 = vsel %vm331, %v1735, %v1741
    %v1743 = vsel %vm333, %v1736, %v1742
    %v1744 = vsel %vm335, %v1737, %v1743
    %v1745 = vsel %vm337, %v1738, %v1744
    %v1746 = vsel %vm339, %v1739, %v1745
    %v1747 = vsel %vm341, %v1740, %v1746
    %v1748 = vpack.c.b16 %v1747, %v1747
    %1749 = vrot.lane.b32.xlu0 %v1748, 64
    %v1750 = vpop.permute.xlu0 %1749
    %v1752 = vsel %vm356, %v1750, 0
    %1754 = vmatprep.subr.bf16.mxu0 0
    %1755 = vmatpush1.bf16.msra.mxu0 %v352
    %1756 = vmatprep.subr.bf16.mxu0 0
    %1757 = vmatpush1.bf16.msra.mxu0 %v353
    %1758 = vmatprep.subr.bf16.mxu0 0
    %1759 = vmatpush1.bf16.msra.mxu0 0
    %1760 = vmatprep.subr.bf16.mxu0 0
    %1761 = vmatpush1.bf16.msra.mxu0 0
    %1762 = vmatprep.subr.bf16.mxu0 0
    %1763 = vmatpush1.bf16.msra.mxu0 0
    %1764 = vmatprep.subr.bf16.mxu0 0
    %1765 = vmatpush1.bf16.msra.mxu0 0
    %1766 = vmatprep.subr.bf16.mxu0 0
    %1767 = vmatpush1.bf16.msra.mxu0 0
    %1768 = vmatprep.subr.bf16.mxu0 0
    %1769 = vmatpush1.bf16.msra.mxu0 0
    %1770 = vmatprep.subr.bf16.mxu0 0
    %1771 = vmatpush1.bf16.msra.mxu0 0
    %1772 = vmatprep.subr.bf16.mxu0 0
    %1773 = vmatpush1.bf16.msra.mxu0 0
    %1774 = vmatprep.subr.bf16.mxu0 0
    %1775 = vmatpush1.bf16.msra.mxu0 0
    %1776 = vmatprep.subr.bf16.mxu0 0
    %1777 = vmatpush1.bf16.msra.mxu0 0
    %1778 = vmatprep.subr.bf16.mxu0 0
    %1779 = vmatpush1.bf16.msra.mxu0 0
    %1780 = vmatprep.subr.bf16.mxu0 0
    %1781 = vmatpush1.bf16.msra.mxu0 0
    %1782 = vmatprep.subr.bf16.mxu0 0
    %1783 = vmatpush1.bf16.msra.mxu0 0
    %1784 = vmatprep.subr.bf16.mxu0 0
    %1785 = vmatpush1.bf16.msra.mxu0 0
    %1786 = vmatprep.mubr.bf16.mxu0 0
    %1787 = vmatmul.mubr.bf16.gmra.mrb[0].mxu0 %v1752
    %v1788 = vpop.f32.mrb[0].mxu0
    %v1789 = vadd.f32 0.0, %v1788
    %v1790 = vpop.f32.mrb[0].mxu0
    %v1791 = vpop.f32.mrb[0].mxu0
    %v1792 = vpop.f32.mrb[0].mxu0
    %1793 = vdwg.mxu0
    %v1794 = vadd.f32 %v1652, %v1789
    %v1795 = vpack.c.bf16 %v1074, %v1074
    %1797 = vrot.lane.b32.xlu0 %v1795, 64
    %v1798 = vpop.permute.xlu0 %1797
    %v1800 = vsel %vm356, %v1798, 0
    %1802 = vmatprep.subr.bf16.mxu0 0
    %1803 = vmatpush1.bf16.msra.mxu0 %v470
    %1804 = vmatprep.subr.bf16.mxu0 0
    %1805 = vmatpush1.bf16.msra.mxu0 %v471
    %1806 = vmatprep.subr.bf16.mxu0 0
    %1807 = vmatpush1.bf16.msra.mxu0 0
    %1808 = vmatprep.subr.bf16.mxu0 0
    %1809 = vmatpush1.bf16.msra.mxu0 0
    %1810 = vmatprep.subr.bf16.mxu0 0
    %1811 = vmatpush1.bf16.msra.mxu0 0
    %1812 = vmatprep.subr.bf16.mxu0 0
    %1813 = vmatpush1.bf16.msra.mxu0 0
    %1814 = vmatprep.subr.bf16.mxu0 0
    %1815 = vmatpush1.bf16.msra.mxu0 0
    %1816 = vmatprep.subr.bf16.mxu0 0
    %1817 = vmatpush1.bf16.msra.mxu0 0
    %1818 = vmatprep.subr.bf16.mxu0 0
    %1819 = vmatpush1.bf16.msra.mxu0 0
    %1820 = vmatprep.subr.bf16.mxu0 0
    %1821 = vmatpush1.bf16.msra.mxu0 0
    %1822 = vmatprep.subr.bf16.mxu0 0
    %1823 = vmatpush1.bf16.msra.mxu0 0
    %1824 = vmatprep.subr.bf16.mxu0 0
    %1825 = vmatpush1.bf16.msra.mxu0 0
    %1826 = vmatprep.subr.bf16.mxu0 0
    %1827 = vmatpush1.bf16.msra.mxu0 0
    %1828 = vmatprep.subr.bf16.mxu0 0
    %1829 = vmatpush1.bf16.msra.mxu0 0
    %1830 = vmatprep.subr.bf16.mxu0 0
    %1831 = vmatpush1.bf16.msra.mxu0 0
    %1832 = vmatprep.subr.bf16.mxu0 0
    %1833 = vmatpush1.bf16.msra.mxu0 0
    %1834 = vmatprep.mubr.bf16.mxu0 0
    %1835 = vmatmul.mubr.bf16.gmra.mrb[0].mxu0 %v1800
    %v1836 = vpop.f32.mrb[0].mxu0
    %v1837 = vadd.f32 0.0, %v1836
    %v1838 = vpop.f32.mrb[0].mxu0
    %v1839 = vpop.f32.mrb[0].mxu0
    %v1840 = vpop.f32.mrb[0].mxu0
    %1841 = vdwg.mxu0
    %v1842 = vadd.f32 %v1794, %v1837
    %v1843 = vadd.f32 %v1842, %v165
    %v1844 = vxor.u32 %v1843, 2147483648
    %v1845 = vmul.f32 %v1844, 1.442695
    %v1846 = vpow.pop %v1845
    %v1847 = vadd.f32 %v1846, 1.0
    %v1848 = vrcp.pop %v1847
    %v1849 = vmul.f32 1.0, %v1848
    %v1850 = vtanh.pop %v1843
    %v1851 = vmul.f32 %v1849, %v1068
    %1853 = vrot.lane.b32.xlu0 %v1850, 32
    %v1854 = vpop.permute.xlu0 %1853
    %v1856 = vmul.f32 %v1849, %v1854
    %1858 = vrot.lane.b32.xlu0 %v1856, 32
    %v1859 = vpop.permute.xlu0 %1858
    %v1861 = vadd.f32 %v1851, %v1859
    %v1862 = vtanh.pop %v1861
    %1864 = vrot.lane.b32.xlu0 %v1862, 32
    %v1865 = vpop.permute.xlu0 %1864
    %v1867 = vmul.f32 %v1849, %v1865
    %v1868 = vpack.c.bf16 %v1867, %v1867
    %1869 = vmatprep.subr.bf16.mxu0 0
    %1870 = vmatpush1.bf16.msra.mxu0 %v1103
    %1871 = vmatprep.subr.bf16.mxu0 0
    %1872 = vmatpush1.bf16.msra.mxu0 0
    %1873 = vmatprep.subr.bf16.mxu0 0
    %1874 = vmatpush1.bf16.msra.mxu0 0
    %1875 = vmatprep.subr.bf16.mxu0 0
    %1876 = vmatpush1.bf16.msra.mxu0 0
    %1877 = vmatprep.subr.bf16.mxu0 0
    %1878 = vmatpush1.bf16.msra.mxu0 0
    %1879 = vmatprep.subr.bf16.mxu0 0
    %1880 = vmatpush1.bf16.msra.mxu0 0
    %1881 = vmatprep.subr.bf16.mxu0 0
    %1882 = vmatpush1.bf16.msra.mxu0 0
    %1883 = vmatprep.subr.bf16.mxu0 0
    %1884 = vmatpush1.bf16.msra.mxu0 0
    %1885 = vmatprep.subr.bf16.mxu0 0
    %1886 = vmatpush1.bf16.msra.mxu0 0
    %1887 = vmatprep.subr.bf16.mxu0 0
    %1888 = vmatpush1.bf16.msra.mxu0 0
    %1889 = vmatprep.subr.bf16.mxu0 0
    %1890 = vmatpush1.bf16.msra.mxu0 0
    %1891 = vmatprep.subr.bf16.mxu0 0
    %1892 = vmatpush1.bf16.msra.mxu0 0
    %1893 = vmatprep.subr.bf16.mxu0 0
    %1894 = vmatpush1.bf16.msra.mxu0 0
    %1895 = vmatprep.subr.bf16.mxu0 0
    %1896 = vmatpush1.bf16.msra.mxu0 0
    %1897 = vmatprep.subr.bf16.mxu0 0
    %1898 = vmatpush1.bf16.msra.mxu0 0
    %1899 = vmatprep.subr.bf16.mxu0 0
    %1900 = vmatpush1.bf16.msra.mxu0 0
    %1901 = vmatprep.mubr.bf16.mxu0 0
    %1902 = vmatmul.mubr.bf16.gmra.mrb[0].mxu0 %v1566
    %v1903 = vpop.f32.mrb[0].mxu0
    %v1904 = vadd.f32 0.0, %v1903
    %v1905 = vpop.f32.mrb[0].mxu0
    %v1906 = vpop.f32.mrb[0].mxu0
    %v1907 = vpop.f32.mrb[0].mxu0
    %1908 = vdwg.mxu0
    %1910 = vrot.lane.b32.xlu0 %v1868, 64
    %v1911 = vpop.permute.xlu0 %1910
    %v1913 = vsel %vm356, %v1911, 0
    %1915 = vmatprep.subr.bf16.mxu0 0
    %1916 = vmatpush1.bf16.msra.mxu0 %v1171
    %1917 = vmatprep.subr.bf16.mxu0 0
    %1918 = vmatpush1.bf16.msra.mxu0 %v1172
    %1919 = vmatprep.subr.bf16.mxu0 0
    %1920 = vmatpush1.bf16.msra.mxu0 0
    %1921 = vmatprep.subr.bf16.mxu0 0
    %1922 = vmatpush1.bf16.msra.mxu0 0
    %1923 = vmatprep.subr.bf16.mxu0 0
    %1924 = vmatpush1.bf16.msra.mxu0 0
    %1925 = vmatprep.subr.bf16.mxu0 0
    %1926 = vmatpush1.bf16.msra.mxu0 0
    %1927 = vmatprep.subr.bf16.mxu0 0
    %1928 = vmatpush1.bf16.msra.mxu0 0
    %1929 = vmatprep.subr.bf16.mxu0 0
    %1930 = vmatpush1.bf16.msra.mxu0 0
    %1931 = vmatprep.subr.bf16.mxu0 0
    %1932 = vmatpush1.bf16.msra.mxu0 0
    %1933 = vmatprep.subr.bf16.mxu0 0
    %1934 = vmatpush1.bf16.msra.mxu0 0
    %1935 = vmatprep.subr.bf16.mxu0 0
    %1936 = vmatpush1.bf16.msra.mxu0 0
    %1937 = vmatprep.subr.bf16.mxu0 0
    %1938 = vmatpush1.bf16.msra.mxu0 0
    %1939 = vmatprep.subr.bf16.mxu0 0
    %1940 = vmatpush1.bf16.msra.mxu0 0
    %1941 = vmatprep.subr.bf16.mxu0 0
    %1942 = vmatpush1.bf16.msra.mxu0 0
    %1943 = vmatprep.subr.bf16.mxu0 0
    %1944 = vmatpush1.bf16.msra.mxu0 0
    %1945 = vmatprep.subr.bf16.mxu0 0
    %1946 = vmatpush1.bf16.msra.mxu0 0
    %1947 = vmatprep.mubr.bf16.mxu0 0
    %1948 = vmatmul.mubr.bf16.gmra.mrb[0].mxu0 %v1913
    %v1949 = vpop.f32.mrb[0].mxu0
    %v1950 = vadd.f32 %v1904, %v1949
    %v1951 = vpop.f32.mrb[0].mxu0
    %v1952 = vpop.f32.mrb[0].mxu0
    %v1953 = vpop.f32.mrb[0].mxu0
    %1954 = vdwg.mxu0
    %1955 = vmatprep.subr.bf16.mxu0 0
    %1956 = vmatpush1.bf16.msra.mxu0 %v1104
    %1957 = vmatprep.subr.bf16.mxu0 0
    %1958 = vmatpush1.bf16.msra.mxu0 0
    %1959 = vmatprep.subr.bf16.mxu0 0
    %1960 = vmatpush1.bf16.msra.mxu0 0
    %1961 = vmatprep.subr.bf16.mxu0 0
    %1962 = vmatpush1.bf16.msra.mxu0 0
    %1963 = vmatprep.subr.bf16.mxu0 0
    %1964 = vmatpush1.bf16.msra.mxu0 0
    %1965 = vmatprep.subr.bf16.mxu0 0
    %1966 = vmatpush1.bf16.msra.mxu0 0
    %1967 = vmatprep.subr.bf16.mxu0 0
    %1968 = vmatpush1.bf16.msra.mxu0 0
    %1969 = vmatprep.subr.bf16.mxu0 0
    %1970 = vmatpush1.bf16.msra.mxu0 0
    %1971 = vmatprep.subr.bf16.mxu0 0
    %1972 = vmatpush1.bf16.msra.mxu0 0
    %1973 = vmatprep.subr.bf16.mxu0 0
    %1974 = vmatpush1.bf16.msra.mxu0 0
    %1975 = vmatprep.subr.bf16.mxu0 0
    %1976 = vmatpush1.bf16.msra.mxu0 0
    %1977 = vmatprep.subr.bf16.mxu0 0
    %1978 = vmatpush1.bf16.msra.mxu0 0
    %1979 = vmatprep.subr.bf16.mxu0 0
    %1980 = vmatpush1.bf16.msra.mxu0 0
    %1981 = vmatprep.subr.bf16.mxu0 0
    %1982 = vmatpush1.bf16.msra.mxu0 0
    %1983 = vmatprep.subr.bf16.mxu0 0
    %1984 = vmatpush1.bf16.msra.mxu0 0
    %1985 = vmatprep.subr.bf16.mxu0 0
    %1986 = vmatpush1.bf16.msra.mxu0 0
    %1987 = vmatprep.mubr.bf16.mxu0 0
    %1988 = vmatmul.mubr.bf16.gmra.mrb[0].mxu0 %v1523
    %v1989 = vpop.f32.mrb[0].mxu0
    %v1990 = vadd.f32 0.0, %v1989
    %v1991 = vpop.f32.mrb[0].mxu0
    %v1992 = vpop.f32.mrb[0].mxu0
    %v1993 = vpop.f32.mrb[0].mxu0
    %1994 = vdwg.mxu0
    %v1995 = vadd.f32 %v1950, %v1990
    %1996 = vmatprep.subr.bf16.mxu0 0
    %1997 = vmatpush1.bf16.msra.mxu0 %v1105
    %1998 = vmatprep.subr.bf16.mxu0 0
    %1999 = vmatpush1.bf16.msra.mxu0 0
    %2000 = vmatprep.subr.bf16.mxu0 0
    %2001 = vmatpush1.bf16.msra.mxu0 0
    %2002 = vmatprep.subr.bf16.mxu0 0
    %2003 = vmatpush1.bf16.msra.mxu0 0
    %2004 = vmatprep.subr.bf16.mxu0 0
    %2005 = vmatpush1.bf16.msra.mxu0 0
    %2006 = vmatprep.subr.bf16.mxu0 0
    %2007 = vmatpush1.bf16.msra.mxu0 0
    %2008 = vmatprep.subr.bf16.mxu0 0
    %2009 = vmatpush1.bf16.msra.mxu0 0
    %2010 = vmatprep.subr.bf16.mxu0 0
    %2011 = vmatpush1.bf16.msra.mxu0 0
    %2012 = vmatprep.subr.bf16.mxu0 0
    %2013 = vmatpush1.bf16.msra.mxu0 0
    %2014 = vmatprep.subr.bf16.mxu0 0
    %2015 = vmatpush1.bf16.msra.mxu0 0
    %2016 = vmatprep.subr.bf16.mxu0 0
    %2017 = vmatpush1.bf16.msra.mxu0 0
    %2018 = vmatprep.subr.bf16.mxu0 0
    %2019 = vmatpush1.bf16.msra.mxu0 0
    %2020 = vmatprep.subr.bf16.mxu0 0
    %2021 = vmatpush1.bf16.msra.mxu0 0
    %2022 = vmatprep.subr.bf16.mxu0 0
    %2023 = vmatpush1.bf16.msra.mxu0 0
    %2024 = vmatprep.subr.bf16.mxu0 0
    %2025 = vmatpush1.bf16.msra.mxu0 0
    %2026 = vmatprep.subr.bf16.mxu0 0
    %2027 = vmatpush1.bf16.msra.mxu0 0
    %2028 = vmatprep.mubr.bf16.mxu0 0
    %2029 = vmatmul.mubr.bf16.gmra.mrb[0].mxu0 %v1610
    %v2030 = vpop.f32.mrb[0].mxu0
    %v2031 = vadd.f32 0.0, %v2030
    %v2032 = vpop.f32.mrb[0].mxu0
    %v2033 = vpop.f32.mrb[0].mxu0
    %v2034 = vpop.f32.mrb[0].mxu0
    %2035 = vdwg.mxu0
    %v2036 = vadd.f32 %v1995, %v2031
    %v2037 = vadd.f32 %v2036, %v172
    %vm2038 = vcmp.gt.f32.partialorder %v2037, 0.0
    %v2039 = vmul.f32 %v2037, 0.01
    %v2040 = vsel %vm2038, %v2037, %v2039
    %v2041 = vpack.c.bf16 %v2040, %v2040
    %v2043 = vsel %vm1281, %v2041, 0
    %2045 = vmatprep.subr.bf16.mxu0 0
    %2046 = vmatpush1.bf16.msra.mxu0 %v1273
    %2047 = vmatprep.subr.bf16.mxu0 0
    %2048 = vmatpush1.bf16.msra.mxu0 %v1274
    %2049 = vmatprep.subr.bf16.mxu0 0
    %2050 = vmatpush1.bf16.msra.mxu0 %v1275
    %2051 = vmatprep.subr.bf16.mxu0 0
    %2052 = vmatpush1.bf16.msra.mxu0 %v1276
    %2053 = vmatprep.subr.bf16.mxu0 0
    %2054 = vmatpush1.bf16.msra.mxu0 0
    %2055 = vmatprep.subr.bf16.mxu0 0
    %2056 = vmatpush1.bf16.msra.mxu0 0
    %2057 = vmatprep.subr.bf16.mxu0 0
    %2058 = vmatpush1.bf16.msra.mxu0 0
    %2059 = vmatprep.subr.bf16.mxu0 0
    %2060 = vmatpush1.bf16.msra.mxu0 0
    %2061 = vmatprep.subr.bf16.mxu0 0
    %2062 = vmatpush1.bf16.msra.mxu0 0
    %2063 = vmatprep.subr.bf16.mxu0 0
    %2064 = vmatpush1.bf16.msra.mxu0 0
    %2065 = vmatprep.subr.bf16.mxu0 0
    %2066 = vmatpush1.bf16.msra.mxu0 0
    %2067 = vmatprep.subr.bf16.mxu0 0
    %2068 = vmatpush1.bf16.msra.mxu0 0
    %2069 = vmatprep.subr.bf16.mxu0 0
    %2070 = vmatpush1.bf16.msra.mxu0 0
    %2071 = vmatprep.subr.bf16.mxu0 0
    %2072 = vmatpush1.bf16.msra.mxu0 0
    %2073 = vmatprep.subr.bf16.mxu0 0
    %2074 = vmatpush1.bf16.msra.mxu0 0
    %2075 = vmatprep.subr.bf16.mxu0 0
    %2076 = vmatpush1.bf16.msra.mxu0 0
    %2077 = vmatprep.mubr.bf16.mxu0 0
    %2078 = vmatmul.mubr.bf16.gmra.mrb[0].mxu0 %v2043
    %v2079 = vpop.f32.mrb[0].mxu0
    %v2080 = vadd.f32 %v179, %v2079
    %v2081 = vpop.f32.mrb[0].mxu0
    %v2082 = vpop.f32.mrb[0].mxu0
    %v2083 = vpop.f32.mrb[0].mxu0
    %2084 = vdwg.mxu0
    %vm2085 = vcmp.gt.f32.partialorder %v2080, 0.0
    %v2086 = vmul.f32 %v2080, 0.01
    %v2087 = vsel %vm2085, %v2080, %v2086
    %v2088 = vpack.c.bf16 %v2087, %v2087
    %2089 = vmatprep.subr.bf16.mxu0 0
    %2090 = vmatpush1.bf16.msra.mxu0 %v1386
    %2091 = vmatprep.subr.bf16.mxu0 0
    %2092 = vmatpush1.bf16.msra.mxu0 %v1387
    %2093 = vmatprep.subr.bf16.mxu0 0
    %2094 = vmatpush1.bf16.msra.mxu0 %v1388
    %2095 = vmatprep.subr.bf16.mxu0 0
    %2096 = vmatpush1.bf16.msra.mxu0 %v1389
    %2097 = vmatprep.subr.bf16.mxu0 0
    %2098 = vmatpush1.bf16.msra.mxu0 %v1390
    %2099 = vmatprep.subr.bf16.mxu0 0
    %2100 = vmatpush1.bf16.msra.mxu0 %v1391
    %2101 = vmatprep.subr.bf16.mxu0 0
    %2102 = vmatpush1.bf16.msra.mxu0 %v1392
    %2103 = vmatprep.subr.bf16.mxu0 0
    %2104 = vmatpush1.bf16.msra.mxu0 %v1393
    %2105 = vmatprep.subr.bf16.mxu0 0
    %2106 = vmatpush1.bf16.msra.mxu0 0
    %2107 = vmatprep.subr.bf16.mxu0 0
    %2108 = vmatpush1.bf16.msra.mxu0 0
    %2109 = vmatprep.subr.bf16.mxu0 0
    %2110 = vmatpush1.bf16.msra.mxu0 0
    %2111 = vmatprep.subr.bf16.mxu0 0
    %2112 = vmatpush1.bf16.msra.mxu0 0
    %2113 = vmatprep.subr.bf16.mxu0 0
    %2114 = vmatpush1.bf16.msra.mxu0 0
    %2115 = vmatprep.subr.bf16.mxu0 0
    %2116 = vmatpush1.bf16.msra.mxu0 0
    %2117 = vmatprep.subr.bf16.mxu0 0
    %2118 = vmatpush1.bf16.msra.mxu0 0
    %2119 = vmatprep.subr.bf16.mxu0 0
    %2120 = vmatpush1.bf16.msra.mxu0 0
    %2121 = vmatprep.mubr.bf16.mxu0 0
    %2122 = vmatmul.mubr.bf16.gmra.mrb[0].mxu0 %v2088
    %v2123 = vpop.f32.mrb[0].mxu0
    %v2124 = vadd.f32 %v186, %v2123
    %v2125 = vpop.f32.mrb[0].mxu0
    %v2126 = vpop.f32.mrb[0].mxu0
    %v2127 = vpop.f32.mrb[0].mxu0
    %2128 = vdwg.mxu0
    %v2129 = vxor.u32 %v2124, 2147483648
    %v2130 = vmul.f32 %v2129, 1.442695
    %v2131 = vpow.pop %v2130
    %v2132 = vadd.f32 %v2131, 1.0
    %v2133 = vrcp.pop %v2132
    %v2134 = vmul.f32 1.0, %v2133
    %v2135 = vsub.f32 %v2134, %v1467
    %v2136 = vsub.f32 %v2135, %v1470
    %2138 = vrot.lane.b32.xlu0 %v2135, 16
    %v2139 = vpop.permute.xlu0 %2138
    %2142 = vrot.lane.b32.xlu0 %v2136, 32
    %v2143 = vpop.permute.xlu0 %2142
    %v2145 = vsel %vm1510, %v2134, %v2139
    %v2146 = vsel %vm356, %v2145, %v2143
    %s2147 = scalar_lea.vmem [#allocation12], 24
    %2148 = vst.msk [vmem:[%s2147] sm:$0xff] %vm418, %v2146
    %v2149 = vpack.c.bf16 %v2134, %v2134
    %v2150 = vpack.c.bf16 %v2135, %v2135
    %v2152 = vsel %vm1510, %v2150, 0
    %2154 = vmatprep.subr.bf16.mxu0 0
    %2155 = vmatpush1.bf16.msra.mxu0 %v413
    %2156 = vmatprep.subr.bf16.mxu0 0
    %2157 = vmatpush1.bf16.msra.mxu0 0
    %2158 = vmatprep.subr.bf16.mxu0 0
    %2159 = vmatpush1.bf16.msra.mxu0 0
    %2160 = vmatprep.subr.bf16.mxu0 0
    %2161 = vmatpush1.bf16.msra.mxu0 0
    %2162 = vmatprep.subr.bf16.mxu0 0
    %2163 = vmatpush1.bf16.msra.mxu0 0
    %2164 = vmatprep.subr.bf16.mxu0 0
    %2165 = vmatpush1.bf16.msra.mxu0 0
    %2166 = vmatprep.subr.bf16.mxu0 0
    %2167 = vmatpush1.bf16.msra.mxu0 0
    %2168 = vmatprep.subr.bf16.mxu0 0
    %2169 = vmatpush1.bf16.msra.mxu0 0
    %2170 = vmatprep.subr.bf16.mxu0 0
    %2171 = vmatpush1.bf16.msra.mxu0 0
    %2172 = vmatprep.subr.bf16.mxu0 0
    %2173 = vmatpush1.bf16.msra.mxu0 0
    %2174 = vmatprep.subr.bf16.mxu0 0
    %2175 = vmatpush1.bf16.msra.mxu0 0
    %2176 = vmatprep.subr.bf16.mxu0 0
    %2177 = vmatpush1.bf16.msra.mxu0 0
    %2178 = vmatprep.subr.bf16.mxu0 0
    %2179 = vmatpush1.bf16.msra.mxu0 0
    %2180 = vmatprep.subr.bf16.mxu0 0
    %2181 = vmatpush1.bf16.msra.mxu0 0
    %2182 = vmatprep.subr.bf16.mxu0 0
    %2183 = vmatpush1.bf16.msra.mxu0 0
    %2184 = vmatprep.subr.bf16.mxu0 0
    %2185 = vmatpush1.bf16.msra.mxu0 0
    %2186 = vmatprep.mubr.bf16.mxu0 0
    %2187 = vmatmul.mubr.bf16.gmra.mrb[0].mxu0 %v2152
    %v2188 = vpop.f32.mrb[0].mxu0
    %v2189 = vadd.f32 0.0, %v2188
    %v2190 = vpop.f32.mrb[0].mxu0
    %v2191 = vpop.f32.mrb[0].mxu0
    %v2192 = vpop.f32.mrb[0].mxu0
    %2193 = vdwg.mxu0
    %v2195 = vsel %vm1510, %v2149, 0
    %2197 = vmatprep.subr.bf16.mxu0 0
    %2198 = vmatpush1.bf16.msra.mxu0 %v412
    %2199 = vmatprep.subr.bf16.mxu0 0
    %2200 = vmatpush1.bf16.msra.mxu0 0
    %2201 = vmatprep.subr.bf16.mxu0 0
    %2202 = vmatpush1.bf16.msra.mxu0 0
    %2203 = vmatprep.subr.bf16.mxu0 0
    %2204 = vmatpush1.bf16.msra.mxu0 0
    %2205 = vmatprep.subr.bf16.mxu0 0
    %2206 = vmatpush1.bf16.msra.mxu0 0
    %2207 = vmatprep.subr.bf16.mxu0 0
    %2208 = vmatpush1.bf16.msra.mxu0 0
    %2209 = vmatprep.subr.bf16.mxu0 0
    %2210 = vmatpush1.bf16.msra.mxu0 0
    %2211 = vmatprep.subr.bf16.mxu0 0
    %2212 = vmatpush1.bf16.msra.mxu0 0
    %2213 = vmatprep.subr.bf16.mxu0 0
    %2214 = vmatpush1.bf16.msra.mxu0 0
    %2215 = vmatprep.subr.bf16.mxu0 0
    %2216 = vmatpush1.bf16.msra.mxu0 0
    %2217 = vmatprep.subr.bf16.mxu0 0
    %2218 = vmatpush1.bf16.msra.mxu0 0
    %2219 = vmatprep.subr.bf16.mxu0 0
    %2220 = vmatpush1.bf16.msra.mxu0 0
    %2221 = vmatprep.subr.bf16.mxu0 0
    %2222 = vmatpush1.bf16.msra.mxu0 0
    %2223 = vmatprep.subr.bf16.mxu0 0
    %2224 = vmatpush1.bf16.msra.mxu0 0
    %2225 = vmatprep.subr.bf16.mxu0 0
    %2226 = vmatpush1.bf16.msra.mxu0 0
    %2227 = vmatprep.subr.bf16.mxu0 0
    %2228 = vmatpush1.bf16.msra.mxu0 0
    %2229 = vmatprep.mubr.bf16.mxu0 0
    %2230 = vmatmul.mubr.bf16.gmra.mrb[0].mxu0 %v2195
    %v2231 = vpop.f32.mrb[0].mxu0
    %v2232 = vadd.f32 %v2189, %v2231
    %v2233 = vpop.f32.mrb[0].mxu0
    %v2234 = vpop.f32.mrb[0].mxu0
    %v2235 = vpop.f32.mrb[0].mxu0
    %2236 = vdwg.mxu0
    %v2237 = vpack.c.bf16 %v2136, %v2136
    %v2239 = vsel %vm1510, %v2237, 0
    %2241 = vmatprep.subr.bf16.mxu0 0
    %2242 = vmatpush1.bf16.msra.mxu0 %v414
    %2243 = vmatprep.subr.bf16.mxu0 0
    %2244 = vmatpush1.bf16.msra.mxu0 0
    %2245 = vmatprep.subr.bf16.mxu0 0
    %2246 = vmatpush1.bf16.msra.mxu0 0
    %2247 = vmatprep.subr.bf16.mxu0 0
    %2248 = vmatpush1.bf16.msra.mxu0 0
    %2249 = vmatprep.subr.bf16.mxu0 0
    %2250 = vmatpush1.bf16.msra.mxu0 0
    %2251 = vmatprep.subr.bf16.mxu0 0
    %2252 = vmatpush1.bf16.msra.mxu0 0
    %2253 = vmatprep.subr.bf16.mxu0 0
    %2254 = vmatpush1.bf16.msra.mxu0 0
    %2255 = vmatprep.subr.bf16.mxu0 0
    %2256 = vmatpush1.bf16.msra.mxu0 0
    %2257 = vmatprep.subr.bf16.mxu0 0
    %2258 = vmatpush1.bf16.msra.mxu0 0
    %2259 = vmatprep.subr.bf16.mxu0 0
    %2260 = vmatpush1.bf16.msra.mxu0 0
    %2261 = vmatprep.subr.bf16.mxu0 0
    %2262 = vmatpush1.bf16.msra.mxu0 0
    %2263 = vmatprep.subr.bf16.mxu0 0
    %2264 = vmatpush1.bf16.msra.mxu0 0
    %2265 = vmatprep.subr.bf16.mxu0 0
    %2266 = vmatpush1.bf16.msra.mxu0 0
    %2267 = vmatprep.subr.bf16.mxu0 0
    %2268 = vmatpush1.bf16.msra.mxu0 0
    %2269 = vmatprep.subr.bf16.mxu0 0
    %2270 = vmatpush1.bf16.msra.mxu0 0
    %2271 = vmatprep.subr.bf16.mxu0 0
    %2272 = vmatpush1.bf16.msra.mxu0 0
    %2273 = vmatprep.mubr.bf16.mxu0 0
    %2274 = vmatmul.mubr.bf16.gmra.mrb[0].mxu0 %v2239
    %v2275 = vpop.f32.mrb[0].mxu0
    %v2276 = vadd.f32 0.0, %v2275
    %v2277 = vpop.f32.mrb[0].mxu0
    %v2278 = vpop.f32.mrb[0].mxu0
    %v2279 = vpop.f32.mrb[0].mxu0
    %2280 = vdwg.mxu0
    %v2281 = vadd.f32 %v2232, %v2276
    %v2282 = vadd.f32 %v1867, %v199
    %v2283 = vadd.f32 %v1867, %v206
    %v2284 = vadd.f32 %v1867, %v213
    %v2285 = vadd.f32 %v1867, %v220
    %v2286 = vadd.f32 %v1867, %v227
    %v2287 = vadd.f32 %v1867, %v234
    %v2288 = vadd.f32 %v1867, %v241
    %v2289 = vadd.f32 %v1867, %v248
    %v2290 = vsel %vm559, %v2282, -inf
    %v2291 = vrot.slane %v2290, 4
    %v2292 = vmax.f32 %v2290, %v2291
    %v2293 = vrot.slane %v2292, 2
    %v2294 = vmax.f32 %v2292, %v2293
    %v2295 = vrot.slane %v2294, 1
    %v2296 = vmax.f32 %v2294, %v2295
    %v2297 = vsel %vm559, %v2283, -inf
    %v2298 = vrot.slane %v2297, 4
    %v2299 = vmax.f32 %v2297, %v2298
    %v2300 = vrot.slane %v2299, 2
    %v2301 = vmax.f32 %v2299, %v2300
    %v2302 = vrot.slane %v2301, 1
    %v2303 = vmax.f32 %v2301, %v2302
    %v2304 = vsel %vm559, %v2284, -inf
    %v2305 = vrot.slane %v2304, 4
    %v2306 = vmax.f32 %v2304, %v2305
    %v2307 = vrot.slane %v2306, 2
    %v2308 = vmax.f32 %v2306, %v2307
    %v2309 = vrot.slane %v2308, 1
    %v2310 = vmax.f32 %v2308, %v2309
    %v2311 = vsel %vm559, %v2285, -inf
    %v2312 = vrot.slane %v2311, 4
    %v2313 = vmax.f32 %v2311, %v2312
    %v2314 = vrot.slane %v2313, 2
    %v2315 = vmax.f32 %v2313, %v2314
    %v2316 = vrot.slane %v2315, 1
    %v2317 = vmax.f32 %v2315, %v2316
    %v2318 = vsel %vm559, %v2286, -inf
    %v2319 = vrot.slane %v2318, 4
    %v2320 = vmax.f32 %v2318, %v2319
    %v2321 = vrot.slane %v2320, 2
    %v2322 = vmax.f32 %v2320, %v2321
    %v2323 = vrot.slane %v2322, 1
    %v2324 = vmax.f32 %v2322, %v2323
    %v2325 = vsel %vm559, %v2287, -inf
    %v2326 = vrot.slane %v2325, 4
    %v2327 = vmax.f32 %v2325, %v2326
    %v2328 = vrot.slane %v2327, 2
    %v2329 = vmax.f32 %v2327, %v2328
    %v2330 = vrot.slane %v2329, 1
    %v2331 = vmax.f32 %v2329, %v2330
    %v2332 = vsel %vm559, %v2288, -inf
    %v2333 = vrot.slane %v2332, 4
    %v2334 = vmax.f32 %v2332, %v2333
    %v2335 = vrot.slane %v2334, 2
    %v2336 = vmax.f32 %v2334, %v2335
    %v2337 = vrot.slane %v2336, 1
    %v2338 = vmax.f32 %v2336, %v2337
    %v2339 = vsel %vm559, %v2289, -inf
    %v2340 = vrot.slane %v2339, 4
    %v2341 = vmax.f32 %v2339, %v2340
    %v2342 = vrot.slane %v2341, 2
    %v2343 = vmax.f32 %v2341, %v2342
    %v2344 = vrot.slane %v2343, 1
    %v2345 = vmax.f32 %v2343, %v2344
    %v2346 = vpack.c.bf16 %v2296, %v2296
    %v2347 = vpack.c.bf16 %v2303, %v2303
    %v2348 = vpack.c.bf16 %v2310, %v2310
    %v2349 = vpack.c.bf16 %v2317, %v2317
    %v2350 = vpack.c.bf16 %v2324, %v2324
    %v2351 = vpack.c.bf16 %v2331, %v2331
    %v2352 = vpack.c.bf16 %v2338, %v2338
    %v2353 = vpack.c.bf16 %v2345, %v2345
    %v2362 = vunpack.c.l.b16 %v2346
    %v2363 = vunpack.c.l.b16 %v2347
    %v2364 = vunpack.c.l.b16 %v2348
    %v2365 = vunpack.c.l.b16 %v2349
    %v2366 = vunpack.c.l.b16 %v2350
    %v2367 = vunpack.c.l.b16 %v2351
    %v2368 = vunpack.c.l.b16 %v2352
    %v2369 = vunpack.c.l.b16 %v2353
    %v2370 = vsel %vm329, %v2363, %v2362
    %v2371 = vsel %vm331, %v2364, %v2370
    %v2372 = vsel %vm333, %v2365, %v2371
    %v2373 = vsel %vm335, %v2366, %v2372
    %v2374 = vsel %vm337, %v2367, %v2373
    %v2375 = vsel %vm339, %v2368, %v2374
    %v2376 = vsel %vm341, %v2369, %v2375
    %v2377 = vpack.c.b16 %v2376, %v2376
    %2378 = vrot.lane.b32.xlu0 %v2377, 64
    %v2379 = vpop.permute.xlu0 %2378
    %v2381 = vsel %vm356, %v2379, 0
    %2383 = vmatprep.subr.bf16.mxu0 0
    %2384 = vmatpush1.bf16.msra.mxu0 %v352
    %2385 = vmatprep.subr.bf16.mxu0 0
    %2386 = vmatpush1.bf16.msra.mxu0 %v353
    %2387 = vmatprep.subr.bf16.mxu0 0
    %2388 = vmatpush1.bf16.msra.mxu0 0
    %2389 = vmatprep.subr.bf16.mxu0 0
    %2390 = vmatpush1.bf16.msra.mxu0 0
    %2391 = vmatprep.subr.bf16.mxu0 0
    %2392 = vmatpush1.bf16.msra.mxu0 0
    %2393 = vmatprep.subr.bf16.mxu0 0
    %2394 = vmatpush1.bf16.msra.mxu0 0
    %2395 = vmatprep.subr.bf16.mxu0 0
    %2396 = vmatpush1.bf16.msra.mxu0 0
    %2397 = vmatprep.subr.bf16.mxu0 0
    %2398 = vmatpush1.bf16.msra.mxu0 0
    %2399 = vmatprep.subr.bf16.mxu0 0
    %2400 = vmatpush1.bf16.msra.mxu0 0
    %2401 = vmatprep.subr.bf16.mxu0 0
    %2402 = vmatpush1.bf16.msra.mxu0 0
    %2403 = vmatprep.subr.bf16.mxu0 0
    %2404 = vmatpush1.bf16.msra.mxu0 0
    %2405 = vmatprep.subr.bf16.mxu0 0
    %2406 = vmatpush1.bf16.msra.mxu0 0
    %2407 = vmatprep.subr.bf16.mxu0 0
    %2408 = vmatpush1.bf16.msra.mxu0 0
    %2409 = vmatprep.subr.bf16.mxu0 0
    %2410 = vmatpush1.bf16.msra.mxu0 0
    %2411 = vmatprep.subr.bf16.mxu0 0
    %2412 = vmatpush1.bf16.msra.mxu0 0
    %2413 = vmatprep.subr.bf16.mxu0 0
    %2414 = vmatpush1.bf16.msra.mxu0 0
    %2415 = vmatprep.mubr.bf16.mxu0 0
    %2416 = vmatmul.mubr.bf16.gmra.mrb[0].mxu0 %v2381
    %v2417 = vpop.f32.mrb[0].mxu0
    %v2418 = vadd.f32 0.0, %v2417
    %v2419 = vpop.f32.mrb[0].mxu0
    %v2420 = vpop.f32.mrb[0].mxu0
    %v2421 = vpop.f32.mrb[0].mxu0
    %2422 = vdwg.mxu0
    %v2423 = vadd.f32 %v2281, %v2418
    %2424 = vmatprep.subr.bf16.mxu0 0
    %2425 = vmatpush1.bf16.msra.mxu0 %v470
    %2426 = vmatprep.subr.bf16.mxu0 0
    %2427 = vmatpush1.bf16.msra.mxu0 %v471
    %2428 = vmatprep.subr.bf16.mxu0 0
    %2429 = vmatpush1.bf16.msra.mxu0 0
    %2430 = vmatprep.subr.bf16.mxu0 0
    %2431 = vmatpush1.bf16.msra.mxu0 0
    %2432 = vmatprep.subr.bf16.mxu0 0
    %2433 = vmatpush1.bf16.msra.mxu0 0
    %2434 = vmatprep.subr.bf16.mxu0 0
    %2435 = vmatpush1.bf16.msra.mxu0 0
    %2436 = vmatprep.subr.bf16.mxu0 0
    %2437 = vmatpush1.bf16.msra.mxu0 0
    %2438 = vmatprep.subr.bf16.mxu0 0
    %2439 = vmatpush1.bf16.msra.mxu0 0
    %2440 = vmatprep.subr.bf16.mxu0 0
    %2441 = vmatpush1.bf16.msra.mxu0 0
    %2442 = vmatprep.subr.bf16.mxu0 0
    %2443 = vmatpush1.bf16.msra.mxu0 0
    %2444 = vmatprep.subr.bf16.mxu0 0
    %2445 = vmatpush1.bf16.msra.mxu0 0
    %2446 = vmatprep.subr.bf16.mxu0 0
    %2447 = vmatpush1.bf16.msra.mxu0 0
    %2448 = vmatprep.subr.bf16.mxu0 0
    %2449 = vmatpush1.bf16.msra.mxu0 0
    %2450 = vmatprep.subr.bf16.mxu0 0
    %2451 = vmatpush1.bf16.msra.mxu0 0
    %2452 = vmatprep.subr.bf16.mxu0 0
    %2453 = vmatpush1.bf16.msra.mxu0 0
    %2454 = vmatprep.subr.bf16.mxu0 0
    %2455 = vmatpush1.bf16.msra.mxu0 0
    %2456 = vmatprep.mubr.bf16.mxu0 0
    %2457 = vmatmul.mubr.bf16.gmra.mrb[0].mxu0 %v1913
    %v2458 = vpop.f32.mrb[0].mxu0
    %v2459 = vadd.f32 0.0, %v2458
    %v2460 = vpop.f32.mrb[0].mxu0
    %v2461 = vpop.f32.mrb[0].mxu0
    %v2462 = vpop.f32.mrb[0].mxu0
    %2463 = vdwg.mxu0
    %v2464 = vadd.f32 %v2423, %v2459
    %v2465 = vadd.f32 %v2464, %v165
    %v2466 = vxor.u32 %v2465, 2147483648
    %v2467 = vmul.f32 %v2466, 1.442695
    %v2468 = vpow.pop %v2467
    %v2469 = vadd.f32 %v2468, 1.0
    %v2470 = vrcp.pop %v2469
    %v2471 = vmul.f32 1.0, %v2470
    %v2472 = vtanh.pop %v2465
    %v2473 = vmul.f32 %v2471, %v1861
    %2475 = vrot.lane.b32.xlu0 %v2472, 32
    %v2476 = vpop.permute.xlu0 %2475
    %v2478 = vmul.f32 %v2471, %v2476
    %2480 = vrot.lane.b32.xlu0 %v2478, 32
    %v2481 = vpop.permute.xlu0 %2480
    %v2483 = vadd.f32 %v2473, %v2481
    %v2484 = vtanh.pop %v2483
    %2486 = vrot.lane.b32.xlu0 %v2484, 32
    %v2487 = vpop.permute.xlu0 %2486
    %v2489 = vmul.f32 %v2471, %v2487
    %v2490 = vpack.c.bf16 %v2489, %v2489
    %2491 = vmatprep.subr.bf16.mxu0 0
    %2492 = vmatpush1.bf16.msra.mxu0 %v1103
    %2493 = vmatprep.subr.bf16.mxu0 0
    %2494 = vmatpush1.bf16.msra.mxu0 0
    %2495 = vmatprep.subr.bf16.mxu0 0
    %2496 = vmatpush1.bf16.msra.mxu0 0
    %2497 = vmatprep.subr.bf16.mxu0 0
    %2498 = vmatpush1.bf16.msra.mxu0 0
    %2499 = vmatprep.subr.bf16.mxu0 0
    %2500 = vmatpush1.bf16.msra.mxu0 0
    %2501 = vmatprep.subr.bf16.mxu0 0
    %2502 = vmatpush1.bf16.msra.mxu0 0
    %2503 = vmatprep.subr.bf16.mxu0 0
    %2504 = vmatpush1.bf16.msra.mxu0 0
    %2505 = vmatprep.subr.bf16.mxu0 0
    %2506 = vmatpush1.bf16.msra.mxu0 0
    %2507 = vmatprep.subr.bf16.mxu0 0
    %2508 = vmatpush1.bf16.msra.mxu0 0
    %2509 = vmatprep.subr.bf16.mxu0 0
    %2510 = vmatpush1.bf16.msra.mxu0 0
    %2511 = vmatprep.subr.bf16.mxu0 0
    %2512 = vmatpush1.bf16.msra.mxu0 0
    %2513 = vmatprep.subr.bf16.mxu0 0
    %2514 = vmatpush1.bf16.msra.mxu0 0
    %2515 = vmatprep.subr.bf16.mxu0 0
    %2516 = vmatpush1.bf16.msra.mxu0 0
    %2517 = vmatprep.subr.bf16.mxu0 0
    %2518 = vmatpush1.bf16.msra.mxu0 0
    %2519 = vmatprep.subr.bf16.mxu0 0
    %2520 = vmatpush1.bf16.msra.mxu0 0
    %2521 = vmatprep.subr.bf16.mxu0 0
    %2522 = vmatpush1.bf16.msra.mxu0 0
    %2523 = vmatprep.mubr.bf16.mxu0 0
    %2524 = vmatmul.mubr.bf16.gmra.mrb[0].mxu0 %v2195
    %v2525 = vpop.f32.mrb[0].mxu0
    %v2526 = vadd.f32 0.0, %v2525
    %v2527 = vpop.f32.mrb[0].mxu0
    %v2528 = vpop.f32.mrb[0].mxu0
    %v2529 = vpop.f32.mrb[0].mxu0
    %2530 = vdwg.mxu0
    %2532 = vrot.lane.b32.xlu0 %v2490, 64
    %v2533 = vpop.permute.xlu0 %2532
    %v2535 = vsel %vm356, %v2533, 0
    %2537 = vmatprep.subr.bf16.mxu0 0
    %2538 = vmatpush1.bf16.msra.mxu0 %v1171
    %2539 = vmatprep.subr.bf16.mxu0 0
    %2540 = vmatpush1.bf16.msra.mxu0 %v1172
    %2541 = vmatprep.subr.bf16.mxu0 0
    %2542 = vmatpush1.bf16.msra.mxu0 0
    %2543 = vmatprep.subr.bf16.mxu0 0
    %2544 = vmatpush1.bf16.msra.mxu0 0
    %2545 = vmatprep.subr.bf16.mxu0 0
    %2546 = vmatpush1.bf16.msra.mxu0 0
    %2547 = vmatprep.subr.bf16.mxu0 0
    %2548 = vmatpush1.bf16.msra.mxu0 0
    %2549 = vmatprep.subr.bf16.mxu0 0
    %2550 = vmatpush1.bf16.msra.mxu0 0
    %2551 = vmatprep.subr.bf16.mxu0 0
    %2552 = vmatpush1.bf16.msra.mxu0 0
    %2553 = vmatprep.subr.bf16.mxu0 0
    %2554 = vmatpush1.bf16.msra.mxu0 0
    %2555 = vmatprep.subr.bf16.mxu0 0
    %2556 = vmatpush1.bf16.msra.mxu0 0
    %2557 = vmatprep.subr.bf16.mxu0 0
    %2558 = vmatpush1.bf16.msra.mxu0 0
    %2559 = vmatprep.subr.bf16.mxu0 0
    %2560 = vmatpush1.bf16.msra.mxu0 0
    %2561 = vmatprep.subr.bf16.mxu0 0
    %2562 = vmatpush1.bf16.msra.mxu0 0
    %2563 = vmatprep.subr.bf16.mxu0 0
    %2564 = vmatpush1.bf16.msra.mxu0 0
    %2565 = vmatprep.subr.bf16.mxu0 0
    %2566 = vmatpush1.bf16.msra.mxu0 0
    %2567 = vmatprep.subr.bf16.mxu0 0
    %2568 = vmatpush1.bf16.msra.mxu0 0
    %2569 = vmatprep.mubr.bf16.mxu0 0
    %2570 = vmatmul.mubr.bf16.gmra.mrb[0].mxu0 %v2535
    %v2571 = vpop.f32.mrb[0].mxu0
    %v2572 = vadd.f32 %v2526, %v2571
    %v2573 = vpop.f32.mrb[0].mxu0
    %v2574 = vpop.f32.mrb[0].mxu0
    %v2575 = vpop.f32.mrb[0].mxu0
    %2576 = vdwg.mxu0
    %2577 = vmatprep.subr.bf16.mxu0 0
    %2578 = vmatpush1.bf16.msra.mxu0 %v1104
    %2579 = vmatprep.subr.bf16.mxu0 0
    %2580 = vmatpush1.bf16.msra.mxu0 0
    %2581 = vmatprep.subr.bf16.mxu0 0
    %2582 = vmatpush1.bf16.msra.mxu0 0
    %2583 = vmatprep.subr.bf16.mxu0 0
    %2584 = vmatpush1.bf16.msra.mxu0 0
    %2585 = vmatprep.subr.bf16.mxu0 0
    %2586 = vmatpush1.bf16.msra.mxu0 0
    %2587 = vmatprep.subr.bf16.mxu0 0
    %2588 = vmatpush1.bf16.msra.mxu0 0
    %2589 = vmatprep.subr.bf16.mxu0 0
    %2590 = vmatpush1.bf16.msra.mxu0 0
    %2591 = vmatprep.subr.bf16.mxu0 0
    %2592 = vmatpush1.bf16.msra.mxu0 0
    %2593 = vmatprep.subr.bf16.mxu0 0
    %2594 = vmatpush1.bf16.msra.mxu0 0
    %2595 = vmatprep.subr.bf16.mxu0 0
    %2596 = vmatpush1.bf16.msra.mxu0 0
    %2597 = vmatprep.subr.bf16.mxu0 0
    %2598 = vmatpush1.bf16.msra.mxu0 0
    %2599 = vmatprep.subr.bf16.mxu0 0
    %2600 = vmatpush1.bf16.msra.mxu0 0
    %2601 = vmatprep.subr.bf16.mxu0 0
    %2602 = vmatpush1.bf16.msra.mxu0 0
    %2603 = vmatprep.subr.bf16.mxu0 0
    %2604 = vmatpush1.bf16.msra.mxu0 0
    %2605 = vmatprep.subr.bf16.mxu0 0
    %2606 = vmatpush1.bf16.msra.mxu0 0
    %2607 = vmatprep.subr.bf16.mxu0 0
    %2608 = vmatpush1.bf16.msra.mxu0 0
    %2609 = vmatprep.mubr.bf16.mxu0 0
    %2610 = vmatmul.mubr.bf16.gmra.mrb[0].mxu0 %v2152
    %v2611 = vpop.f32.mrb[0].mxu0
    %v2612 = vadd.f32 0.0, %v2611
    %v2613 = vpop.f32.mrb[0].mxu0
    %v2614 = vpop.f32.mrb[0].mxu0
    %v2615 = vpop.f32.mrb[0].mxu0
    %2616 = vdwg.mxu0
    %v2617 = vadd.f32 %v2572, %v2612
    %2618 = vmatprep.subr.bf16.mxu0 0
    %2619 = vmatpush1.bf16.msra.mxu0 %v1105
    %2620 = vmatprep.subr.bf16.mxu0 0
    %2621 = vmatpush1.bf16.msra.mxu0 0
    %2622 = vmatprep.subr.bf16.mxu0 0
    %2623 = vmatpush1.bf16.msra.mxu0 0
    %2624 = vmatprep.subr.bf16.mxu0 0
    %2625 = vmatpush1.bf16.msra.mxu0 0
    %2626 = vmatprep.subr.bf16.mxu0 0
    %2627 = vmatpush1.bf16.msra.mxu0 0
    %2628 = vmatprep.subr.bf16.mxu0 0
    %2629 = vmatpush1.bf16.msra.mxu0 0
    %2630 = vmatprep.subr.bf16.mxu0 0
    %2631 = vmatpush1.bf16.msra.mxu0 0
    %2632 = vmatprep.subr.bf16.mxu0 0
    %2633 = vmatpush1.bf16.msra.mxu0 0
    %2634 = vmatprep.subr.bf16.mxu0 0
    %2635 = vmatpush1.bf16.msra.mxu0 0
    %2636 = vmatprep.subr.bf16.mxu0 0
    %2637 = vmatpush1.bf16.msra.mxu0 0
    %2638 = vmatprep.subr.bf16.mxu0 0
    %2639 = vmatpush1.bf16.msra.mxu0 0
    %2640 = vmatprep.subr.bf16.mxu0 0
    %2641 = vmatpush1.bf16.msra.mxu0 0
    %2642 = vmatprep.subr.bf16.mxu0 0
    %2643 = vmatpush1.bf16.msra.mxu0 0
    %2644 = vmatprep.subr.bf16.mxu0 0
    %2645 = vmatpush1.bf16.msra.mxu0 0
    %2646 = vmatprep.subr.bf16.mxu0 0
    %2647 = vmatpush1.bf16.msra.mxu0 0
    %2648 = vmatprep.subr.bf16.mxu0 0
    %2649 = vmatpush1.bf16.msra.mxu0 0
    %2650 = vmatprep.mubr.bf16.mxu0 0
    %2651 = vmatmul.mubr.bf16.gmra.mrb[0].mxu0 %v2239
    %v2652 = vpop.f32.mrb[0].mxu0
    %v2653 = vadd.f32 0.0, %v2652
    %v2654 = vpop.f32.mrb[0].mxu0
    %v2655 = vpop.f32.mrb[0].mxu0
    %v2656 = vpop.f32.mrb[0].mxu0
    %2657 = vdwg.mxu0
    %v2658 = vadd.f32 %v2617, %v2653
    %v2659 = vadd.f32 %v2658, %v172
    %vm2660 = vcmp.gt.f32.partialorder %v2659, 0.0
    %v2661 = vmul.f32 %v2659, 0.01
    %v2662 = vsel %vm2660, %v2659, %v2661
    %v2663 = vpack.c.bf16 %v2662, %v2662
    %v2665 = vsel %vm1281, %v2663, 0
    %2667 = vmatprep.subr.bf16.mxu0 0
    %2668 = vmatpush1.bf16.msra.mxu0 %v1273
    %2669 = vmatprep.subr.bf16.mxu0 0
    %2670 = vmatpush1.bf16.msra.mxu0 %v1274
    %2671 = vmatprep.subr.bf16.mxu0 0
    %2672 = vmatpush1.bf16.msra.mxu0 %v1275
    %2673 = vmatprep.subr.bf16.mxu0 0
    %2674 = vmatpush1.bf16.msra.mxu0 %v1276
    %2675 = vmatprep.subr.bf16.mxu0 0
    %2676 = vmatpush1.bf16.msra.mxu0 0
    %2677 = vmatprep.subr.bf16.mxu0 0
    %2678 = vmatpush1.bf16.msra.mxu0 0
    %2679 = vmatprep.subr.bf16.mxu0 0
    %2680 = vmatpush1.bf16.msra.mxu0 0
    %2681 = vmatprep.subr.bf16.mxu0 0
    %2682 = vmatpush1.bf16.msra.mxu0 0
    %2683 = vmatprep.subr.bf16.mxu0 0
    %2684 = vmatpush1.bf16.msra.mxu0 0
    %2685 = vmatprep.subr.bf16.mxu0 0
    %2686 = vmatpush1.bf16.msra.mxu0 0
    %2687 = vmatprep.subr.bf16.mxu0 0
    %2688 = vmatpush1.bf16.msra.mxu0 0
    %2689 = vmatprep.subr.bf16.mxu0 0
    %2690 = vmatpush1.bf16.msra.mxu0 0
    %2691 = vmatprep.subr.bf16.mxu0 0
    %2692 = vmatpush1.bf16.msra.mxu0 0
    %2693 = vmatprep.subr.bf16.mxu0 0
    %2694 = vmatpush1.bf16.msra.mxu0 0
    %2695 = vmatprep.subr.bf16.mxu0 0
    %2696 = vmatpush1.bf16.msra.mxu0 0
    %2697 = vmatprep.subr.bf16.mxu0 0
    %2698 = vmatpush1.bf16.msra.mxu0 0
    %2699 = vmatprep.mubr.bf16.mxu0 0
    %2700 = vmatmul.mubr.bf16.gmra.mrb[0].mxu0 %v2665
    %v2701 = vpop.f32.mrb[0].mxu0
    %v2702 = vadd.f32 %v179, %v2701
    %v2703 = vpop.f32.mrb[0].mxu0
    %v2704 = vpop.f32.mrb[0].mxu0
    %v2705 = vpop.f32.mrb[0].mxu0
    %2706 = vdwg.mxu0
    %vm2707 = vcmp.gt.f32.partialorder %v2702, 0.0
    %v2708 = vmul.f32 %v2702, 0.01
    %v2709 = vsel %vm2707, %v2702, %v2708
    %v2710 = vpack.c.bf16 %v2709, %v2709
    %2711 = vmatprep.subr.bf16.mxu0 0
    %2712 = vmatpush1.bf16.msra.mxu0 %v1386
    %2713 = vmatprep.subr.bf16.mxu0 0
    %2714 = vmatpush1.bf16.msra.mxu0 %v1387
    %2715 = vmatprep.subr.bf16.mxu0 0
    %2716 = vmatpush1.bf16.msra.mxu0 %v1388
    %2717 = vmatprep.subr.bf16.mxu0 0
    %2718 = vmatpush1.bf16.msra.mxu0 %v1389
    %2719 = vmatprep.subr.bf16.mxu0 0
    %2720 = vmatpush1.bf16.msra.mxu0 %v1390
    %2721 = vmatprep.subr.bf16.mxu0 0
    %2722 = vmatpush1.bf16.msra.mxu0 %v1391
    %2723 = vmatprep.subr.bf16.mxu0 0
    %2724 = vmatpush1.bf16.msra.mxu0 %v1392
    %2725 = vmatprep.subr.bf16.mxu0 0
    %2726 = vmatpush1.bf16.msra.mxu0 %v1393
    %2727 = vmatprep.subr.bf16.mxu0 0
    %2728 = vmatpush1.bf16.msra.mxu0 0
    %2729 = vmatprep.subr.bf16.mxu0 0
    %2730 = vmatpush1.bf16.msra.mxu0 0
    %2731 = vmatprep.subr.bf16.mxu0 0
    %2732 = vmatpush1.bf16.msra.mxu0 0
    %2733 = vmatprep.subr.bf16.mxu0 0
    %2734 = vmatpush1.bf16.msra.mxu0 0
    %2735 = vmatprep.subr.bf16.mxu0 0
    %2736 = vmatpush1.bf16.msra.mxu0 0
    %2737 = vmatprep.subr.bf16.mxu0 0
    %2738 = vmatpush1.bf16.msra.mxu0 0
    %2739 = vmatprep.subr.bf16.mxu0 0
    %2740 = vmatpush1.bf16.msra.mxu0 0
    %2741 = vmatprep.subr.bf16.mxu0 0
    %2742 = vmatpush1.bf16.msra.mxu0 0
    %2743 = vmatprep.mubr.bf16.mxu0 0
    %2744 = vmatmul.mubr.bf16.gmra.mrb[0].mxu0 %v2710
    %v2745 = vpop.f32.mrb[0].mxu0
    %v2746 = vadd.f32 %v186, %v2745
    %v2747 = vpop.f32.mrb[0].mxu0
    %v2748 = vpop.f32.mrb[0].mxu0
    %v2749 = vpop.f32.mrb[0].mxu0
    %2750 = vdwg.mxu0
    %v2751 = vxor.u32 %v2746, 2147483648
    %v2752 = vmul.f32 %v2751, 1.442695
    %v2753 = vpow.pop %v2752
    %v2754 = vadd.f32 %v2753, 1.0
    %v2755 = vrcp.pop %v2754
    %v2756 = vmul.f32 1.0, %v2755
    %v2757 = vsub.f32 %v2756, %v2134
    %v2758 = vsub.f32 %v2757, %v2135
    %2760 = vrot.lane.b32.xlu0 %v2757, 16
    %v2761 = vpop.permute.xlu0 %2760
    %2764 = vrot.lane.b32.xlu0 %v2758, 32
    %v2765 = vpop.permute.xlu0 %2764
    %v2767 = vsel %vm1510, %v2756, %v2761
    %v2768 = vsel %vm356, %v2767, %v2765
    %s2769 = scalar_lea.vmem [#allocation12], 32
    %2770 = vst.msk [vmem:[%s2769] sm:$0xff] %vm418, %v2768
    %v2771 = vpack.c.bf16 %v2756, %v2756
    %v2772 = vpack.c.bf16 %v2757, %v2757
    %v2774 = vsel %vm1510, %v2772, 0
    %2776 = vmatprep.subr.bf16.mxu0 0
    %2777 = vmatpush1.bf16.msra.mxu0 %v413
    %2778 = vmatprep.subr.bf16.mxu0 0
    %2779 = vmatpush1.bf16.msra.mxu0 0
    %2780 = vmatprep.subr.bf16.mxu0 0
    %2781 = vmatpush1.bf16.msra.mxu0 0
    %2782 = vmatprep.subr.bf16.mxu0 0
    %2783 = vmatpush1.bf16.msra.mxu0 0
    %2784 = vmatprep.subr.bf16.mxu0 0
    %2785 = vmatpush1.bf16.msra.mxu0 0
    %2786 = vmatprep.subr.bf16.mxu0 0
    %2787 = vmatpush1.bf16.msra.mxu0 0
    %2788 = vmatprep.subr.bf16.mxu0 0
    %2789 = vmatpush1.bf16.msra.mxu0 0
    %2790 = vmatprep.subr.bf16.mxu0 0
    %2791 = vmatpush1.bf16.msra.mxu0 0
    %2792 = vmatprep.subr.bf16.mxu0 0
    %2793 = vmatpush1.bf16.msra.mxu0 0
    %2794 = vmatprep.subr.bf16.mxu0 0
    %2795 = vmatpush1.bf16.msra.mxu0 0
    %2796 = vmatprep.subr.bf16.mxu0 0
    %2797 = vmatpush1.bf16.msra.mxu0 0
    %2798 = vmatprep.subr.bf16.mxu0 0
    %2799 = vmatpush1.bf16.msra.mxu0 0
    %2800 = vmatprep.subr.bf16.mxu0 0
    %2801 = vmatpush1.bf16.msra.mxu0 0
    %2802 = vmatprep.subr.bf16.mxu0 0
    %2803 = vmatpush1.bf16.msra.mxu0 0
    %2804 = vmatprep.subr.bf16.mxu0 0
    %2805 = vmatpush1.bf16.msra.mxu0 0
    %2806 = vmatprep.subr.bf16.mxu0 0
    %2807 = vmatpush1.bf16.msra.mxu0 0
    %2808 = vmatprep.mubr.bf16.mxu0 0
    %2809 = vmatmul.mubr.bf16.gmra.mrb[0].mxu0 %v2774
    %v2810 = vpop.f32.mrb[0].mxu0
    %v2811 = vadd.f32 0.0, %v2810
    %v2812 = vpop.f32.mrb[0].mxu0
    %v2813 = vpop.f32.mrb[0].mxu0
    %v2814 = vpop.f32.mrb[0].mxu0
    %2815 = vdwg.mxu0
    %v2817 = vsel %vm1510, %v2771, 0
    %2819 = vmatprep.subr.bf16.mxu0 0
    %2820 = vmatpush1.bf16.msra.mxu0 %v412
    %2821 = vmatprep.subr.bf16.mxu0 0
    %2822 = vmatpush1.bf16.msra.mxu0 0
    %2823 = vmatprep.subr.bf16.mxu0 0
    %2824 = vmatpush1.bf16.msra.mxu0 0
    %2825 = vmatprep.subr.bf16.mxu0 0
    %2826 = vmatpush1.bf16.msra.mxu0 0
    %2827 = vmatprep.subr.bf16.mxu0 0
    %2828 = vmatpush1.bf16.msra.mxu0 0
    %2829 = vmatprep.subr.bf16.mxu0 0
    %2830 = vmatpush1.bf16.msra.mxu0 0
    %2831 = vmatprep.subr.bf16.mxu0 0
    %2832 = vmatpush1.bf16.msra.mxu0 0
    %2833 = vmatprep.subr.bf16.mxu0 0
    %2834 = vmatpush1.bf16.msra.mxu0 0
    %2835 = vmatprep.subr.bf16.mxu0 0
    %2836 = vmatpush1.bf16.msra.mxu0 0
    %2837 = vmatprep.subr.bf16.mxu0 0
    %2838 = vmatpush1.bf16.msra.mxu0 0
    %2839 = vmatprep.subr.bf16.mxu0 0
    %2840 = vmatpush1.bf16.msra.mxu0 0
    %2841 = vmatprep.subr.bf16.mxu0 0
    %2842 = vmatpush1.bf16.msra.mxu0 0
    %2843 = vmatprep.subr.bf16.mxu0 0
    %2844 = vmatpush1.bf16.msra.mxu0 0
    %2845 = vmatprep.subr.bf16.mxu0 0
    %2846 = vmatpush1.bf16.msra.mxu0 0
    %2847 = vmatprep.subr.bf16.mxu0 0
    %2848 = vmatpush1.bf16.msra.mxu0 0
    %2849 = vmatprep.subr.bf16.mxu0 0
    %2850 = vmatpush1.bf16.msra.mxu0 0
    %2851 = vmatprep.mubr.bf16.mxu0 0
    %2852 = vmatmul.mubr.bf16.gmra.mrb[0].mxu0 %v2817
    %v2853 = vpop.f32.mrb[0].mxu0
    %v2854 = vadd.f32 %v2811, %v2853
    %v2855 = vpop.f32.mrb[0].mxu0
    %v2856 = vpop.f32.mrb[0].mxu0
    %v2857 = vpop.f32.mrb[0].mxu0
    %2858 = vdwg.mxu0
    %v2859 = vpack.c.bf16 %v2758, %v2758
    %v2861 = vsel %vm1510, %v2859, 0
    %2863 = vmatprep.subr.bf16.mxu0 0
    %2864 = vmatpush1.bf16.msra.mxu0 %v414
    %2865 = vmatprep.subr.bf16.mxu0 0
    %2866 = vmatpush1.bf16.msra.mxu0 0
    %2867 = vmatprep.subr.bf16.mxu0 0
    %2868 = vmatpush1.bf16.msra.mxu0 0
    %2869 = vmatprep.subr.bf16.mxu0 0
    %2870 = vmatpush1.bf16.msra.mxu0 0
    %2871 = vmatprep.subr.bf16.mxu0 0
    %2872 = vmatpush1.bf16.msra.mxu0 0
    %2873 = vmatprep.subr.bf16.mxu0 0
    %2874 = vmatpush1.bf16.msra.mxu0 0
    %2875 = vmatprep.subr.bf16.mxu0 0
    %2876 = vmatpush1.bf16.msra.mxu0 0
    %2877 = vmatprep.subr.bf16.mxu0 0
    %2878 = vmatpush1.bf16.msra.mxu0 0
    %2879 = vmatprep.subr.bf16.mxu0 0
    %2880 = vmatpush1.bf16.msra.mxu0 0
    %2881 = vmatprep.subr.bf16.mxu0 0
    %2882 = vmatpush1.bf16.msra.mxu0 0
    %2883 = vmatprep.subr.bf16.mxu0 0
    %2884 = vmatpush1.bf16.msra.mxu0 0
    %2885 = vmatprep.subr.bf16.mxu0 0
    %2886 = vmatpush1.bf16.msra.mxu0 0
    %2887 = vmatprep.subr.bf16.mxu0 0
    %2888 = vmatpush1.bf16.msra.mxu0 0
    %2889 = vmatprep.subr.bf16.mxu0 0
    %2890 = vmatpush1.bf16.msra.mxu0 0
    %2891 = vmatprep.subr.bf16.mxu0 0
    %2892 = vmatpush1.bf16.msra.mxu0 0
    %2893 = vmatprep.subr.bf16.mxu0 0
    %2894 = vmatpush1.bf16.msra.mxu0 0
    %2895 = vmatprep.mubr.bf16.mxu0 0
    %2896 = vmatmul.mubr.bf16.gmra.mrb[0].mxu0 %v2861
    %v2897 = vpop.f32.mrb[0].mxu0
    %v2898 = vadd.f32 0.0, %v2897
    %v2899 = vpop.f32.mrb[0].mxu0
    %v2900 = vpop.f32.mrb[0].mxu0
    %v2901 = vpop.f32.mrb[0].mxu0
    %2902 = vdwg.mxu0
    %v2903 = vadd.f32 %v2854, %v2898
    %v2904 = vadd.f32 %v2489, %v199
    %v2905 = vadd.f32 %v2489, %v206
    %v2906 = vadd.f32 %v2489, %v213
    %v2907 = vadd.f32 %v2489, %v220
    %v2908 = vadd.f32 %v2489, %v227
    %v2909 = vadd.f32 %v2489, %v234
    %v2910 = vadd.f32 %v2489, %v241
    %v2911 = vadd.f32 %v2489, %v248
    %v2912 = vsel %vm559, %v2904, -inf
    %v2913 = vrot.slane %v2912, 4
    %v2914 = vmax.f32 %v2912, %v2913
    %v2915 = vrot.slane %v2914, 2
    %v2916 = vmax.f32 %v2914, %v2915
    %v2917 = vrot.slane %v2916, 1
    %v2918 = vmax.f32 %v2916, %v2917
    %v2919 = vsel %vm559, %v2905, -inf
    %v2920 = vrot.slane %v2919, 4
    %v2921 = vmax.f32 %v2919, %v2920
    %v2922 = vrot.slane %v2921, 2
    %v2923 = vmax.f32 %v2921, %v2922
    %v2924 = vrot.slane %v2923, 1
    %v2925 = vmax.f32 %v2923, %v2924
    %v2926 = vsel %vm559, %v2906, -inf
    %v2927 = vrot.slane %v2926, 4
    %v2928 = vmax.f32 %v2926, %v2927
    %v2929 = vrot.slane %v2928, 2
    %v2930 = vmax.f32 %v2928, %v2929
    %v2931 = vrot.slane %v2930, 1
    %v2932 = vmax.f32 %v2930, %v2931
    %v2933 = vsel %vm559, %v2907, -inf
    %v2934 = vrot.slane %v2933, 4
    %v2935 = vmax.f32 %v2933, %v2934
    %v2936 = vrot.slane %v2935, 2
    %v2937 = vmax.f32 %v2935, %v2936
    %v2938 = vrot.slane %v2937, 1
    %v2939 = vmax.f32 %v2937, %v2938
    %v2940 = vsel %vm559, %v2908, -inf
    %v2941 = vrot.slane %v2940, 4
    %v2942 = vmax.f32 %v2940, %v2941
    %v2943 = vrot.slane %v2942, 2
    %v2944 = vmax.f32 %v2942, %v2943
    %v2945 = vrot.slane %v2944, 1
    %v2946 = vmax.f32 %v2944, %v2945
    %v2947 = vsel %vm559, %v2909, -inf
    %v2948 = vrot.slane %v2947, 4
    %v2949 = vmax.f32 %v2947, %v2948
    %v2950 = vrot.slane %v2949, 2
    %v2951 = vmax.f32 %v2949, %v2950
    %v2952 = vrot.slane %v2951, 1
    %v2953 = vmax.f32 %v2951, %v2952
    %v2954 = vsel %vm559, %v2910, -inf
    %v2955 = vrot.slane %v2954, 4
    %v2956 = vmax.f32 %v2954, %v2955
    %v2957 = vrot.slane %v2956, 2
    %v2958 = vmax.f32 %v2956, %v2957
    %v2959 = vrot.slane %v2958, 1
    %v2960 = vmax.f32 %v2958, %v2959
    %v2961 = vsel %vm559, %v2911, -inf
    %v2962 = vrot.slane %v2961, 4
    %v2963 = vmax.f32 %v2961, %v2962
    %v2964 = vrot.slane %v2963, 2
    %v2965 = vmax.f32 %v2963, %v2964
    %v2966 = vrot.slane %v2965, 1
    %v2967 = vmax.f32 %v2965, %v2966
    %v2968 = vpack.c.bf16 %v2918, %v2918
    %v2969 = vpack.c.bf16 %v2925, %v2925
    %v2970 = vpack.c.bf16 %v2932, %v2932
    %v2971 = vpack.c.bf16 %v2939, %v2939
    %v2972 = vpack.c.bf16 %v2946, %v2946
    %v2973 = vpack.c.bf16 %v2953, %v2953
    %v2974 = vpack.c.bf16 %v2960, %v2960
    %v2975 = vpack.c.bf16 %v2967, %v2967
    %v2984 = vunpack.c.l.b16 %v2968
    %v2985 = vunpack.c.l.b16 %v2969
    %v2986 = vunpack.c.l.b16 %v2970
    %v2987 = vunpack.c.l.b16 %v2971
    %v2988 = vunpack.c.l.b16 %v2972
    %v2989 = vunpack.c.l.b16 %v2973
    %v2990 = vunpack.c.l.b16 %v2974
    %v2991 = vunpack.c.l.b16 %v2975
    %v2992 = vsel %vm329, %v2985, %v2984
    %v2993 = vsel %vm331, %v2986, %v2992
    %v2994 = vsel %vm333, %v2987, %v2993
    %v2995 = vsel %vm335, %v2988, %v2994
    %v2996 = vsel %vm337, %v2989, %v2995
    %v2997 = vsel %vm339, %v2990, %v2996
    %v2998 = vsel %vm341, %v2991, %v2997
    %v2999 = vpack.c.b16 %v2998, %v2998
    %3000 = vrot.lane.b32.xlu0 %v2999, 64
    %v3001 = vpop.permute.xlu0 %3000
    %v3003 = vsel %vm356, %v3001, 0
    %3005 = vmatprep.subr.bf16.mxu0 0
    %3006 = vmatpush1.bf16.msra.mxu0 %v352
    %3007 = vmatprep.subr.bf16.mxu0 0
    %3008 = vmatpush1.bf16.msra.mxu0 %v353
    %3009 = vmatprep.subr.bf16.mxu0 0
    %3010 = vmatpush1.bf16.msra.mxu0 0
    %3011 = vmatprep.subr.bf16.mxu0 0
    %3012 = vmatpush1.bf16.msra.mxu0 0
    %3013 = vmatprep.subr.bf16.mxu0 0
    %3014 = vmatpush1.bf16.msra.mxu0 0
    %3015 = vmatprep.subr.bf16.mxu0 0
    %3016 = vmatpush1.bf16.msra.mxu0 0
    %3017 = vmatprep.subr.bf16.mxu0 0
    %3018 = vmatpush1.bf16.msra.mxu0 0
    %3019 = vmatprep.subr.bf16.mxu0 0
    %3020 = vmatpush1.bf16.msra.mxu0 0
    %3021 = vmatprep.subr.bf16.mxu0 0
    %3022 = vmatpush1.bf16.msra.mxu0 0
    %3023 = vmatprep.subr.bf16.mxu0 0
    %3024 = vmatpush1.bf16.msra.mxu0 0
    %3025 = vmatprep.subr.bf16.mxu0 0
    %3026 = vmatpush1.bf16.msra.mxu0 0
    %3027 = vmatprep.subr.bf16.mxu0 0
    %3028 = vmatpush1.bf16.msra.mxu0 0
    %3029 = vmatprep.subr.bf16.mxu0 0
    %3030 = vmatpush1.bf16.msra.mxu0 0
    %3031 = vmatprep.subr.bf16.mxu0 0
    %3032 = vmatpush1.bf16.msra.mxu0 0
    %3033 = vmatprep.subr.bf16.mxu0 0
    %3034 = vmatpush1.bf16.msra.mxu0 0
    %3035 = vmatprep.subr.bf16.mxu0 0
    %3036 = vmatpush1.bf16.msra.mxu0 0
    %3037 = vmatprep.mubr.bf16.mxu0 0
    %3038 = vmatmul.mubr.bf16.gmra.mrb[0].mxu0 %v3003
    %v3039 = vpop.f32.mrb[0].mxu0
    %v3040 = vadd.f32 0.0, %v3039
    %v3041 = vpop.f32.mrb[0].mxu0
    %v3042 = vpop.f32.mrb[0].mxu0
    %v3043 = vpop.f32.mrb[0].mxu0
    %3044 = vdwg.mxu0
    %v3045 = vadd.f32 %v2903, %v3040
    %3046 = vmatprep.subr.bf16.mxu0 0
    %3047 = vmatpush1.bf16.msra.mxu0 %v470
    %3048 = vmatprep.subr.bf16.mxu0 0
    %3049 = vmatpush1.bf16.msra.mxu0 %v471
    %3050 = vmatprep.subr.bf16.mxu0 0
    %3051 = vmatpush1.bf16.msra.mxu0 0
    %3052 = vmatprep.subr.bf16.mxu0 0
    %3053 = vmatpush1.bf16.msra.mxu0 0
    %3054 = vmatprep.subr.bf16.mxu0 0
    %3055 = vmatpush1.bf16.msra.mxu0 0
    %3056 = vmatprep.subr.bf16.mxu0 0
    %3057 = vmatpush1.bf16.msra.mxu0 0
    %3058 = vmatprep.subr.bf16.mxu0 0
    %3059 = vmatpush1.bf16.msra.mxu0 0
    %3060 = vmatprep.subr.bf16.mxu0 0
    %3061 = vmatpush1.bf16.msra.mxu0 0
    %3062 = vmatprep.subr.bf16.mxu0 0
    %3063 = vmatpush1.bf16.msra.mxu0 0
    %3064 = vmatprep.subr.bf16.mxu0 0
    %3065 = vmatpush1.bf16.msra.mxu0 0
    %3066 = vmatprep.subr.bf16.mxu0 0
    %3067 = vmatpush1.bf16.msra.mxu0 0
    %3068 = vmatprep.subr.bf16.mxu0 0
    %3069 = vmatpush1.bf16.msra.mxu0 0
    %3070 = vmatprep.subr.bf16.mxu0 0
    %3071 = vmatpush1.bf16.msra.mxu0 0
    %3072 = vmatprep.subr.bf16.mxu0 0
    %3073 = vmatpush1.bf16.msra.mxu0 0
    %3074 = vmatprep.subr.bf16.mxu0 0
    %3075 = vmatpush1.bf16.msra.mxu0 0
    %3076 = vmatprep.subr.bf16.mxu0 0
    %3077 = vmatpush1.bf16.msra.mxu0 0
    %3078 = vmatprep.mubr.bf16.mxu0 0
    %3079 = vmatmul.mubr.bf16.gmra.mrb[0].mxu0 %v2535
    %v3080 = vpop.f32.mrb[0].mxu0
    %v3081 = vadd.f32 0.0, %v3080
    %v3082 = vpop.f32.mrb[0].mxu0
    %v3083 = vpop.f32.mrb[0].mxu0
    %v3084 = vpop.f32.mrb[0].mxu0
    %3085 = vdwg.mxu0
    %v3086 = vadd.f32 %v3045, %v3081
    %v3087 = vadd.f32 %v3086, %v165
    %v3088 = vxor.u32 %v3087, 2147483648
    %v3089 = vmul.f32 %v3088, 1.442695
    %v3090 = vpow.pop %v3089
    %v3091 = vadd.f32 %v3090, 1.0
    %v3092 = vrcp.pop %v3091
    %v3093 = vmul.f32 1.0, %v3092
    %v3094 = vtanh.pop %v3087
    %v3095 = vmul.f32 %v3093, %v2483
    %3097 = vrot.lane.b32.xlu0 %v3094, 32
    %v3098 = vpop.permute.xlu0 %3097
    %v3100 = vmul.f32 %v3093, %v3098
    %3102 = vrot.lane.b32.xlu0 %v3100, 32
    %v3103 = vpop.permute.xlu0 %3102
    %v3105 = vadd.f32 %v3095, %v3103
    %v3106 = vtanh.pop %v3105
    %3108 = vrot.lane.b32.xlu0 %v3106, 32
    %v3109 = vpop.permute.xlu0 %3108
    %v3111 = vmul.f32 %v3093, %v3109
    %v3112 = vpack.c.bf16 %v3111, %v3111
    %3113 = vmatprep.subr.bf16.mxu0 0
    %3114 = vmatpush1.bf16.msra.mxu0 %v1103
    %3115 = vmatprep.subr.bf16.mxu0 0
    %3116 = vmatpush1.bf16.msra.mxu0 0
    %3117 = vmatprep.subr.bf16.mxu0 0
    %3118 = vmatpush1.bf16.msra.mxu0 0
    %3119 = vmatprep.subr.bf16.mxu0 0
    %3120 = vmatpush1.bf16.msra.mxu0 0
    %3121 = vmatprep.subr.bf16.mxu0 0
    %3122 = vmatpush1.bf16.msra.mxu0 0
    %3123 = vmatprep.subr.bf16.mxu0 0
    %3124 = vmatpush1.bf16.msra.mxu0 0
    %3125 = vmatprep.subr.bf16.mxu0 0
    %3126 = vmatpush1.bf16.msra.mxu0 0
    %3127 = vmatprep.subr.bf16.mxu0 0
    %3128 = vmatpush1.bf16.msra.mxu0 0
    %3129 = vmatprep.subr.bf16.mxu0 0
    %3130 = vmatpush1.bf16.msra.mxu0 0
    %3131 = vmatprep.subr.bf16.mxu0 0
    %3132 = vmatpush1.bf16.msra.mxu0 0
    %3133 = vmatprep.subr.bf16.mxu0 0
    %3134 = vmatpush1.bf16.msra.mxu0 0
    %3135 = vmatprep.subr.bf16.mxu0 0
    %3136 = vmatpush1.bf16.msra.mxu0 0
    %3137 = vmatprep.subr.bf16.mxu0 0
    %3138 = vmatpush1.bf16.msra.mxu0 0
    %3139 = vmatprep.subr.bf16.mxu0 0
    %3140 = vmatpush1.bf16.msra.mxu0 0
    %3141 = vmatprep.subr.bf16.mxu0 0
    %3142 = vmatpush1.bf16.msra.mxu0 0
    %3143 = vmatprep.subr.bf16.mxu0 0
    %3144 = vmatpush1.bf16.msra.mxu0 0
    %3145 = vmatprep.mubr.bf16.mxu0 0
    %3146 = vmatmul.mubr.bf16.gmra.mrb[0].mxu0 %v2817
    %v3147 = vpop.f32.mrb[0].mxu0
    %v3148 = vadd.f32 0.0, %v3147
    %v3149 = vpop.f32.mrb[0].mxu0
    %v3150 = vpop.f32.mrb[0].mxu0
    %v3151 = vpop.f32.mrb[0].mxu0
    %3152 = vdwg.mxu0
    %3154 = vrot.lane.b32.xlu0 %v3112, 64
    %v3155 = vpop.permute.xlu0 %3154
    %v3157 = vsel %vm356, %v3155, 0
    %3159 = vmatprep.subr.bf16.mxu0 0
    %3160 = vmatpush1.bf16.msra.mxu0 %v1171
    %3161 = vmatprep.subr.bf16.mxu0 0
    %3162 = vmatpush1.bf16.msra.mxu0 %v1172
    %3163 = vmatprep.subr.bf16.mxu0 0
    %3164 = vmatpush1.bf16.msra.mxu0 0
    %3165 = vmatprep.subr.bf16.mxu0 0
    %3166 = vmatpush1.bf16.msra.mxu0 0
    %3167 = vmatprep.subr.bf16.mxu0 0
    %3168 = vmatpush1.bf16.msra.mxu0 0
    %3169 = vmatprep.subr.bf16.mxu0 0
    %3170 = vmatpush1.bf16.msra.mxu0 0
    %3171 = vmatprep.subr.bf16.mxu0 0
    %3172 = vmatpush1.bf16.msra.mxu0 0
    %3173 = vmatprep.subr.bf16.mxu0 0
    %3174 = vmatpush1.bf16.msra.mxu0 0
    %3175 = vmatprep.subr.bf16.mxu0 0
    %3176 = vmatpush1.bf16.msra.mxu0 0
    %3177 = vmatprep.subr.bf16.mxu0 0
    %3178 = vmatpush1.bf16.msra.mxu0 0
    %3179 = vmatprep.subr.bf16.mxu0 0
    %3180 = vmatpush1.bf16.msra.mxu0 0
    %3181 = vmatprep.subr.bf16.mxu0 0
    %3182 = vmatpush1.bf16.msra.mxu0 0
    %3183 = vmatprep.subr.bf16.mxu0 0
    %3184 = vmatpush1.bf16.msra.mxu0 0
    %3185 = vmatprep.subr.bf16.mxu0 0
    %3186 = vmatpush1.bf16.msra.mxu0 0
    %3187 = vmatprep.subr.bf16.mxu0 0
    %3188 = vmatpush1.bf16.msra.mxu0 0
    %3189 = vmatprep.subr.bf16.mxu0 0
    %3190 = vmatpush1.bf16.msra.mxu0 0
    %3191 = vmatprep.mubr.bf16.mxu0 0
    %3192 = vmatmul.mubr.bf16.gmra.mrb[0].mxu0 %v3157
    %v3193 = vpop.f32.mrb[0].mxu0
    %v3194 = vadd.f32 %v3148, %v3193
    %v3195 = vpop.f32.mrb[0].mxu0
    %v3196 = vpop.f32.mrb[0].mxu0
    %v3197 = vpop.f32.mrb[0].mxu0
    %3198 = vdwg.mxu0
    %3199 = vmatprep.subr.bf16.mxu0 0
    %3200 = vmatpush1.bf16.msra.mxu0 %v1104
    %3201 = vmatprep.subr.bf16.mxu0 0
    %3202 = vmatpush1.bf16.msra.mxu0 0
    %3203 = vmatprep.subr.bf16.mxu0 0
    %3204 = vmatpush1.bf16.msra.mxu0 0
    %3205 = vmatprep.subr.bf16.mxu0 0
    %3206 = vmatpush1.bf16.msra.mxu0 0
    %3207 = vmatprep.subr.bf16.mxu0 0
    %3208 = vmatpush1.bf16.msra.mxu0 0
    %3209 = vmatprep.subr.bf16.mxu0 0
    %3210 = vmatpush1.bf16.msra.mxu0 0
    %3211 = vmatprep.subr.bf16.mxu0 0
    %3212 = vmatpush1.bf16.msra.mxu0 0
    %3213 = vmatprep.subr.bf16.mxu0 0
    %3214 = vmatpush1.bf16.msra.mxu0 0
    %3215 = vmatprep.subr.bf16.mxu0 0
    %3216 = vmatpush1.bf16.msra.mxu0 0
    %3217 = vmatprep.subr.bf16.mxu0 0
    %3218 = vmatpush1.bf16.msra.mxu0 0
    %3219 = vmatprep.subr.bf16.mxu0 0
    %3220 = vmatpush1.bf16.msra.mxu0 0
    %3221 = vmatprep.subr.bf16.mxu0 0
    %3222 = vmatpush1.bf16.msra.mxu0 0
    %3223 = vmatprep.subr.bf16.mxu0 0
    %3224 = vmatpush1.bf16.msra.mxu0 0
    %3225 = vmatprep.subr.bf16.mxu0 0
    %3226 = vmatpush1.bf16.msra.mxu0 0
    %3227 = vmatprep.subr.bf16.mxu0 0
    %3228 = vmatpush1.bf16.msra.mxu0 0
    %3229 = vmatprep.subr.bf16.mxu0 0
    %3230 = vmatpush1.bf16.msra.mxu0 0
    %3231 = vmatprep.mubr.bf16.mxu0 0
    %3232 = vmatmul.mubr.bf16.gmra.mrb[0].mxu0 %v2774
    %v3233 = vpop.f32.mrb[0].mxu0
    %v3234 = vadd.f32 0.0, %v3233
    %v3235 = vpop.f32.mrb[0].mxu0
    %v3236 = vpop.f32.mrb[0].mxu0
    %v3237 = vpop.f32.mrb[0].mxu0
    %3238 = vdwg.mxu0
    %v3239 = vadd.f32 %v3194, %v3234
    %3240 = vmatprep.subr.bf16.mxu0 0
    %3241 = vmatpush1.bf16.msra.mxu0 %v1105
    %3242 = vmatprep.subr.bf16.mxu0 0
    %3243 = vmatpush1.bf16.msra.mxu0 0
    %3244 = vmatprep.subr.bf16.mxu0 0
    %3245 = vmatpush1.bf16.msra.mxu0 0
    %3246 = vmatprep.subr.bf16.mxu0 0
    %3247 = vmatpush1.bf16.msra.mxu0 0
    %3248 = vmatprep.subr.bf16.mxu0 0
    %3249 = vmatpush1.bf16.msra.mxu0 0
    %3250 = vmatprep.subr.bf16.mxu0 0
    %3251 = vmatpush1.bf16.msra.mxu0 0
    %3252 = vmatprep.subr.bf16.mxu0 0
    %3253 = vmatpush1.bf16.msra.mxu0 0
    %3254 = vmatprep.subr.bf16.mxu0 0
    %3255 = vmatpush1.bf16.msra.mxu0 0
    %3256 = vmatprep.subr.bf16.mxu0 0
    %3257 = vmatpush1.bf16.msra.mxu0 0
    %3258 = vmatprep.subr.bf16.mxu0 0
    %3259 = vmatpush1.bf16.msra.mxu0 0
    %3260 = vmatprep.subr.bf16.mxu0 0
    %3261 = vmatpush1.bf16.msra.mxu0 0
    %3262 = vmatprep.subr.bf16.mxu0 0
    %3263 = vmatpush1.bf16.msra.mxu0 0
    %3264 = vmatprep.subr.bf16.mxu0 0
    %3265 = vmatpush1.bf16.msra.mxu0 0
    %3266 = vmatprep.subr.bf16.mxu0 0
    %3267 = vmatpush1.bf16.msra.mxu0 0
    %3268 = vmatprep.subr.bf16.mxu0 0
    %3269 = vmatpush1.bf16.msra.mxu0 0
    %3270 = vmatprep.subr.bf16.mxu0 0
    %3271 = vmatpush1.bf16.msra.mxu0 0
    %3272 = vmatprep.mubr.bf16.mxu0 0
    %3273 = vmatmul.mubr.bf16.gmra.mrb[0].mxu0 %v2861
    %v3274 = vpop.f32.mrb[0].mxu0
    %v3275 = vadd.f32 0.0, %v3274
    %v3276 = vpop.f32.mrb[0].mxu0
    %v3277 = vpop.f32.mrb[0].mxu0
    %v3278 = vpop.f32.mrb[0].mxu0
    %3279 = vdwg.mxu0
    %v3280 = vadd.f32 %v3239, %v3275
    %v3281 = vadd.f32 %v3280, %v172
    %vm3282 = vcmp.gt.f32.partialorder %v3281, 0.0
    %v3283 = vmul.f32 %v3281, 0.01
    %v3284 = vsel %vm3282, %v3281, %v3283
    %v3285 = vpack.c.bf16 %v3284, %v3284
    %v3287 = vsel %vm1281, %v3285, 0
    %3289 = vmatprep.subr.bf16.mxu0 0
    %3290 = vmatpush1.bf16.msra.mxu0 %v1273
    %3291 = vmatprep.subr.bf16.mxu0 0
    %3292 = vmatpush1.bf16.msra.mxu0 %v1274
    %3293 = vmatprep.subr.bf16.mxu0 0
    %3294 = vmatpush1.bf16.msra.mxu0 %v1275
    %3295 = vmatprep.subr.bf16.mxu0 0
    %3296 = vmatpush1.bf16.msra.mxu0 %v1276
    %3297 = vmatprep.subr.bf16.mxu0 0
    %3298 = vmatpush1.bf16.msra.mxu0 0
    %3299 = vmatprep.subr.bf16.mxu0 0
    %3300 = vmatpush1.bf16.msra.mxu0 0
    %3301 = vmatprep.subr.bf16.mxu0 0
    %3302 = vmatpush1.bf16.msra.mxu0 0
    %3303 = vmatprep.subr.bf16.mxu0 0
    %3304 = vmatpush1.bf16.msra.mxu0 0
    %3305 = vmatprep.subr.bf16.mxu0 0
    %3306 = vmatpush1.bf16.msra.mxu0 0
    %3307 = vmatprep.subr.bf16.mxu0 0
    %3308 = vmatpush1.bf16.msra.mxu0 0
    %3309 = vmatprep.subr.bf16.mxu0 0
    %3310 = vmatpush1.bf16.msra.mxu0 0
    %3311 = vmatprep.subr.bf16.mxu0 0
    %3312 = vmatpush1.bf16.msra.mxu0 0
    %3313 = vmatprep.subr.bf16.mxu0 0
    %3314 = vmatpush1.bf16.msra.mxu0 0
    %3315 = vmatprep.subr.bf16.mxu0 0
    %3316 = vmatpush1.bf16.msra.mxu0 0
    %3317 = vmatprep.subr.bf16.mxu0 0
    %3318 = vmatpush1.bf16.msra.mxu0 0
    %3319 = vmatprep.subr.bf16.mxu0 0
    %3320 = vmatpush1.bf16.msra.mxu0 0
    %3321 = vmatprep.mubr.bf16.mxu0 0
    %3322 = vmatmul.mubr.bf16.gmra.mrb[0].mxu0 %v3287
    %v3323 = vpop.f32.mrb[0].mxu0
    %v3324 = vadd.f32 %v179, %v3323
    %v3325 = vpop.f32.mrb[0].mxu0
    %v3326 = vpop.f32.mrb[0].mxu0
    %v3327 = vpop.f32.mrb[0].mxu0
    %3328 = vdwg.mxu0
    %vm3329 = vcmp.gt.f32.partialorder %v3324, 0.0
    %v3330 = vmul.f32 %v3324, 0.01
    %v3331 = vsel %vm3329, %v3324, %v3330
    %v3332 = vpack.c.bf16 %v3331, %v3331
    %3333 = vmatprep.subr.bf16.mxu0 0
    %3334 = vmatpush1.bf16.msra.mxu0 %v1386
    %3335 = vmatprep.subr.bf16.mxu0 0
    %3336 = vmatpush1.bf16.msra.mxu0 %v1387
    %3337 = vmatprep.subr.bf16.mxu0 0
    %3338 = vmatpush1.bf16.msra.mxu0 %v1388
    %3339 = vmatprep.subr.bf16.mxu0 0
    %3340 = vmatpush1.bf16.msra.mxu0 %v1389
    %3341 = vmatprep.subr.bf16.mxu0 0
    %3342 = vmatpush1.bf16.msra.mxu0 %v1390
    %3343 = vmatprep.subr.bf16.mxu0 0
    %3344 = vmatpush1.bf16.msra.mxu0 %v1391
    %3345 = vmatprep.subr.bf16.mxu0 0
    %3346 = vmatpush1.bf16.msra.mxu0 %v1392
    %3347 = vmatprep.subr.bf16.mxu0 0
    %3348 = vmatpush1.bf16.msra.mxu0 %v1393
    %3349 = vmatprep.subr.bf16.mxu0 0
    %3350 = vmatpush1.bf16.msra.mxu0 0
    %3351 = vmatprep.subr.bf16.mxu0 0
    %3352 = vmatpush1.bf16.msra.mxu0 0
    %3353 = vmatprep.subr.bf16.mxu0 0
    %3354 = vmatpush1.bf16.msra.mxu0 0
    %3355 = vmatprep.subr.bf16.mxu0 0
    %3356 = vmatpush1.bf16.msra.mxu0 0
    %3357 = vmatprep.subr.bf16.mxu0 0
    %3358 = vmatpush1.bf16.msra.mxu0 0
    %3359 = vmatprep.subr.bf16.mxu0 0
    %3360 = vmatpush1.bf16.msra.mxu0 0
    %3361 = vmatprep.subr.bf16.mxu0 0
    %3362 = vmatpush1.bf16.msra.mxu0 0
    %3363 = vmatprep.subr.bf16.mxu0 0
    %3364 = vmatpush1.bf16.msra.mxu0 0
    %3365 = vmatprep.mubr.bf16.mxu0 0
    %3366 = vmatmul.mubr.bf16.gmra.mrb[0].mxu0 %v3332
    %v3367 = vpop.f32.mrb[0].mxu0
    %v3368 = vadd.f32 %v186, %v3367
    %v3369 = vpop.f32.mrb[0].mxu0
    %v3370 = vpop.f32.mrb[0].mxu0
    %v3371 = vpop.f32.mrb[0].mxu0
    %3372 = vdwg.mxu0
    %v3373 = vxor.u32 %v3368, 2147483648
    %v3374 = vmul.f32 %v3373, 1.442695
    %v3375 = vpow.pop %v3374
    %v3376 = vadd.f32 %v3375, 1.0
    %v3377 = vrcp.pop %v3376
    %v3378 = vmul.f32 1.0, %v3377
    %v3379 = vsub.f32 %v3378, %v2756
    %v3380 = vsub.f32 %v3379, %v2757
    %3382 = vrot.lane.b32.xlu0 %v3379, 16
    %v3383 = vpop.permute.xlu0 %3382
    %3386 = vrot.lane.b32.xlu0 %v3380, 32
    %v3387 = vpop.permute.xlu0 %3386
    %v3389 = vsel %vm1510, %v3378, %v3383
    %v3390 = vsel %vm356, %v3389, %v3387
    %s3391 = scalar_lea.vmem [#allocation12], 40
    %3392 = vst.msk [vmem:[%s3391] sm:$0xff] %vm418, %v3390
    // Predicated region
    $region74: #{tpu_custom_call.1} parent=1 // pred_check
      _
    $region75: #{tpu_custom_call.1} parent=1 // pred_check_branch
      %3394 = sbr.rel (0) target = $region77
    $region76: #{tpu_custom_call.1} parent=1 // pred_region
      %s3396 = ssub.s32 768, 768
      %3397 = vsyncadd [#allocation5], %s3396
      %s3398 = sshll.u32 [#allocation12], 4
      %s3399 = int_to_ptr.vmem [resolvable:$true] %s3398
      %3404 = dma.vmem_to_hbm [thread:$0]  %s3399, 768, %s13, [#allocation5], 128, 128, 8
    $region77: #{tpu_custom_call.1} parent=1 // pred_fallthru
      _
    // Predicated region
    $region78: #{tpu_custom_call.1} parent=1 // pred_check
      _
    $region79: #{tpu_custom_call.1} parent=1 // pred_check_branch
      %3406 = sbr.rel (0) target = $region81
    $region80: #{tpu_custom_call.1} parent=1 // pred_region
      %3407 = dma.done [#allocation5], 768
    $region81: #{tpu_custom_call.1} parent=1 // pred_fallthru
      _
    %3408 = vsyncpa [#allocation4], 1
    %3409 = vsyncpa [#allocation7], 1
    %3410 = vsyncpa [#allocation10], 1
    %3411 = vsyncpa [#allocation5], 1

</llo_original>
